<compile_context>
chip_gen: v7x
topology: tpu7x:2x2x1
jax: 0.10.0
libtpu: 0.0.40
codegen_flags: <defaults>
</compile_context>

<pallas_src>
import jax
import jax.numpy as jnp
from jax.experimental import pallas as pl
from jax.experimental.pallas import tpu as pltpu

POOL_KS = (5, 9, 13)
_K = 5                 # chained pooling kernel size
_PAD = _K // 2         # = 2
_RH = 2                # row halo (leading dim, alignment irrelevant), >= _PAD
_CH = 8                # column halo (sublane dim), >= _PAD and multiple of 8
NEG_INF = float("-inf")

# Stride-1 "same" max pools compose: pool_a ∘ pool_b == pool_{a+b-1}, hence
# (5, 9, 13) == (pool5, pool5^2, pool5^3) applied to y — an exact identity.
assert all(k == _K + i * (_K - 1) for i, k in enumerate(POOL_KS)), POOL_KS
assert _RH >= _PAD and _CH >= _PAD and _CH % 8 == 0


def _silu(v):
    # v is float32; exp and the approximate reciprocal both run on the EUP.
    return v * pl.reciprocal(1.0 + jnp.exp(-v), approx=True)


def _spp_kernel(x_ref, w1_ref, b1_ref, w2_ref, b2_ref, o_ref, pad_ref):
    """One batch element per grid step. x_ref: (H, W, C1) bf16 in VMEM."""
    H, W, C1 = x_ref.shape
    C_ = w1_ref.shape[1]
    C2 = w2_ref.shape[1]

    # ---- cv1: 1x1 conv (+ folded BN) + SiLU --------------------------------
    x = x_ref[...].reshape(H * W, C1)                                  # bf16
    y = jnp.dot(x, w1_ref[...], preferred_element_type=jnp.float32)    # f32
    y = _silu(y + b1_ref[...])
    y2 = y.astype(jnp.bfloat16).reshape(H, W, C_)

    # ---- -inf halo: thin border strips only --------------------------------
    # (interior is rewritten by every pooling stage; border never changes)
    Wp = W + 2 * _CH
    pad_ref[0:_RH, :, :] = jnp.full((_RH, Wp, C_), NEG_INF, jnp.bfloat16)
    pad_ref[_RH + H:_RH + H + _RH, :, :] = jnp.full((_RH, Wp, C_), NEG_INF,
                                                    jnp.bfloat16)
    pad_ref[_RH:_RH + H, 0:_CH, :] = jnp.full((H, _CH, C_), NEG_INF,
                                              jnp.bfloat16)
    pad_ref[_RH:_RH + H, _CH + W:_CH + W + _CH, :] = jnp.full(
        (H, _CH, C_), NEG_INF, jnp.bfloat16)

    def pool5(a):
        """5x5 stride-1 'same' max pool with -inf padding, separable."""
        pad_ref[_RH:_RH + H, _CH:_CH + W, :] = a        # write interior
        P = pad_ref[...]                                 # (H+2RH, W+2CH, C_)
        # rows (leading dim: slices are cheap regardless of offset)
        r = P[_RH - _PAD:_RH - _PAD + H]
        for d in range(1, _K):
            r = jnp.maximum(r, P[_RH - _PAD + d:_RH - _PAD + d + H])
        # columns (sublane dim)
        out = r[:, _CH - _PAD:_CH - _PAD + W, :]
        for d in range(1, _K):
            out = jnp.maximum(out, r[:, _CH - _PAD + d:_CH - _PAD + d + W, :])
        return out                                       # (H, W, C_) bf16

    # ---- chained pooling (SPPF identity) ------------------------------------
    p5 = pool5(y2)
    p9 = pool5(p5)     # == 9x9 pool of y2
    p13 = pool5(p9)    # == 13x13 pool of y2

    # ---- cv2: single concat matmul (+ folded BN) + SiLU ---------------------
    z = jnp.concatenate([y2, p5, p9, p13], axis=-1).reshape(H * W, 4 * C_)
    acc = jnp.dot(z, w2_ref[...], preferred_element_type=jnp.float32)
    out = _silu(acc + b2_ref[...])
    o_ref[...] = out.reshape(H, W, C2).astype(o_ref.dtype)


def spp_pallas_nhwc(x_nhwc, w1, b1, w2, b2):
    """Preferred entry point. x_nhwc: (N, H, W, C1). Returns (N, H, W, C2) f32."""
    N, H, W, C1 = x_nhwc.shape
    C_ = w1.shape[1]
    C2 = w2.shape[1]

    return pl.pallas_call(
        _spp_kernel,
        out_shape=jax.ShapeDtypeStruct((N, H, W, C2), jnp.float32),
        grid=(N,),
        in_specs=[
            pl.BlockSpec((None, H, W, C1), lambda n: (n, 0, 0, 0)),
            pl.BlockSpec((C1, C_), lambda n: (0, 0)),
            pl.BlockSpec((1, C_), lambda n: (0, 0)),
            pl.BlockSpec((4 * C_, C2), lambda n: (0, 0)),
            pl.BlockSpec((1, C2), lambda n: (0, 0)),
        ],
        out_specs=pl.BlockSpec((None, H, W, C2), lambda n: (n, 0, 0, 0)),
        scratch_shapes=[
            pltpu.VMEM((H + 2 * _RH, W + 2 * _CH, C_), jnp.bfloat16),
        ],
        compiler_params=pltpu.CompilerParams(
            dimension_semantics=("parallel",)),
    )(
        x_nhwc.astype(jnp.bfloat16),
        w1.astype(jnp.bfloat16),
        b1.astype(jnp.float32),
        w2.astype(jnp.bfloat16),
        b2.astype(jnp.float32),
    )


def spp_pallas(x_nchw, w1, b1, w2, b2):
    """NCHW wrapper matching the PyTorch module interface.

    The transposes are HBM-bound XLA ops outside the kernel; prefer
    spp_pallas_nhwc in an NHWC network to avoid them entirely.
    """
    out_nhwc = spp_pallas_nhwc(jnp.transpose(x_nchw, (0, 2, 3, 1)),
                               w1, b1, w2, b2)
    return jnp.transpose(out_nhwc, (0, 3, 1, 2))


def make_params(key, c1, c2):
    """Deterministic synthetic weights; BN folded into 1x1-conv weight + bias."""
    c_ = c1 // 2
    ks = jax.random.split(key, 10)

    def fold(conv_w, gamma, beta, mean, var, eps=1e-5):
        # conv_w: (cin, cout) matmul form of a 1x1 conv.
        scale = gamma / jnp.sqrt(var + eps)
        return conv_w * scale[None, :], beta - mean * scale

    w1_raw = 0.2 * jax.random.normal(ks[0], (c1, c_), jnp.float32)
    g1 = 0.5 + jax.random.uniform(ks[1], (c_,), jnp.float32)
    be1 = 0.1 * jax.random.normal(ks[2], (c_,), jnp.float32)
    mu1 = 0.1 * jax.random.normal(ks[3], (c_,), jnp.float32)
    v1 = 0.5 + jax.random.uniform(ks[4], (c_,), jnp.float32)
    w1, b1 = fold(w1_raw, g1, be1, mu1, v1)

    w2_raw = 0.2 * jax.random.normal(ks[5], (4 * c_, c2), jnp.float32)
    g2 = 0.5 + jax.random.uniform(ks[6], (c2,), jnp.float32)
    be2 = 0.1 * jax.random.normal(ks[7], (c2,), jnp.float32)
    mu2 = 0.1 * jax.random.normal(ks[8], (c2,), jnp.float32)
    v2 = 0.5 + jax.random.uniform(ks[9], (c2,), jnp.float32)
    w2, b2 = fold(w2_raw, g2, be2, mu2, v2)

    return w1, b1.reshape(1, c_), w2, b2.reshape(1, c2)


def spp_ref(x_nchw, w1, b1, w2, b2):
    """Mixed-precision JAX reference (NCHW in/out).

    Mirrors the kernel's numerics: bf16 matmul inputs / pooled activations,
    f32 accumulation, f32 bias + SiLU (max pooling is exact in any dtype).
    Pools use the original independent 5/9/13 reduce_windows, independently
    checking the chained-pool identity used by the kernel.
    """
    x = jnp.transpose(x_nchw, (0, 2, 3, 1)).astype(jnp.bfloat16)
    w1b = w1.astype(jnp.bfloat16)
    w2b = w2.astype(jnp.bfloat16)
    y = jax.nn.silu(
        jnp.einsum("nhwc,cd->nhwd", x, w1b,
                   preferred_element_type=jnp.float32) + b1[0])
    yb = y.astype(jnp.bfloat16)
    pools = [yb]
    for k in POOL_KS:
        p = k // 2
        pools.append(jax.lax.reduce_window(
            yb, jnp.asarray(-jnp.inf, yb.dtype), jax.lax.max,
            (1, k, k, 1), (1, 1, 1, 1),
            [(0, 0), (p, p), (p, p), (0, 0)]))
    z = jnp.concatenate(pools, axis=-1)
    o = jax.nn.silu(
        jnp.einsum("nhwc,cd->nhwd", z, w2b,
                   preferred_element_type=jnp.float32) + b2[0])
    return jnp.transpose(o, (0, 3, 1, 2)).astype(jnp.float32)


if __name__ == "__main__":
    N, C1, H, W = 2, 4, 16, 16
    C2 = 8

    key = jax.random.PRNGKey(0)
    kx, kp = jax.random.split(key)
    x = jax.random.normal(kx, (N, C1, H, W), jnp.float32)
    w1, b1, w2, b2 = make_params(kp, C1, C2)

    out = jax.block_until_ready(spp_pallas(x, w1, b1, w2, b2))
    ref = jax.block_until_ready(spp_ref(x, w1, b1, w2, b2))

    assert out.shape == (N, C2, H, W), out.shape
    # Tolerance covers occasional 1-ulp bf16 flips at the y-quantization
    # boundary interacting with the EUP approximate-reciprocal SiLU; any
    # layout/pooling/matmul bug produces O(1) errors and is still caught.
    assert jnp.allclose(out, ref, rtol=5e-2, atol=5e-2), float(
        jnp.max(jnp.abs(out - ref)))
    print("KERNEL_OK")
</pallas_src>

<mosaic_0001>
module attributes {stable_mosaic.version = 11 : i64} {
  func.func @_spp_kernel(%arg0: i32, %arg1: memref<1x16x16x4xbf16, #tpu.memory_space<vmem>>, %arg2: memref<4x2xbf16, #tpu.memory_space<vmem>>, %arg3: memref<1x2xf32, #tpu.memory_space<vmem>>, %arg4: memref<8x8xbf16, #tpu.memory_space<vmem>>, %arg5: memref<1x8xf32, #tpu.memory_space<vmem>>, %arg6: memref<1x16x16x8xf32, #tpu.memory_space<vmem>>, %arg7: memref<20x32x2xbf16, #tpu.memory_space<vmem>>) attributes {dimension_semantics = [#tpu.dimension_semantics<parallel>], iteration_bounds = array<i64: 2>, scalar_prefetch = 0 : i64, scratch_operands = 1 : i64, tpu.core_type = #tpu.core_type<tc>, window_params = [{transform_indices = @transform_0, window_bounds = array<i64: 1, 16, 16, 4>}, {pipeline_mode = #tpu.pipeline_mode<synchronous>, transform_indices = @transform_1, window_bounds = array<i64: 4, 2>}, {pipeline_mode = #tpu.pipeline_mode<synchronous>, transform_indices = @transform_2, window_bounds = array<i64: 1, 2>}, {pipeline_mode = #tpu.pipeline_mode<synchronous>, transform_indices = @transform_3, window_bounds = array<i64: 8, 8>}, {pipeline_mode = #tpu.pipeline_mode<synchronous>, transform_indices = @transform_4, window_bounds = array<i64: 1, 8>}, {transform_indices = @transform_5, window_bounds = array<i64: 1, 16, 16, 8>}]} {
    %c0 = arith.constant 0 : index
    %c0_0 = arith.constant 0 : index
    %c0_1 = arith.constant 0 : index
    %c0_2 = arith.constant 0 : index
    %0 = vector.load %arg1[%c0, %c0_0, %c0_1, %c0_2] : memref<1x16x16x4xbf16, #tpu.memory_space<vmem>>, vector<1x16x16x4xbf16>
    %1 = vector.shape_cast %0 : vector<1x16x16x4xbf16> to vector<16x16x4xbf16>
    %2 = vector.shape_cast %1 : vector<16x16x4xbf16> to vector<256x4xbf16>
    %c0_3 = arith.constant 0 : index
    %c0_4 = arith.constant 0 : index
    %3 = vector.load %arg2[%c0_3, %c0_4] : memref<4x2xbf16, #tpu.memory_space<vmem>>, vector<4x2xbf16>
    %cst = arith.constant dense<0.000000e+00> : vector<256x2xf32>
    %4 = tpu.matmul %2, %3, %cst {dimension_numbers = #tpu.dot_dimension_numbers<[1], [0], [0], [1], [0, 0, 1, 1], [], []>} : vector<256x4xbf16>, vector<4x2xbf16>, vector<256x2xf32> -> vector<256x2xf32>
    %c0_5 = arith.constant 0 : index
    %c0_6 = arith.constant 0 : index
    %5 = vector.load %arg3[%c0_5, %c0_6] : memref<1x2xf32, #tpu.memory_space<vmem>>, vector<1x2xf32>
    %6 = vector.broadcast %5 : vector<1x2xf32> to vector<256x2xf32>
    %7 = arith.addf %4, %6 : vector<256x2xf32>
    %cst_7 = arith.constant 0.000000e+00 : f32
    %8 = vector.broadcast %cst_7 : f32 to vector<256x2xf32>
    %9 = arith.subf %8, %7 : vector<256x2xf32>
    %10 = math.exp %9 : vector<256x2xf32>
    %cst_8 = arith.constant 1.000000e+00 : f32
    %11 = vector.broadcast %cst_8 : f32 to vector<256x2xf32>
    %12 = arith.addf %11, %10 : vector<256x2xf32>
    %13 = tpu.reciprocal %12 {approx = true} : vector<256x2xf32> -> vector<256x2xf32>
    %14 = arith.mulf %7, %13 : vector<256x2xf32>
    %15 = arith.truncf %14 : vector<256x2xf32> to vector<256x2xbf16>
    %16 = vector.shape_cast %15 : vector<256x2xbf16> to vector<16x16x2xbf16>
    %cst_9 = arith.constant 0xFF80 : bf16
    %17 = vector.broadcast %cst_9 : bf16 to vector<2x32x2xbf16>
    %c0_10 = arith.constant 0 : index
    %c0_11 = arith.constant 0 : index
    %c0_12 = arith.constant 0 : index
    %18 = vector.load %arg7[%c0_10, %c0_11, %c0_12] : memref<20x32x2xbf16, #tpu.memory_space<vmem>>, vector<2x32x2xbf16>
    tpu.vector_store %arg7[%c0_10, %c0_11, %c0_12], %17 {strides = array<i32>} : memref<20x32x2xbf16, #tpu.memory_space<vmem>>, vector<2x32x2xbf16>,
    %cst_13 = arith.constant 0xFF80 : bf16
    %19 = vector.broadcast %cst_13 : bf16 to vector<2x32x2xbf16>
    %c18 = arith.constant 18 : index
    %c0_14 = arith.constant 0 : index
    %c0_15 = arith.constant 0 : index
    %20 = vector.load %arg7[%c18, %c0_14, %c0_15] : memref<20x32x2xbf16, #tpu.memory_space<vmem>>, vector<2x32x2xbf16>
    tpu.vector_store %arg7[%c18, %c0_14, %c0_15], %19 {strides = array<i32>} : memref<20x32x2xbf16, #tpu.memory_space<vmem>>, vector<2x32x2xbf16>,
    %cst_16 = arith.constant 0xFF80 : bf16
    %21 = vector.broadcast %cst_16 : bf16 to vector<16x8x2xbf16>
    %c2 = arith.constant 2 : index
    %c0_17 = arith.constant 0 : index
    %c0_18 = arith.constant 0 : index
    %22 = vector.load %arg7[%c2, %c0_17, %c0_18] : memref<20x32x2xbf16, #tpu.memory_space<vmem>>, vector<16x8x2xbf16>
    tpu.vector_store %arg7[%c2, %c0_17, %c0_18], %21 {strides = array<i32>} : memref<20x32x2xbf16, #tpu.memory_space<vmem>>, vector<16x8x2xbf16>,
    %cst_19 = arith.constant 0xFF80 : bf16
    %23 = vector.broadcast %cst_19 : bf16 to vector<16x8x2xbf16>
    %c2_20 = arith.constant 2 : index
    %c24 = arith.constant 24 : index
    %c0_21 = arith.constant 0 : index
    %24 = vector.load %arg7[%c2_20, %c24, %c0_21] : memref<20x32x2xbf16, #tpu.memory_space<vmem>>, vector<16x8x2xbf16>
    tpu.vector_store %arg7[%c2_20, %c24, %c0_21], %23 {strides = array<i32>} : memref<20x32x2xbf16, #tpu.memory_space<vmem>>, vector<16x8x2xbf16>,
    %c2_22 = arith.constant 2 : index
    %c8 = arith.constant 8 : index
    %c0_23 = arith.constant 0 : index
    %25 = vector.load %arg7[%c2_22, %c8, %c0_23] : memref<20x32x2xbf16, #tpu.memory_space<vmem>>, vector<16x16x2xbf16>
    tpu.vector_store %arg7[%c2_22, %c8, %c0_23], %16 {strides = array<i32>} : memref<20x32x2xbf16, #tpu.memory_space<vmem>>, vector<16x16x2xbf16>,
    %c0_24 = arith.constant 0 : index
    %c0_25 = arith.constant 0 : index
    %c0_26 = arith.constant 0 : index
    %26 = vector.load %arg7[%c0_24, %c0_25, %c0_26] : memref<20x32x2xbf16, #tpu.memory_space<vmem>>, vector<20x32x2xbf16>
    %27 = vector.extract_strided_slice %26 {offsets = [0, 0, 0], sizes = [16, 32, 2], strides = [1, 1, 1]} : vector<20x32x2xbf16> to vector<16x32x2xbf16>
    %28 = vector.extract_strided_slice %26 {offsets = [1, 0, 0], sizes = [16, 32, 2], strides = [1, 1, 1]} : vector<20x32x2xbf16> to vector<16x32x2xbf16>
    %29 = arith.maximumf %27, %28 : vector<16x32x2xbf16>
    %30 = vector.extract_strided_slice %26 {offsets = [2, 0, 0], sizes = [16, 32, 2], strides = [1, 1, 1]} : vector<20x32x2xbf16> to vector<16x32x2xbf16>
    %31 = arith.maximumf %29, %30 : vector<16x32x2xbf16>
    %32 = vector.extract_strided_slice %26 {offsets = [3, 0, 0], sizes = [16, 32, 2], strides = [1, 1, 1]} : vector<20x32x2xbf16> to vector<16x32x2xbf16>
    %33 = arith.maximumf %31, %32 : vector<16x32x2xbf16>
    %34 = vector.extract_strided_slice %26 {offsets = [4, 0, 0], sizes = [16, 32, 2], strides = [1, 1, 1]} : vector<20x32x2xbf16> to vector<16x32x2xbf16>
    %35 = arith.maximumf %33, %34 : vector<16x32x2xbf16>
    %36 = vector.extract_strided_slice %35 {offsets = [0, 6, 0], sizes = [16, 16, 2], strides = [1, 1, 1]} : vector<16x32x2xbf16> to vector<16x16x2xbf16>
    %37 = vector.extract_strided_slice %35 {offsets = [0, 7, 0], sizes = [16, 16, 2], strides = [1, 1, 1]} : vector<16x32x2xbf16> to vector<16x16x2xbf16>
    %38 = arith.maximumf %36, %37 : vector<16x16x2xbf16>
    %39 = vector.extract_strided_slice %35 {offsets = [0, 8, 0], sizes = [16, 16, 2], strides = [1, 1, 1]} : vector<16x32x2xbf16> to vector<16x16x2xbf16>
    %40 = arith.maximumf %38, %39 : vector<16x16x2xbf16>
    %41 = vector.extract_strided_slice %35 {offsets = [0, 9, 0], sizes = [16, 16, 2], strides = [1, 1, 1]} : vector<16x32x2xbf16> to vector<16x16x2xbf16>
    %42 = arith.maximumf %40, %41 : vector<16x16x2xbf16>
    %43 = vector.extract_strided_slice %35 {offsets = [0, 10, 0], sizes = [16, 16, 2], strides = [1, 1, 1]} : vector<16x32x2xbf16> to vector<16x16x2xbf16>
    %44 = arith.maximumf %42, %43 : vector<16x16x2xbf16>
    %c2_27 = arith.constant 2 : index
    %c8_28 = arith.constant 8 : index
    %c0_29 = arith.constant 0 : index
    %45 = vector.load %arg7[%c2_27, %c8_28, %c0_29] : memref<20x32x2xbf16, #tpu.memory_space<vmem>>, vector<16x16x2xbf16>
    tpu.vector_store %arg7[%c2_27, %c8_28, %c0_29], %44 {strides = array<i32>} : memref<20x32x2xbf16, #tpu.memory_space<vmem>>, vector<16x16x2xbf16>,
    %c0_30 = arith.constant 0 : index
    %c0_31 = arith.constant 0 : index
    %c0_32 = arith.constant 0 : index
    %46 = vector.load %arg7[%c0_30, %c0_31, %c0_32] : memref<20x32x2xbf16, #tpu.memory_space<vmem>>, vector<20x32x2xbf16>
    %47 = vector.extract_strided_slice %46 {offsets = [0, 0, 0], sizes = [16, 32, 2], strides = [1, 1, 1]} : vector<20x32x2xbf16> to vector<16x32x2xbf16>
    %48 = vector.extract_strided_slice %46 {offsets = [1, 0, 0], sizes = [16, 32, 2], strides = [1, 1, 1]} : vector<20x32x2xbf16> to vector<16x32x2xbf16>
    %49 = arith.maximumf %47, %48 : vector<16x32x2xbf16>
    %50 = vector.extract_strided_slice %46 {offsets = [2, 0, 0], sizes = [16, 32, 2], strides = [1, 1, 1]} : vector<20x32x2xbf16> to vector<16x32x2xbf16>
    %51 = arith.maximumf %49, %50 : vector<16x32x2xbf16>
    %52 = vector.extract_strided_slice %46 {offsets = [3, 0, 0], sizes = [16, 32, 2], strides = [1, 1, 1]} : vector<20x32x2xbf16> to vector<16x32x2xbf16>
    %53 = arith.maximumf %51, %52 : vector<16x32x2xbf16>
    %54 = vector.extract_strided_slice %46 {offsets = [4, 0, 0], sizes = [16, 32, 2], strides = [1, 1, 1]} : vector<20x32x2xbf16> to vector<16x32x2xbf16>
    %55 = arith.maximumf %53, %54 : vector<16x32x2xbf16>
    %56 = vector.extract_strided_slice %55 {offsets = [0, 6, 0], sizes = [16, 16, 2], strides = [1, 1, 1]} : vector<16x32x2xbf16> to vector<16x16x2xbf16>
    %57 = vector.extract_strided_slice %55 {offsets = [0, 7, 0], sizes = [16, 16, 2], strides = [1, 1, 1]} : vector<16x32x2xbf16> to vector<16x16x2xbf16>
    %58 = arith.maximumf %56, %57 : vector<16x16x2xbf16>
    %59 = vector.extract_strided_slice %55 {offsets = [0, 8, 0], sizes = [16, 16, 2], strides = [1, 1, 1]} : vector<16x32x2xbf16> to vector<16x16x2xbf16>
    %60 = arith.maximumf %58, %59 : vector<16x16x2xbf16>
    %61 = vector.extract_strided_slice %55 {offsets = [0, 9, 0], sizes = [16, 16, 2], strides = [1, 1, 1]} : vector<16x32x2xbf16> to vector<16x16x2xbf16>
    %62 = arith.maximumf %60, %61 : vector<16x16x2xbf16>
    %63 = vector.extract_strided_slice %55 {offsets = [0, 10, 0], sizes = [16, 16, 2], strides = [1, 1, 1]} : vector<16x32x2xbf16> to vector<16x16x2xbf16>
    %64 = arith.maximumf %62, %63 : vector<16x16x2xbf16>
    %c2_33 = arith.constant 2 : index
    %c8_34 = arith.constant 8 : index
    %c0_35 = arith.constant 0 : index
    %65 = vector.load %arg7[%c2_33, %c8_34, %c0_35] : memref<20x32x2xbf16, #tpu.memory_space<vmem>>, vector<16x16x2xbf16>
    tpu.vector_store %arg7[%c2_33, %c8_34, %c0_35], %64 {strides = array<i32>} : memref<20x32x2xbf16, #tpu.memory_space<vmem>>, vector<16x16x2xbf16>,
    %c0_36 = arith.constant 0 : index
    %c0_37 = arith.constant 0 : index
    %c0_38 = arith.constant 0 : index
    %66 = vector.load %arg7[%c0_36, %c0_37, %c0_38] : memref<20x32x2xbf16, #tpu.memory_space<vmem>>, vector<20x32x2xbf16>
    %67 = vector.extract_strided_slice %66 {offsets = [0, 0, 0], sizes = [16, 32, 2], strides = [1, 1, 1]} : vector<20x32x2xbf16> to vector<16x32x2xbf16>
    %68 = vector.extract_strided_slice %66 {offsets = [1, 0, 0], sizes = [16, 32, 2], strides = [1, 1, 1]} : vector<20x32x2xbf16> to vector<16x32x2xbf16>
    %69 = arith.maximumf %67, %68 : vector<16x32x2xbf16>
    %70 = vector.extract_strided_slice %66 {offsets = [2, 0, 0], sizes = [16, 32, 2], strides = [1, 1, 1]} : vector<20x32x2xbf16> to vector<16x32x2xbf16>
    %71 = arith.maximumf %69, %70 : vector<16x32x2xbf16>
    %72 = vector.extract_strided_slice %66 {offsets = [3, 0, 0], sizes = [16, 32, 2], strides = [1, 1, 1]} : vector<20x32x2xbf16> to vector<16x32x2xbf16>
    %73 = arith.maximumf %71, %72 : vector<16x32x2xbf16>
    %74 = vector.extract_strided_slice %66 {offsets = [4, 0, 0], sizes = [16, 32, 2], strides = [1, 1, 1]} : vector<20x32x2xbf16> to vector<16x32x2xbf16>
    %75 = arith.maximumf %73, %74 : vector<16x32x2xbf16>
    %76 = vector.extract_strided_slice %75 {offsets = [0, 6, 0], sizes = [16, 16, 2], strides = [1, 1, 1]} : vector<16x32x2xbf16> to vector<16x16x2xbf16>
    %77 = vector.extract_strided_slice %75 {offsets = [0, 7, 0], sizes = [16, 16, 2], strides = [1, 1, 1]} : vector<16x32x2xbf16> to vector<16x16x2xbf16>
    %78 = arith.maximumf %76, %77 : vector<16x16x2xbf16>
    %79 = vector.extract_strided_slice %75 {offsets = [0, 8, 0], sizes = [16, 16, 2], strides = [1, 1, 1]} : vector<16x32x2xbf16> to vector<16x16x2xbf16>
    %80 = arith.maximumf %78, %79 : vector<16x16x2xbf16>
    %81 = vector.extract_strided_slice %75 {offsets = [0, 9, 0], sizes = [16, 16, 2], strides = [1, 1, 1]} : vector<16x32x2xbf16> to vector<16x16x2xbf16>
    %82 = arith.maximumf %80, %81 : vector<16x16x2xbf16>
    %83 = vector.extract_strided_slice %75 {offsets = [0, 10, 0], sizes = [16, 16, 2], strides = [1, 1, 1]} : vector<16x32x2xbf16> to vector<16x16x2xbf16>
    %84 = arith.maximumf %82, %83 : vector<16x16x2xbf16>
    %85 = tpu.concatenate %16, %44, %64, %84 in 2 : vector<16x16x2xbf16>, vector<16x16x2xbf16>, vector<16x16x2xbf16>, vector<16x16x2xbf16> -> vector<16x16x8xbf16>
    %86 = vector.shape_cast %85 : vector<16x16x8xbf16> to vector<256x8xbf16>
    %c0_39 = arith.constant 0 : index
    %c0_40 = arith.constant 0 : index
    %87 = vector.load %arg4[%c0_39, %c0_40] : memref<8x8xbf16, #tpu.memory_space<vmem>>, vector<8x8xbf16>
    %cst_41 = arith.constant dense<0.000000e+00> : vector<256x8xf32>
    %88 = tpu.matmul %86, %87, %cst_41 {dimension_numbers = #tpu.dot_dimension_numbers<[1], [0], [0], [1], [0, 0, 1, 1], [], []>} : vector<256x8xbf16>, vector<8x8xbf16>, vector<256x8xf32> -> vector<256x8xf32>
    %c0_42 = arith.constant 0 : index
    %c0_43 = arith.constant 0 : index
    %89 = vector.load %arg5[%c0_42, %c0_43] : memref<1x8xf32, #tpu.memory_space<vmem>>, vector<1x8xf32>
    %90 = vector.broadcast %89 : vector<1x8xf32> to vector<256x8xf32>
    %91 = arith.addf %88, %90 : vector<256x8xf32>
    %cst_44 = arith.constant 0.000000e+00 : f32
    %92 = vector.broadcast %cst_44 : f32 to vector<256x8xf32>
    %93 = arith.subf %92, %91 : vector<256x8xf32>
    %94 = math.exp %93 : vector<256x8xf32>
    %cst_45 = arith.constant 1.000000e+00 : f32
    %95 = vector.broadcast %cst_45 : f32 to vector<256x8xf32>
    %96 = arith.addf %95, %94 : vector<256x8xf32>
    %97 = tpu.reciprocal %96 {approx = true} : vector<256x8xf32> -> vector<256x8xf32>
    %98 = arith.mulf %91, %97 : vector<256x8xf32>
    %99 = vector.shape_cast %98 : vector<256x8xf32> to vector<16x16x8xf32>
    %c0_46 = arith.constant 0 : index
    %c0_47 = arith.constant 0 : index
    %c0_48 = arith.constant 0 : index
    %c0_49 = arith.constant 0 : index
    %100 = vector.load %arg6[%c0_46, %c0_47, %c0_48, %c0_49] : memref<1x16x16x8xf32, #tpu.memory_space<vmem>>, vector<1x16x16x8xf32>
    %101 = vector.shape_cast %100 : vector<1x16x16x8xf32> to vector<16x16x8xf32>
    %102 = vector.shape_cast %99 : vector<16x16x8xf32> to vector<1x16x16x8xf32>
    tpu.vector_store %arg6[%c0_46, %c0_47, %c0_48, %c0_49], %102 {strides = array<i32>} : memref<1x16x16x8xf32, #tpu.memory_space<vmem>>, vector<1x16x16x8xf32>,
    return
  }
  func.func @transform_0(%arg0: i32) -> (i32, i32, i32, i32) {
    %c0_i32 = arith.constant 0 : i32
    %c0_i32_0 = arith.constant 0 : i32
    %c0_i32_1 = arith.constant 0 : i32
    %c0_i32_2 = arith.constant 0 : i32
    return %arg0, %c0_i32, %c0_i32_0, %c0_i32_1 : i32, i32, i32, i32
  }
  func.func @transform_1(%arg0: i32) -> (i32, i32) {
    %c0_i32 = arith.constant 0 : i32
    %c0_i32_0 = arith.constant 0 : i32
    %c0_i32_1 = arith.constant 0 : i32
    return %c0_i32, %c0_i32_0 : i32, i32
  }
  func.func @transform_2(%arg0: i32) -> (i32, i32) {
    %c0_i32 = arith.constant 0 : i32
    %c0_i32_0 = arith.constant 0 : i32
    %c0_i32_1 = arith.constant 0 : i32
    return %c0_i32, %c0_i32_0 : i32, i32
  }
  func.func @transform_3(%arg0: i32) -> (i32, i32) {
    %c0_i32 = arith.constant 0 : i32
    %c0_i32_0 = arith.constant 0 : i32
    %c0_i32_1 = arith.constant 0 : i32
    return %c0_i32, %c0_i32_0 : i32, i32
  }
  func.func @transform_4(%arg0: i32) -> (i32, i32) {
    %c0_i32 = arith.constant 0 : i32
    %c0_i32_0 = arith.constant 0 : i32
    %c0_i32_1 = arith.constant 0 : i32
    return %c0_i32, %c0_i32_0 : i32, i32
  }
  func.func @transform_5(%arg0: i32) -> (i32, i32, i32, i32) {
    %c0_i32 = arith.constant 0 : i32
    %c0_i32_0 = arith.constant 0 : i32
    %c0_i32_1 = arith.constant 0 : i32
    %c0_i32_2 = arith.constant 0 : i32
    return %arg0, %c0_i32, %c0_i32_0, %c0_i32_1 : i32, i32, i32, i32
  }
}

</mosaic_0001>

<llo_original>
// kernel: tpu_custom_call.1
$region0: #{tpu_custom_call.1}
  #allocation0 [shape = 'u32[]', space=smem, size = 0x4, offset = 0x4, fixed_abs, tag = 'smem constant byte address 0x4 - core index']
  #allocation1 [shape = 'u32[144,128]{1,0:T(1,128)}', space=vmem, size = 0x12000, scoped, tag = 'internal scratch']
  #allocation2 [shape = 'bf16[20,32,2]{2,1,0:T(16,128)(2,1)}', space=vmem, size = 0x28000, scoped, tag = 'scratch operand']
  %s0 = inlined_call_operand.vmem [shape: bf16[2,16,16,4], index: 0, kind: input, shape index: {}]
  %s1 = inlined_call_operand.vmem [shape: bf16[4,2], index: 1, kind: input, shape index: {}]
  %s2 = inlined_call_operand.vmem [shape: f32[1,2], index: 2, kind: input, shape index: {}]
  %s3 = inlined_call_operand.vmem [shape: bf16[8,8], index: 3, kind: input, shape index: {}]
  %s4 = inlined_call_operand.vmem [shape: f32[1,8], index: 4, kind: input, shape index: {}]
  %s5 = inlined_call_operand.vmem [shape: f32[2,16,16,8], index: 5, kind: output, shape index: {}]
  %s6 = sld [smem:[#allocation0]]
  $region53: #{tpu_custom_call.1} parent=0
    _
  %s8 = ssub.s32 1, %s6
  %s9 = scalar_select 0, %s8, %s6
  loop: start=0, step=1, limit=4
  $region2: #{tpu_custom_call.1} parent=0 // loop_pre_header
    _
  $region3: #{tpu_custom_call.1} parent=0 // loop_header
    %s11 = sphi 0, %s15
    %p12 = scmp.ge.s32.totalorder %s11, 4
    %s21 = sphi 0, %s23
    %s24 = sphi 0, %s21
    %s25 = sphi 0, %s24
    %s41 = sphi 0, %s25
    %s45 = sphi 0, %s45
    %s47 = sphi 0, %s45
    %s48 = sphi 0, %s47
    %s62 = sphi 0, %s48
    %s66 = sphi 0, %s66
    %s68 = sphi 0, %s66
    %s69 = sphi 0, %s68
    %s83 = sphi 0, %s69
    %s87 = sphi 0, %s87
    %s89 = sphi 0, %s87
    %s90 = sphi 0, %s89
    %s104 = sphi 0, %s90
    %s108 = sphi 0, %s108
    %s110 = sphi 0, %s108
    %s111 = sphi 0, %s110
    %s125 = sphi 0, %s111
    %s131 = sphi 0, %s133
    %s134 = sphi 0, %s131
    %s135 = sphi 0, %s134
    %s151 = sphi 0, %s135
  $region4: #{tpu_custom_call.1} parent=0 // loop_header_branch
    %14 = sbr.rel (%p12) target = $region8
  $region5: #{tpu_custom_call.1} parent=0 // loop_body
    %s16 = ssub.s32 %s11, 1
    %s17 = ssub.s32 %s11, 2
    %s18 = sadd.s32 %s11, 1
    %s19 = ssub.s32 %s11, %s18
    %p20 = scmp.eq.s32.totalorder %s19, 0
    %s22 = sadd.s32 %s21, 1
    %s23 = scalar_select %p20, %s21, %s22
    %p26 = pneg %p20
    %p27 = scmp.eq.s32.totalorder %s11, 1
    %p28 = por %p26, %p27
    %p29 = scmp.ne.s32.totalorder %s21, %s24
    %p30 = scmp.eq.s32.totalorder %s11, 0
    %p31 = por %p29, %p30
    %p32 = scmp.ne.s32.totalorder %s21, %s24
    %p33 = scmp.eq.s32.totalorder %s16, 1
    %p34 = por %p32, %p33
    %p35 = scmp.ne.s32.totalorder %s24, %s25
    %p36 = scmp.eq.s32.totalorder %s16, 0
    %p37 = por %p35, %p36
    %p38 = scmp.ne.s32.totalorder %s24, %s25
    %p39 = scmp.eq.s32.totalorder %s17, 1
    %p40 = por %p38, %p39
    %p42 = scmp.ne.s32.totalorder %s25, %s41
    %p43 = scmp.eq.s32.totalorder %s17, 0
    %p44 = por %p42, %p43
    %s46 = sadd.s32 %s45, 1
    %p49 = scmp.eq.s32.totalorder %s11, 1
    %p50 = scmp.ne.s32.totalorder %s45, %s47
    %p51 = scmp.eq.s32.totalorder %s11, 0
    %p52 = por %p50, %p51
    %p53 = scmp.ne.s32.totalorder %s45, %s47
    %p54 = scmp.eq.s32.totalorder %s16, 1
    %p55 = por %p53, %p54
    %p56 = scmp.ne.s32.totalorder %s47, %s48
    %p57 = scmp.eq.s32.totalorder %s16, 0
    %p58 = por %p56, %p57
    %p59 = scmp.ne.s32.totalorder %s47, %s48
    %p60 = scmp.eq.s32.totalorder %s17, 1
    %p61 = por %p59, %p60
    %p63 = scmp.ne.s32.totalorder %s48, %s62
    %p64 = scmp.eq.s32.totalorder %s17, 0
    %p65 = por %p63, %p64
    %s67 = sadd.s32 %s66, 1
    %p70 = scmp.eq.s32.totalorder %s11, 1
    %p71 = scmp.ne.s32.totalorder %s66, %s68
    %p72 = scmp.eq.s32.totalorder %s11, 0
    %p73 = por %p71, %p72
    %p74 = scmp.ne.s32.totalorder %s66, %s68
    %p75 = scmp.eq.s32.totalorder %s16, 1
    %p76 = por %p74, %p75
    %p77 = scmp.ne.s32.totalorder %s68, %s69
    %p78 = scmp.eq.s32.totalorder %s16, 0
    %p79 = por %p77, %p78
    %p80 = scmp.ne.s32.totalorder %s68, %s69
    %p81 = scmp.eq.s32.totalorder %s17, 1
    %p82 = por %p80, %p81
    %p84 = scmp.ne.s32.totalorder %s69, %s83
    %p85 = scmp.eq.s32.totalorder %s17, 0
    %p86 = por %p84, %p85
    %s88 = sadd.s32 %s87, 1
    %p91 = scmp.eq.s32.totalorder %s11, 1
    %p92 = scmp.ne.s32.totalorder %s87, %s89
    %p93 = scmp.eq.s32.totalorder %s11, 0
    %p94 = por %p92, %p93
    %p95 = scmp.ne.s32.totalorder %s87, %s89
    %p96 = scmp.eq.s32.totalorder %s16, 1
    %p97 = por %p95, %p96
    %p98 = scmp.ne.s32.totalorder %s89, %s90
    %p99 = scmp.eq.s32.totalorder %s16, 0
    %p100 = por %p98, %p99
    %p101 = scmp.ne.s32.totalorder %s89, %s90
    %p102 = scmp.eq.s32.totalorder %s17, 1
    %p103 = por %p101, %p102
    %p105 = scmp.ne.s32.totalorder %s90, %s104
    %p106 = scmp.eq.s32.totalorder %s17, 0
    %p107 = por %p105, %p106
    %s109 = sadd.s32 %s108, 1
    %p112 = scmp.eq.s32.totalorder %s11, 1
    %p113 = scmp.ne.s32.totalorder %s108, %s110
    %p114 = scmp.eq.s32.totalorder %s11, 0
    %p115 = por %p113, %p114
    %p116 = scmp.ne.s32.totalorder %s108, %s110
    %p117 = scmp.eq.s32.totalorder %s16, 1
    %p118 = por %p116, %p117
    %p119 = scmp.ne.s32.totalorder %s110, %s111
    %p120 = scmp.eq.s32.totalorder %s16, 0
    %p121 = por %p119, %p120
    %p122 = scmp.ne.s32.totalorder %s110, %s111
    %p123 = scmp.eq.s32.totalorder %s17, 1
    %p124 = por %p122, %p123
    %p126 = scmp.ne.s32.totalorder %s111, %s125
    %p127 = scmp.eq.s32.totalorder %s17, 0
    %p128 = por %p126, %p127
    %s129 = ssub.s32 %s11, %s18
    %p130 = scmp.eq.s32.totalorder %s129, 0
    %s132 = sadd.s32 %s131, 1
    %s133 = scalar_select %p130, %s131, %s132
    %p136 = pneg %p130
    %p137 = scmp.eq.s32.totalorder %s11, 1
    %p138 = por %p136, %p137
    %p139 = scmp.ne.s32.totalorder %s131, %s134
    %p140 = scmp.eq.s32.totalorder %s11, 0
    %p141 = por %p139, %p140
    %p142 = scmp.ne.s32.totalorder %s131, %s134
    %p143 = scmp.eq.s32.totalorder %s16, 1
    %p144 = por %p142, %p143
    %p145 = scmp.ne.s32.totalorder %s134, %s135
    %p146 = scmp.eq.s32.totalorder %s16, 0
    %p147 = por %p145, %p146
    %p148 = scmp.ne.s32.totalorder %s134, %s135
    %p149 = scmp.eq.s32.totalorder %s17, 1
    %p150 = por %p148, %p149
    %p152 = scmp.ne.s32.totalorder %s135, %s151
    %p153 = scmp.eq.s32.totalorder %s17, 0
    %p154 = por %p152, %p153
    %p155 = scmp.le.s32.totalorder 1, %s11
    %p156 = scmp.lt.s32.totalorder %s11, 3
    %p157 = pnand %p155, %p156
    %p158 = pneg %p157
    // Predicated region
    $region9: #{tpu_custom_call.1} parent=5 // pred_check
      _
    $region10: #{tpu_custom_call.1} parent=5 // pred_check_branch
      %160 = sbr.rel (%p157) target = $region12
    $region11: #{tpu_custom_call.1} parent=5 // pred_region
      %s161 = ssub.s32 %s11, 1
      // Predicated region
      $region13: #{tpu_custom_call.1} parent=11 // pred_check
        %p162 = pneg %p58
      $region14: #{tpu_custom_call.1} parent=11 // pred_check_branch
        %164 = sbr.rel (%p162) target = $region16
      $region15: #{tpu_custom_call.1} parent=11 // pred_region
        _
      $region16: #{tpu_custom_call.1} parent=11 // pred_fallthru
        _
      // Predicated region
      $region17: #{tpu_custom_call.1} parent=11 // pred_check
        %p165 = pneg %p79
      $region18: #{tpu_custom_call.1} parent=11 // pred_check_branch
        %167 = sbr.rel (%p165) target = $region20
      $region19: #{tpu_custom_call.1} parent=11 // pred_region
        _
      $region20: #{tpu_custom_call.1} parent=11 // pred_fallthru
        _
      // Predicated region
      $region21: #{tpu_custom_call.1} parent=11 // pred_check
        %p168 = pneg %p100
      $region22: #{tpu_custom_call.1} parent=11 // pred_check_branch
        %170 = sbr.rel (%p168) target = $region24
      $region23: #{tpu_custom_call.1} parent=11 // pred_region
        _
      $region24: #{tpu_custom_call.1} parent=11 // pred_fallthru
        _
      // Predicated region
      $region25: #{tpu_custom_call.1} parent=11 // pred_check
        %p171 = pneg %p121
      $region26: #{tpu_custom_call.1} parent=11 // pred_check_branch
        %173 = sbr.rel (%p171) target = $region28
      $region27: #{tpu_custom_call.1} parent=11 // pred_region
        _
      $region28: #{tpu_custom_call.1} parent=11 // pred_fallthru
        _
    $region12: #{tpu_custom_call.1} parent=5 // pred_fallthru
      _
    %p174 = scmp.lt.s32.totalorder %s11, 2
    // Predicated region
    $region29: #{tpu_custom_call.1} parent=5 // pred_check
      %p175 = pneg %p174
    $region30: #{tpu_custom_call.1} parent=5 // pred_check_branch
      %177 = sbr.rel (%p175) target = $region32
    $region31: #{tpu_custom_call.1} parent=5 // pred_region
      // Predicated region
      $region33: #{tpu_custom_call.1} parent=31 // pred_check
        %p178 = pneg %p31
      $region34: #{tpu_custom_call.1} parent=31 // pred_check_branch
        %180 = sbr.rel (%p178) target = $region36
      $region35: #{tpu_custom_call.1} parent=31 // pred_region
        %p181 = scmp.lt.s32.totalorder %s11, 1
        %s182 = scalar_select %p181, %s11, 1
        %s183 = smul.addr %s182, 32
        %s184 = smul.addr %s183, 4
        %s185 = scalar_lea.vmem %s0, %s184
      $region36: #{tpu_custom_call.1} parent=31 // pred_fallthru
        _
    $region32: #{tpu_custom_call.1} parent=5 // pred_fallthru
      _
    %p186 = scmp.le.s32.totalorder 1, %s11
    %p187 = scmp.lt.s32.totalorder %s11, 3
    %p188 = pnand %p186, %p187
    %p189 = pneg %p188
    // Predicated region
    $region37: #{tpu_custom_call.1} parent=5 // pred_check
      _
    $region38: #{tpu_custom_call.1} parent=5 // pred_check_branch
      %191 = sbr.rel (%p188) target = $region40
    $region39: #{tpu_custom_call.1} parent=5 // pred_region
      %s192 = ssub.s32 %s11, 1
      %p193 = scmp.lt.s32.totalorder %s16, 1
      %s194 = scalar_select %p193, %s16, 1
      %s195 = smul.addr %s194, 32
      %s196 = smul.addr %s195, 4
      %s197 = scalar_lea.vmem %s0, %s196
      %p198 = pneg %p37
      %p199 = pneg %p34
      %p200 = pneg %p58
      %p201 = pneg %p55
      %p202 = pneg %p79
      %p203 = pneg %p76
      %p204 = pneg %p100
      %p205 = pneg %p97
      %p206 = pneg %p121
      %p207 = pneg %p118
      %p208 = pneg %p147
      %p209 = pneg %p144
      %p210 = scmp.lt.s32.totalorder %s16, 1
      %s211 = scalar_select %p210, %s16, 1
      %s212 = smul.addr %s211, 32
      %s213 = smul.addr %s212, 8
      %s214 = scalar_lea.vmem %s5, %s213
      %p215 = scmp.lt.s32.totalorder %s16, 1
      %s216 = scalar_select %p215, %s16, 1
      %s217 = smul.addr %s216, 32
      %s218 = smul.addr %s217, 4
      %s219 = scalar_lea.vmem %s0, %s218
      %p220 = scmp.lt.s32.totalorder %s16, 1
      %s221 = scalar_select %p220, %s16, 1
      %s222 = smul.addr %s221, 32
      %s223 = smul.addr %s222, 8
      %s224 = scalar_lea.vmem %s5, %s223
      %v227 = vld [vmem:[%s219] sm:$0xf]
      %v228 = vld [vmem:[%s219 + $0x4] sm:$0xf]
      %v229 = vld [vmem:[%s219 + $0x8] sm:$0xf]
      %v230 = vld [vmem:[%s219 + $0xc] sm:$0xf]
      %v231 = vld [vmem:[%s219 + $0x10] sm:$0xf]
      %v232 = vld [vmem:[%s219 + $0x14] sm:$0xf]
      %v233 = vld [vmem:[%s219 + $0x18] sm:$0xf]
      %v234 = vld [vmem:[%s219 + $0x1c] sm:$0xf]
      %v235 = vld [vmem:[%s219 + $0x20] sm:$0xf]
      %v236 = vld [vmem:[%s219 + $0x24] sm:$0xf]
      %v237 = vld [vmem:[%s219 + $0x28] sm:$0xf]
      %v238 = vld [vmem:[%s219 + $0x2c] sm:$0xf]
      %v239 = vld [vmem:[%s219 + $0x30] sm:$0xf]
      %v240 = vld [vmem:[%s219 + $0x34] sm:$0xf]
      %v241 = vld [vmem:[%s219 + $0x38] sm:$0xf]
      %v242 = vld [vmem:[%s219 + $0x3c] sm:$0xf]
      %v243 = vld [vmem:[%s219 + $0x40] sm:$0xf]
      %v244 = vld [vmem:[%s219 + $0x44] sm:$0xf]
      %v245 = vld [vmem:[%s219 + $0x48] sm:$0xf]
      %v246 = vld [vmem:[%s219 + $0x4c] sm:$0xf]
      %v247 = vld [vmem:[%s219 + $0x50] sm:$0xf]
      %v248 = vld [vmem:[%s219 + $0x54] sm:$0xf]
      %v249 = vld [vmem:[%s219 + $0x58] sm:$0xf]
      %v250 = vld [vmem:[%s219 + $0x5c] sm:$0xf]
      %v251 = vld [vmem:[%s219 + $0x60] sm:$0xf]
      %v252 = vld [vmem:[%s219 + $0x64] sm:$0xf]
      %v253 = vld [vmem:[%s219 + $0x68] sm:$0xf]
      %v254 = vld [vmem:[%s219 + $0x6c] sm:$0xf]
      %v255 = vld [vmem:[%s219 + $0x70] sm:$0xf]
      %v256 = vld [vmem:[%s219 + $0x74] sm:$0xf]
      %v257 = vld [vmem:[%s219 + $0x78] sm:$0xf]
      %v258 = vld [vmem:[%s219 + $0x7c] sm:$0xf]
      %v259 = vld [vmem:[%s1] sm:$0x3]
      %v260 = vld [vmem:[%s2] sm:$0x1]
      %v262 = vlaneseq
      %v263 = vshrl.u32 %v262, 7
      %v264 = vsub.s32 0, %v263
      %v265 = vrot.slane %v260, %v264
      %v299 = vunpack.c.l.b16 %v227
      %v300 = vunpack.c.l.b16 %v228
      %v301 = vunpack.c.l.b16 %v229
      %v302 = vunpack.c.l.b16 %v230
      %v303 = vunpack.c.l.b16 %v231
      %v304 = vunpack.c.l.b16 %v232
      %v305 = vunpack.c.l.b16 %v233
      %v306 = vunpack.c.l.b16 %v234
      %v307 = vunpack.c.l.b16 %v235
      %v308 = vunpack.c.l.b16 %v236
      %v309 = vunpack.c.l.b16 %v237
      %v310 = vunpack.c.l.b16 %v238
      %v311 = vunpack.c.l.b16 %v239
      %v312 = vunpack.c.l.b16 %v240
      %v313 = vunpack.c.l.b16 %v241
      %v314 = vunpack.c.l.b16 %v242
      %v315 = vunpack.c.l.b16 %v243
      %v316 = vunpack.c.l.b16 %v244
      %v317 = vunpack.c.l.b16 %v245
      %v318 = vunpack.c.l.b16 %v246
      %v319 = vunpack.c.l.b16 %v247
      %v320 = vunpack.c.l.b16 %v248
      %v321 = vunpack.c.l.b16 %v249
      %v322 = vunpack.c.l.b16 %v250
      %v323 = vunpack.c.l.b16 %v251
      %v324 = vunpack.c.l.b16 %v252
      %v325 = vunpack.c.l.b16 %v253
      %v326 = vunpack.c.l.b16 %v254
      %v327 = vunpack.c.l.b16 %v255
      %v328 = vunpack.c.l.b16 %v256
      %v329 = vunpack.c.l.b16 %v257
      %v330 = vunpack.c.l.b16 %v258
      %v331 = vpack.c.b16 %v300, %v299
      %v332 = vpack.c.b16 %v302, %v301
      %v333 = vpack.c.b16 %v304, %v303
      %v334 = vpack.c.b16 %v306, %v305
      %v335 = vpack.c.b16 %v308, %v307
      %v336 = vpack.c.b16 %v310, %v309
      %v337 = vpack.c.b16 %v312, %v311
      %v338 = vpack.c.b16 %v314, %v313
      %v339 = vpack.c.b16 %v316, %v315
      %v340 = vpack.c.b16 %v318, %v317
      %v341 = vpack.c.b16 %v320, %v319
      %v342 = vpack.c.b16 %v322, %v321
      %v343 = vpack.c.b16 %v324, %v323
      %v344 = vpack.c.b16 %v326, %v325
      %v345 = vpack.c.b16 %v328, %v327
      %v346 = vpack.c.b16 %v330, %v329
      %vm347 = vcmask 31744
      %v349 = vsel %vm347, %v331, 0
      %v352 = vsel %vm347, %v332, 0
      %v355 = vsel %vm347, %v333, 0
      %v358 = vsel %vm347, %v334, 0
      %v361 = vsel %vm347, %v335, 0
      %v364 = vsel %vm347, %v336, 0
      %v367 = vsel %vm347, %v337, 0
      %v370 = vsel %vm347, %v338, 0
      %v373 = vsel %vm347, %v339, 0
      %v376 = vsel %vm347, %v340, 0
      %v379 = vsel %vm347, %v341, 0
      %v382 = vsel %vm347, %v342, 0
      %v385 = vsel %vm347, %v343, 0
      %v388 = vsel %vm347, %v344, 0
      %v391 = vsel %vm347, %v345, 0
      %v394 = vsel %vm347, %v346, 0
      %vm396 = vcmask 1041408
      %v398 = vsel %vm396, %v259, 0
      %400 = vmatprep.subr.bf16.mxu0 0
      %401 = vmatpush1.bf16.msra.mxu0 %v398
      %402 = vmatprep.subr.bf16.mxu0 0
      %403 = vmatpush1.bf16.msra.mxu0 0
      %404 = vmatprep.subr.bf16.mxu0 0
      %405 = vmatpush1.bf16.msra.mxu0 0
      %406 = vmatprep.subr.bf16.mxu0 0
      %407 = vmatpush1.bf16.msra.mxu0 0
      %408 = vmatprep.subr.bf16.mxu0 0
      %409 = vmatpush1.bf16.msra.mxu0 0
      %410 = vmatprep.subr.bf16.mxu0 0
      %411 = vmatpush1.bf16.msra.mxu0 0
      %412 = vmatprep.subr.bf16.mxu0 0
      %413 = vmatpush1.bf16.msra.mxu0 0
      %414 = vmatprep.subr.bf16.mxu0 0
      %415 = vmatpush1.bf16.msra.mxu0 0
      %416 = vmatprep.subr.bf16.mxu0 0
      %417 = vmatpush1.bf16.msra.mxu0 0
      %418 = vmatprep.subr.bf16.mxu0 0
      %419 = vmatpush1.bf16.msra.mxu0 0
      %420 = vmatprep.subr.bf16.mxu0 0
      %421 = vmatpush1.bf16.msra.mxu0 0
      %422 = vmatprep.subr.bf16.mxu0 0
      %423 = vmatpush1.bf16.msra.mxu0 0
      %424 = vmatprep.subr.bf16.mxu0 0
      %425 = vmatpush1.bf16.msra.mxu0 0
      %426 = vmatprep.subr.bf16.mxu0 0
      %427 = vmatpush1.bf16.msra.mxu0 0
      %428 = vmatprep.subr.bf16.mxu0 0
      %429 = vmatpush1.bf16.msra.mxu0 0
      %430 = vmatprep.subr.bf16.mxu0 0
      %431 = vmatpush1.bf16.msra.mxu0 0
      %432 = vmatprep.mubr.bf16.mxu0 0
      %433 = vmatmul.mubr.bf16.gmra.mrb[0].mxu0 %v349
      %v434 = vpop.f32.mrb[0].mxu0
      %v435 = vadd.f32 %v265, %v434
      %v436 = vpop.f32.mrb[0].mxu0
      %v437 = vpop.f32.mrb[0].mxu0
      %v438 = vadd.f32 %v265, %v437
      %v439 = vpop.f32.mrb[0].mxu0
      %440 = vmatprep.mubr.bf16.mxu0 0
      %441 = vmatmul.mubr.bf16.gmra.mrb[0].mxu0 %v352
      %v442 = vpop.f32.mrb[0].mxu0
      %v443 = vadd.f32 %v265, %v442
      %v444 = vpop.f32.mrb[0].mxu0
      %v445 = vpop.f32.mrb[0].mxu0
      %v446 = vadd.f32 %v265, %v445
      %v447 = vpop.f32.mrb[0].mxu0
      %448 = vmatprep.mubr.bf16.mxu0 0
      %449 = vmatmul.mubr.bf16.gmra.mrb[0].mxu0 %v355
      %v450 = vpop.f32.mrb[0].mxu0
      %v451 = vadd.f32 %v265, %v450
      %v452 = vpop.f32.mrb[0].mxu0
      %v453 = vpop.f32.mrb[0].mxu0
      %v454 = vadd.f32 %v265, %v453
      %v455 = vpop.f32.mrb[0].mxu0
      %456 = vmatprep.mubr.bf16.mxu0 0
      %457 = vmatmul.mubr.bf16.gmra.mrb[0].mxu0 %v358
      %v458 = vpop.f32.mrb[0].mxu0
      %v459 = vadd.f32 %v265, %v458
      %v460 = vpop.f32.mrb[0].mxu0
      %v461 = vpop.f32.mrb[0].mxu0
      %v462 = vadd.f32 %v265, %v461
      %v463 = vpop.f32.mrb[0].mxu0
      %464 = vmatprep.mubr.bf16.mxu0 0
      %465 = vmatmul.mubr.bf16.gmra.mrb[0].mxu0 %v361
      %v466 = vpop.f32.mrb[0].mxu0
      %v467 = vadd.f32 %v265, %v466
      %v468 = vpop.f32.mrb[0].mxu0
      %v469 = vpop.f32.mrb[0].mxu0
      %v470 = vadd.f32 %v265, %v469
      %v471 = vpop.f32.mrb[0].mxu0
      %472 = vmatprep.mubr.bf16.mxu0 0
      %473 = vmatmul.mubr.bf16.gmra.mrb[0].mxu0 %v364
      %v474 = vpop.f32.mrb[0].mxu0
      %v475 = vadd.f32 %v265, %v474
      %v476 = vpop.f32.mrb[0].mxu0
      %v477 = vpop.f32.mrb[0].mxu0
      %v478 = vadd.f32 %v265, %v477
      %v479 = vpop.f32.mrb[0].mxu0
      %480 = vmatprep.mubr.bf16.mxu0 0
      %481 = vmatmul.mubr.bf16.gmra.mrb[0].mxu0 %v367
      %v482 = vpop.f32.mrb[0].mxu0
      %v483 = vadd.f32 %v265, %v482
      %v484 = vpop.f32.mrb[0].mxu0
      %v485 = vpop.f32.mrb[0].mxu0
      %v486 = vadd.f32 %v265, %v485
      %v487 = vpop.f32.mrb[0].mxu0
      %488 = vmatprep.mubr.bf16.mxu0 0
      %489 = vmatmul.mubr.bf16.gmra.mrb[0].mxu0 %v370
      %v490 = vpop.f32.mrb[0].mxu0
      %v491 = vadd.f32 %v265, %v490
      %v492 = vpop.f32.mrb[0].mxu0
      %v493 = vpop.f32.mrb[0].mxu0
      %v494 = vadd.f32 %v265, %v493
      %v495 = vpop.f32.mrb[0].mxu0
      %496 = vmatprep.mubr.bf16.mxu0 0
      %497 = vmatmul.mubr.bf16.gmra.mrb[0].mxu0 %v373
      %v498 = vpop.f32.mrb[0].mxu0
      %v499 = vadd.f32 %v265, %v498
      %v500 = vpop.f32.mrb[0].mxu0
      %v501 = vpop.f32.mrb[0].mxu0
      %v502 = vadd.f32 %v265, %v501
      %v503 = vpop.f32.mrb[0].mxu0
      %504 = vmatprep.mubr.bf16.mxu0 0
      %505 = vmatmul.mubr.bf16.gmra.mrb[0].mxu0 %v376
      %v506 = vpop.f32.mrb[0].mxu0
      %v507 = vadd.f32 %v265, %v506
      %v508 = vpop.f32.mrb[0].mxu0
      %v509 = vpop.f32.mrb[0].mxu0
      %v510 = vadd.f32 %v265, %v509
      %v511 = vpop.f32.mrb[0].mxu0
      %512 = vmatprep.mubr.bf16.mxu0 0
      %513 = vmatmul.mubr.bf16.gmra.mrb[0].mxu0 %v379
      %v514 = vpop.f32.mrb[0].mxu0
      %v515 = vadd.f32 %v265, %v514
      %v516 = vpop.f32.mrb[0].mxu0
      %v517 = vpop.f32.mrb[0].mxu0
      %v518 = vadd.f32 %v265, %v517
      %v519 = vpop.f32.mrb[0].mxu0
      %520 = vmatprep.mubr.bf16.mxu0 0
      %521 = vmatmul.mubr.bf16.gmra.mrb[0].mxu0 %v382
      %v522 = vpop.f32.mrb[0].mxu0
      %v523 = vadd.f32 %v265, %v522
      %v524 = vpop.f32.mrb[0].mxu0
      %v525 = vpop.f32.mrb[0].mxu0
      %v526 = vadd.f32 %v265, %v525
      %v527 = vpop.f32.mrb[0].mxu0
      %528 = vmatprep.mubr.bf16.mxu0 0
      %529 = vmatmul.mubr.bf16.gmra.mrb[0].mxu0 %v385
      %v530 = vpop.f32.mrb[0].mxu0
      %v531 = vadd.f32 %v265, %v530
      %v532 = vpop.f32.mrb[0].mxu0
      %v533 = vpop.f32.mrb[0].mxu0
      %v534 = vadd.f32 %v265, %v533
      %v535 = vpop.f32.mrb[0].mxu0
      %536 = vmatprep.mubr.bf16.mxu0 0
      %537 = vmatmul.mubr.bf16.gmra.mrb[0].mxu0 %v388
      %v538 = vpop.f32.mrb[0].mxu0
      %v539 = vadd.f32 %v265, %v538
      %v540 = vpop.f32.mrb[0].mxu0
      %v541 = vpop.f32.mrb[0].mxu0
      %v542 = vadd.f32 %v265, %v541
      %v543 = vpop.f32.mrb[0].mxu0
      %544 = vmatprep.mubr.bf16.mxu0 0
      %545 = vmatmul.mubr.bf16.gmra.mrb[0].mxu0 %v391
      %v546 = vpop.f32.mrb[0].mxu0
      %v547 = vadd.f32 %v265, %v546
      %v548 = vpop.f32.mrb[0].mxu0
      %v549 = vpop.f32.mrb[0].mxu0
      %v550 = vadd.f32 %v265, %v549
      %v551 = vpop.f32.mrb[0].mxu0
      %552 = vmatprep.mubr.bf16.mxu0 0
      %553 = vmatmul.mubr.bf16.gmra.mrb[0].mxu0 %v394
      %v554 = vpop.f32.mrb[0].mxu0
      %v555 = vadd.f32 %v265, %v554
      %v556 = vpop.f32.mrb[0].mxu0
      %v557 = vpop.f32.mrb[0].mxu0
      %v558 = vadd.f32 %v265, %v557
      %v559 = vpop.f32.mrb[0].mxu0
      %560 = vdwg.mxu0
      %v561 = vsub.f32 0.0, %v435
      %v562 = vsub.f32 0.0, %v438
      %v563 = vsub.f32 0.0, %v443
      %v564 = vsub.f32 0.0, %v446
      %v565 = vsub.f32 0.0, %v451
      %v566 = vsub.f32 0.0, %v454
      %v567 = vsub.f32 0.0, %v459
      %v568 = vsub.f32 0.0, %v462
      %v569 = vsub.f32 0.0, %v467
      %v570 = vsub.f32 0.0, %v470
      %v571 = vsub.f32 0.0, %v475
      %v572 = vsub.f32 0.0, %v478
      %v573 = vsub.f32 0.0, %v483
      %v574 = vsub.f32 0.0, %v486
      %v575 = vsub.f32 0.0, %v491
      %v576 = vsub.f32 0.0, %v494
      %v577 = vsub.f32 0.0, %v499
      %v578 = vsub.f32 0.0, %v502
      %v579 = vsub.f32 0.0, %v507
      %v580 = vsub.f32 0.0, %v510
      %v581 = vsub.f32 0.0, %v515
      %v582 = vsub.f32 0.0, %v518
      %v583 = vsub.f32 0.0, %v523
      %v584 = vsub.f32 0.0, %v526
      %v585 = vsub.f32 0.0, %v531
      %v586 = vsub.f32 0.0, %v534
      %v587 = vsub.f32 0.0, %v539
      %v588 = vsub.f32 0.0, %v542
      %v589 = vsub.f32 0.0, %v547
      %v590 = vsub.f32 0.0, %v550
      %v591 = vsub.f32 0.0, %v555
      %v592 = vsub.f32 0.0, %v558
      %v593 = vmul.f32 %v561, 1.442695
      %v594 = vpow.pop %v593
      %v595 = vmul.f32 %v562, 1.442695
      %v596 = vpow.pop %v595
      %v597 = vmul.f32 %v563, 1.442695
      %v598 = vpow.pop %v597
      %v599 = vmul.f32 %v564, 1.442695
      %v600 = vpow.pop %v599
      %v601 = vmul.f32 %v565, 1.442695
      %v602 = vpow.pop %v601
      %v603 = vmul.f32 %v566, 1.442695
      %v604 = vpow.pop %v603
      %v605 = vmul.f32 %v567, 1.442695
      %v606 = vpow.pop %v605
      %v607 = vmul.f32 %v568, 1.442695
      %v608 = vpow.pop %v607
      %v609 = vmul.f32 %v569, 1.442695
      %v610 = vpow.pop %v609
      %v611 = vmul.f32 %v570, 1.442695
      %v612 = vpow.pop %v611
      %v613 = vmul.f32 %v571, 1.442695
      %v614 = vpow.pop %v613
      %v615 = vmul.f32 %v572, 1.442695
      %v616 = vpow.pop %v615
      %v617 = vmul.f32 %v573, 1.442695
      %v618 = vpow.pop %v617
      %v619 = vmul.f32 %v574, 1.442695
      %v620 = vpow.pop %v619
      %v621 = vmul.f32 %v575, 1.442695
      %v622 = vpow.pop %v621
      %v623 = vmul.f32 %v576, 1.442695
      %v624 = vpow.pop %v623
      %v625 = vmul.f32 %v577, 1.442695
      %v626 = vpow.pop %v625
      %v627 = vmul.f32 %v578, 1.442695
      %v628 = vpow.pop %v627
      %v629 = vmul.f32 %v579, 1.442695
      %v630 = vpow.pop %v629
      %v631 = vmul.f32 %v580, 1.442695
      %v632 = vpow.pop %v631
      %v633 = vmul.f32 %v581, 1.442695
      %v634 = vpow.pop %v633
      %v635 = vmul.f32 %v582, 1.442695
      %v636 = vpow.pop %v635
      %v637 = vmul.f32 %v583, 1.442695
      %v638 = vpow.pop %v637
      %v639 = vmul.f32 %v584, 1.442695
      %v640 = vpow.pop %v639
      %v641 = vmul.f32 %v585, 1.442695
      %v642 = vpow.pop %v641
      %v643 = vmul.f32 %v586, 1.442695
      %v644 = vpow.pop %v643
      %v645 = vmul.f32 %v587, 1.442695
      %v646 = vpow.pop %v645
      %v647 = vmul.f32 %v588, 1.442695
      %v648 = vpow.pop %v647
      %v649 = vmul.f32 %v589, 1.442695
      %v650 = vpow.pop %v649
      %v651 = vmul.f32 %v590, 1.442695
      %v652 = vpow.pop %v651
      %v653 = vmul.f32 %v591, 1.442695
      %v654 = vpow.pop %v653
      %v655 = vmul.f32 %v592, 1.442695
      %v656 = vpow.pop %v655
      %v657 = vadd.f32 %v594, 1.0
      %v658 = vadd.f32 %v596, 1.0
      %v659 = vadd.f32 %v598, 1.0
      %v660 = vadd.f32 %v600, 1.0
      %v661 = vadd.f32 %v602, 1.0
      %v662 = vadd.f32 %v604, 1.0
      %v663 = vadd.f32 %v606, 1.0
      %v664 = vadd.f32 %v608, 1.0
      %v665 = vadd.f32 %v610, 1.0
      %v666 = vadd.f32 %v612, 1.0
      %v667 = vadd.f32 %v614, 1.0
      %v668 = vadd.f32 %v616, 1.0
      %v669 = vadd.f32 %v618, 1.0
      %v670 = vadd.f32 %v620, 1.0
      %v671 = vadd.f32 %v622, 1.0
      %v672 = vadd.f32 %v624, 1.0
      %v673 = vadd.f32 %v626, 1.0
      %v674 = vadd.f32 %v628, 1.0
      %v675 = vadd.f32 %v630, 1.0
      %v676 = vadd.f32 %v632, 1.0
      %v677 = vadd.f32 %v634, 1.0
      %v678 = vadd.f32 %v636, 1.0
      %v679 = vadd.f32 %v638, 1.0
      %v680 = vadd.f32 %v640, 1.0
      %v681 = vadd.f32 %v642, 1.0
      %v682 = vadd.f32 %v644, 1.0
      %v683 = vadd.f32 %v646, 1.0
      %v684 = vadd.f32 %v648, 1.0
      %v685 = vadd.f32 %v650, 1.0
      %v686 = vadd.f32 %v652, 1.0
      %v687 = vadd.f32 %v654, 1.0
      %v688 = vadd.f32 %v656, 1.0
      %v689 = vrcp.pop %v657
      %v690 = vrcp.pop %v658
      %v691 = vrcp.pop %v659
      %v692 = vrcp.pop %v660
      %v693 = vrcp.pop %v661
      %v694 = vrcp.pop %v662
      %v695 = vrcp.pop %v663
      %v696 = vrcp.pop %v664
      %v697 = vrcp.pop %v665
      %v698 = vrcp.pop %v666
      %v699 = vrcp.pop %v667
      %v700 = vrcp.pop %v668
      %v701 = vrcp.pop %v669
      %v702 = vrcp.pop %v670
      %v703 = vrcp.pop %v671
      %v704 = vrcp.pop %v672
      %v705 = vrcp.pop %v673
      %v706 = vrcp.pop %v674
      %v707 = vrcp.pop %v675
      %v708 = vrcp.pop %v676
      %v709 = vrcp.pop %v677
      %v710 = vrcp.pop %v678
      %v711 = vrcp.pop %v679
      %v712 = vrcp.pop %v680
      %v713 = vrcp.pop %v681
      %v714 = vrcp.pop %v682
      %v715 = vrcp.pop %v683
      %v716 = vrcp.pop %v684
      %v717 = vrcp.pop %v685
      %v718 = vrcp.pop %v686
      %v719 = vrcp.pop %v687
      %v720 = vrcp.pop %v688
      %v721 = vmul.f32 %v435, %v689
      %v722 = vmul.f32 %v438, %v690
      %v723 = vmul.f32 %v443, %v691
      %v724 = vmul.f32 %v446, %v692
      %v725 = vmul.f32 %v451, %v693
      %v726 = vmul.f32 %v454, %v694
      %v727 = vmul.f32 %v459, %v695
      %v728 = vmul.f32 %v462, %v696
      %v729 = vmul.f32 %v467, %v697
      %v730 = vmul.f32 %v470, %v698
      %v731 = vmul.f32 %v475, %v699
      %v732 = vmul.f32 %v478, %v700
      %v733 = vmul.f32 %v483, %v701
      %v734 = vmul.f32 %v486, %v702
      %v735 = vmul.f32 %v491, %v703
      %v736 = vmul.f32 %v494, %v704
      %v737 = vmul.f32 %v499, %v705
      %v738 = vmul.f32 %v502, %v706
      %v739 = vmul.f32 %v507, %v707
      %v740 = vmul.f32 %v510, %v708
      %v741 = vmul.f32 %v515, %v709
      %v742 = vmul.f32 %v518, %v710
      %v743 = vmul.f32 %v523, %v711
      %v744 = vmul.f32 %v526, %v712
      %v745 = vmul.f32 %v531, %v713
      %v746 = vmul.f32 %v534, %v714
      %v747 = vmul.f32 %v539, %v715
      %v748 = vmul.f32 %v542, %v716
      %v749 = vmul.f32 %v547, %v717
      %v750 = vmul.f32 %v550, %v718
      %v751 = vmul.f32 %v555, %v719
      %v752 = vmul.f32 %v558, %v720
      %v753 = vpack.c.bf16 %v722, %v721
      %v754 = vpack.c.bf16 %v724, %v723
      %v755 = vpack.c.bf16 %v726, %v725
      %v756 = vpack.c.bf16 %v728, %v727
      %v757 = vpack.c.bf16 %v730, %v729
      %v758 = vpack.c.bf16 %v732, %v731
      %v759 = vpack.c.bf16 %v734, %v733
      %v760 = vpack.c.bf16 %v736, %v735
      %v761 = vpack.c.bf16 %v738, %v737
      %v762 = vpack.c.bf16 %v740, %v739
      %v763 = vpack.c.bf16 %v742, %v741
      %v764 = vpack.c.bf16 %v744, %v743
      %v765 = vpack.c.bf16 %v746, %v745
      %v766 = vpack.c.bf16 %v748, %v747
      %v767 = vpack.c.bf16 %v750, %v749
      %v768 = vpack.c.bf16 %v752, %v751
      %vm769 = vcmask 15360
      %770 = vst.msk [vmem:[#allocation2] sm:$0xff] %vm769, 4286644096
      %771 = vst.msk [vmem:[#allocation2 + $0x8] sm:$0xff] %vm769, 4286644096
      %772 = vst.msk [vmem:[#allocation2 + $0x10] sm:$0xff] %vm769, 4286644096
      %773 = vst.msk [vmem:[#allocation2 + $0x18] sm:$0xff] %vm769, 4286644096
      %s774 = scalar_lea.vmem [#allocation2], 288
      %775 = vst.msk [vmem:[%s774] sm:$0xff] %vm769, 4286644096
      %776 = vst.msk [vmem:[%s774 + $0x8] sm:$0xff] %vm769, 4286644096
      %777 = vst.msk [vmem:[%s774 + $0x10] sm:$0xff] %vm769, 4286644096
      %778 = vst.msk [vmem:[%s774 + $0x18] sm:$0xff] %vm769, 4286644096
      %s779 = scalar_lea.vmem [#allocation2], 32
      %vm780 = vcmask 11264
      %781 = vst.msk [vmem:[%s779] sm:$0xf] %vm780, 4286644096
      %782 = vst.msk [vmem:[%s779 + $0x10] sm:$0xf] %vm780, 4286644096
      %783 = vst.msk [vmem:[%s779 + $0x20] sm:$0xf] %vm780, 4286644096
      %784 = vst.msk [vmem:[%s779 + $0x30] sm:$0xf] %vm780, 4286644096
      %785 = vst.msk [vmem:[%s779 + $0x40] sm:$0xf] %vm780, 4286644096
      %786 = vst.msk [vmem:[%s779 + $0x50] sm:$0xf] %vm780, 4286644096
      %787 = vst.msk [vmem:[%s779 + $0x60] sm:$0xf] %vm780, 4286644096
      %788 = vst.msk [vmem:[%s779 + $0x70] sm:$0xf] %vm780, 4286644096
      %789 = vst.msk [vmem:[%s779 + $0x80] sm:$0xf] %vm780, 4286644096
      %790 = vst.msk [vmem:[%s779 + $0x90] sm:$0xf] %vm780, 4286644096
      %791 = vst.msk [vmem:[%s779 + $0xa0] sm:$0xf] %vm780, 4286644096
      %792 = vst.msk [vmem:[%s779 + $0xb0] sm:$0xf] %vm780, 4286644096
      %793 = vst.msk [vmem:[%s779 + $0xc0] sm:$0xf] %vm780, 4286644096
      %794 = vst.msk [vmem:[%s779 + $0xd0] sm:$0xf] %vm780, 4286644096
      %795 = vst.msk [vmem:[%s779 + $0xe0] sm:$0xf] %vm780, 4286644096
      %796 = vst.msk [vmem:[%s779 + $0xf0] sm:$0xf] %vm780, 4286644096
      %vm797 = vcmask 15364
      %798 = vst.msk [vmem:[%s779 + $0x8] sm:$0xf0] %vm797, 4286644096
      %799 = vst.msk [vmem:[%s779 + $0x18] sm:$0xf0] %vm797, 4286644096
      %800 = vst.msk [vmem:[%s779 + $0x28] sm:$0xf0] %vm797, 4286644096
      %801 = vst.msk [vmem:[%s779 + $0x38] sm:$0xf0] %vm797, 4286644096
      %802 = vst.msk [vmem:[%s779 + $0x48] sm:$0xf0] %vm797, 4286644096
      %803 = vst.msk [vmem:[%s779 + $0x58] sm:$0xf0] %vm797, 4286644096
      %804 = vst.msk [vmem:[%s779 + $0x68] sm:$0xf0] %vm797, 4286644096
      %805 = vst.msk [vmem:[%s779 + $0x78] sm:$0xf0] %vm797, 4286644096
      %806 = vst.msk [vmem:[%s779 + $0x88] sm:$0xf0] %vm797, 4286644096
      %807 = vst.msk [vmem:[%s779 + $0x98] sm:$0xf0] %vm797, 4286644096
      %808 = vst.msk [vmem:[%s779 + $0xa8] sm:$0xf0] %vm797, 4286644096
      %809 = vst.msk [vmem:[%s779 + $0xb8] sm:$0xf0] %vm797, 4286644096
      %810 = vst.msk [vmem:[%s779 + $0xc8] sm:$0xf0] %vm797, 4286644096
      %811 = vst.msk [vmem:[%s779 + $0xd8] sm:$0xf0] %vm797, 4286644096
      %812 = vst.msk [vmem:[%s779 + $0xe8] sm:$0xf0] %vm797, 4286644096
      %813 = vst.msk [vmem:[%s779 + $0xf8] sm:$0xf0] %vm797, 4286644096
      %v830 = vrot.slane %v753, 4
      %v831 = vrot.slane %v754, 4
      %v832 = vrot.slane %v755, 4
      %v833 = vrot.slane %v756, 4
      %v834 = vrot.slane %v757, 4
      %v835 = vrot.slane %v758, 4
      %v836 = vrot.slane %v759, 4
      %v837 = vrot.slane %v760, 4
      %v838 = vrot.slane %v761, 4
      %v839 = vrot.slane %v762, 4
      %v840 = vrot.slane %v763, 4
      %v841 = vrot.slane %v764, 4
      %v842 = vrot.slane %v765, 4
      %v843 = vrot.slane %v766, 4
      %v844 = vrot.slane %v767, 4
      %v845 = vrot.slane %v768, 4
      %862 = vst.msk [vmem:[%s779] sm:$0xf0] %vm797, %v830
      %863 = vst.msk [vmem:[%s779 + $0x8] sm:$0xf] %vm780, %v830
      %864 = vst.msk [vmem:[%s779 + $0x10] sm:$0xf0] %vm797, %v831
      %865 = vst.msk [vmem:[%s779 + $0x18] sm:$0xf] %vm780, %v831
      %866 = vst.msk [vmem:[%s779 + $0x20] sm:$0xf0] %vm797, %v832
      %867 = vst.msk [vmem:[%s779 + $0x28] sm:$0xf] %vm780, %v832
      %868 = vst.msk [vmem:[%s779 + $0x30] sm:$0xf0] %vm797, %v833
      %869 = vst.msk [vmem:[%s779 + $0x38] sm:$0xf] %vm780, %v833
      %870 = vst.msk [vmem:[%s779 + $0x40] sm:$0xf0] %vm797, %v834
      %871 = vst.msk [vmem:[%s779 + $0x48] sm:$0xf] %vm780, %v834
      %872 = vst.msk [vmem:[%s779 + $0x50] sm:$0xf0] %vm797, %v835
      %873 = vst.msk [vmem:[%s779 + $0x58] sm:$0xf] %vm780, %v835
      %874 = vst.msk [vmem:[%s779 + $0x60] sm:$0xf0] %vm797, %v836
      %875 = vst.msk [vmem:[%s779 + $0x68] sm:$0xf] %vm780, %v836
      %876 = vst.msk [vmem:[%s779 + $0x70] sm:$0xf0] %vm797, %v837
      %877 = vst.msk [vmem:[%s779 + $0x78] sm:$0xf] %vm780, %v837
      %878 = vst.msk [vmem:[%s779 + $0x80] sm:$0xf0] %vm797, %v838
      %879 = vst.msk [vmem:[%s779 + $0x88] sm:$0xf] %vm780, %v838
      %880 = vst.msk [vmem:[%s779 + $0x90] sm:$0xf0] %vm797, %v839
      %881 = vst.msk [vmem:[%s779 + $0x98] sm:$0xf] %vm780, %v839
      %882 = vst.msk [vmem:[%s779 + $0xa0] sm:$0xf0] %vm797, %v840
      %883 = vst.msk [vmem:[%s779 + $0xa8] sm:$0xf] %vm780, %v840
      %884 = vst.msk [vmem:[%s779 + $0xb0] sm:$0xf0] %vm797, %v841
      %885 = vst.msk [vmem:[%s779 + $0xb8] sm:$0xf] %vm780, %v841
      %886 = vst.msk [vmem:[%s779 + $0xc0] sm:$0xf0] %vm797, %v842
      %887 = vst.msk [vmem:[%s779 + $0xc8] sm:$0xf] %vm780, %v842
      %888 = vst.msk [vmem:[%s779 + $0xd0] sm:$0xf0] %vm797, %v843
      %889 = vst.msk [vmem:[%s779 + $0xd8] sm:$0xf] %vm780, %v843
      %890 = vst.msk [vmem:[%s779 + $0xe0] sm:$0xf0] %vm797, %v844
      %891 = vst.msk [vmem:[%s779 + $0xe8] sm:$0xf] %vm780, %v844
      %892 = vst.msk [vmem:[%s779 + $0xf0] sm:$0xf0] %vm797, %v845
      %893 = vst.msk [vmem:[%s779 + $0xf8] sm:$0xf] %vm780, %v845
      %v894 = vld [vmem:[#allocation2] sm:$0xff]
      %v895 = vld [vmem:[#allocation2 + $0x8] sm:$0xff]
      %v896 = vld [vmem:[#allocation2 + $0x10] sm:$0xff]
      %v897 = vld [vmem:[#allocation2 + $0x18] sm:$0xff]
      %v898 = vld [vmem:[#allocation2 + $0x20] sm:$0xff]
      %v899 = vld [vmem:[#allocation2 + $0x28] sm:$0xff]
      %v900 = vld [vmem:[#allocation2 + $0x30] sm:$0xff]
      %v901 = vld [vmem:[#allocation2 + $0x38] sm:$0xff]
      %v902 = vld [vmem:[#allocation2 + $0x40] sm:$0xff]
      %v903 = vld [vmem:[#allocation2 + $0x48] sm:$0xff]
      %v904 = vld [vmem:[#allocation2 + $0x50] sm:$0xff]
      %v905 = vld [vmem:[#allocation2 + $0x58] sm:$0xff]
      %v906 = vld [vmem:[#allocation2 + $0x60] sm:$0xff]
      %v907 = vld [vmem:[#allocation2 + $0x68] sm:$0xff]
      %v908 = vld [vmem:[#allocation2 + $0x70] sm:$0xff]
      %v909 = vld [vmem:[#allocation2 + $0x78] sm:$0xff]
      %v910 = vld [vmem:[#allocation2 + $0x80] sm:$0xff]
      %v911 = vld [vmem:[#allocation2 + $0x88] sm:$0xff]
      %v912 = vld [vmem:[#allocation2 + $0x90] sm:$0xff]
      %v913 = vld [vmem:[#allocation2 + $0x98] sm:$0xff]
      %v914 = vld [vmem:[#allocation2 + $0xa0] sm:$0xff]
      %v915 = vld [vmem:[#allocation2 + $0xa8] sm:$0xff]
      %v916 = vld [vmem:[#allocation2 + $0xb0] sm:$0xff]
      %v917 = vld [vmem:[#allocation2 + $0xb8] sm:$0xff]
      %v918 = vld [vmem:[#allocation2 + $0xc0] sm:$0xff]
      %v919 = vld [vmem:[#allocation2 + $0xc8] sm:$0xff]
      %v920 = vld [vmem:[#allocation2 + $0xd0] sm:$0xff]
      %v921 = vld [vmem:[#allocation2 + $0xd8] sm:$0xff]
      %v922 = vld [vmem:[#allocation2 + $0xe0] sm:$0xff]
      %v923 = vld [vmem:[#allocation2 + $0xe8] sm:$0xff]
      %v924 = vld [vmem:[#allocation2 + $0xf0] sm:$0xff]
      %v925 = vld [vmem:[#allocation2 + $0xf8] sm:$0xff]
      %v926 = vld [vmem:[#allocation2 + $0x100] sm:$0xff]
      %v927 = vld [vmem:[#allocation2 + $0x108] sm:$0xff]
      %v928 = vld [vmem:[#allocation2 + $0x110] sm:$0xff]
      %v929 = vld [vmem:[#allocation2 + $0x118] sm:$0xff]
      %v930 = vld [vmem:[#allocation2 + $0x120] sm:$0xff]
      %v931 = vld [vmem:[#allocation2 + $0x128] sm:$0xff]
      %v932 = vld [vmem:[#allocation2 + $0x130] sm:$0xff]
      %v933 = vld [vmem:[#allocation2 + $0x138] sm:$0xff]
      %v934 = vmax.bf16 %v894, %v896
      %v935 = vmax.bf16 %v895, %v897
      %v936 = vmax.bf16 %v896, %v898
      %v937 = vmax.bf16 %v897, %v899
      %v938 = vmax.bf16 %v898, %v900
      %v939 = vmax.bf16 %v899, %v901
      %v940 = vmax.bf16 %v900, %v902
      %v941 = vmax.bf16 %v901, %v903
      %v942 = vmax.bf16 %v902, %v904
      %v943 = vmax.bf16 %v903, %v905
      %v944 = vmax.bf16 %v904, %v906
      %v945 = vmax.bf16 %v905, %v907
      %v946 = vmax.bf16 %v906, %v908
      %v947 = vmax.bf16 %v907, %v909
      %v948 = vmax.bf16 %v908, %v910
      %v949 = vmax.bf16 %v909, %v911
      %v950 = vmax.bf16 %v910, %v912
      %v951 = vmax.bf16 %v911, %v913
      %v952 = vmax.bf16 %v912, %v914
      %v953 = vmax.bf16 %v913, %v915
      %v954 = vmax.bf16 %v914, %v916
      %v955 = vmax.bf16 %v915, %v917
      %v956 = vmax.bf16 %v916, %v918
      %v957 = vmax.bf16 %v917, %v919
      %v958 = vmax.bf16 %v918, %v920
      %v959 = vmax.bf16 %v919, %v921
      %v960 = vmax.bf16 %v920, %v922
      %v961 = vmax.bf16 %v921, %v923
      %v962 = vmax.bf16 %v922, %v924
      %v963 = vmax.bf16 %v923, %v925
      %v964 = vmax.bf16 %v924, %v926
      %v965 = vmax.bf16 %v925, %v927
      %v966 = vmax.bf16 %v934, %v898
      %v967 = vmax.bf16 %v935, %v899
      %v968 = vmax.bf16 %v936, %v900
      %v969 = vmax.bf16 %v937, %v901
      %v970 = vmax.bf16 %v938, %v902
      %v971 = vmax.bf16 %v939, %v903
      %v972 = vmax.bf16 %v940, %v904
      %v973 = vmax.bf16 %v941, %v905
      %v974 = vmax.bf16 %v942, %v906
      %v975 = vmax.bf16 %v943, %v907
      %v976 = vmax.bf16 %v944, %v908
      %v977 = vmax.bf16 %v945, %v909
      %v978 = vmax.bf16 %v946, %v910
      %v979 = vmax.bf16 %v947, %v911
      %v980 = vmax.bf16 %v948, %v912
      %v981 = vmax.bf16 %v949, %v913
      %v982 = vmax.bf16 %v950, %v914
      %v983 = vmax.bf16 %v951, %v915
      %v984 = vmax.bf16 %v952, %v916
      %v985 = vmax.bf16 %v953, %v917
      %v986 = vmax.bf16 %v954, %v918
      %v987 = vmax.bf16 %v955, %v919
      %v988 = vmax.bf16 %v956, %v920
      %v989 = vmax.bf16 %v957, %v921
      %v990 = vmax.bf16 %v958, %v922
      %v991 = vmax.bf16 %v959, %v923
      %v992 = vmax.bf16 %v960, %v924
      %v993 = vmax.bf16 %v961, %v925
      %v994 = vmax.bf16 %v962, %v926
      %v995 = vmax.bf16 %v963, %v927
      %v996 = vmax.bf16 %v964, %v928
      %v997 = vmax.bf16 %v965, %v929
      %v998 = vmax.bf16 %v966, %v900
      %v999 = vmax.bf16 %v967, %v901
      %v1000 = vmax.bf16 %v968, %v902
      %v1001 = vmax.bf16 %v969, %v903
      %v1002 = vmax.bf16 %v970, %v904
      %v1003 = vmax.bf16 %v971, %v905
      %v1004 = vmax.bf16 %v972, %v906
      %v1005 = vmax.bf16 %v973, %v907
      %v1006 = vmax.bf16 %v974, %v908
      %v1007 = vmax.bf16 %v975, %v909
      %v1008 = vmax.bf16 %v976, %v910
      %v1009 = vmax.bf16 %v977, %v911
      %v1010 = vmax.bf16 %v978, %v912
      %v1011 = vmax.bf16 %v979, %v913
      %v1012 = vmax.bf16 %v980, %v914
      %v1013 = vmax.bf16 %v981, %v915
      %v1014 = vmax.bf16 %v982, %v916
      %v1015 = vmax.bf16 %v983, %v917
      %v1016 = vmax.bf16 %v984, %v918
      %v1017 = vmax.bf16 %v985, %v919
      %v1018 = vmax.bf16 %v986, %v920
      %v1019 = vmax.bf16 %v987, %v921
      %v1020 = vmax.bf16 %v988, %v922
      %v1021 = vmax.bf16 %v989, %v923
      %v1022 = vmax.bf16 %v990, %v924
      %v1023 = vmax.bf16 %v991, %v925
      %v1024 = vmax.bf16 %v992, %v926
      %v1025 = vmax.bf16 %v993, %v927
      %v1026 = vmax.bf16 %v994, %v928
      %v1027 = vmax.bf16 %v995, %v929
      %v1028 = vmax.bf16 %v996, %v930
      %v1029 = vmax.bf16 %v997, %v931
      %v1030 = vmax.bf16 %v998, %v902
      %v1031 = vmax.bf16 %v999, %v903
      %v1032 = vmax.bf16 %v1000, %v904
      %v1033 = vmax.bf16 %v1001, %v905
      %v1034 = vmax.bf16 %v1002, %v906
      %v1035 = vmax.bf16 %v1003, %v907
      %v1036 = vmax.bf16 %v1004, %v908
      %v1037 = vmax.bf16 %v1005, %v909
      %v1038 = vmax.bf16 %v1006, %v910
      %v1039 = vmax.bf16 %v1007, %v911
      %v1040 = vmax.bf16 %v1008, %v912
      %v1041 = vmax.bf16 %v1009, %v913
      %v1042 = vmax.bf16 %v1010, %v914
      %v1043 = vmax.bf16 %v1011, %v915
      %v1044 = vmax.bf16 %v1012, %v916
      %v1045 = vmax.bf16 %v1013, %v917
      %v1046 = vmax.bf16 %v1014, %v918
      %v1047 = vmax.bf16 %v1015, %v919
      %v1048 = vmax.bf16 %v1016, %v920
      %v1049 = vmax.bf16 %v1017, %v921
      %v1050 = vmax.bf16 %v1018, %v922
      %v1051 = vmax.bf16 %v1019, %v923
      %v1052 = vmax.bf16 %v1020, %v924
      %v1053 = vmax.bf16 %v1021, %v925
      %v1054 = vmax.bf16 %v1022, %v926
      %v1055 = vmax.bf16 %v1023, %v927
      %v1056 = vmax.bf16 %v1024, %v928
      %v1057 = vmax.bf16 %v1025, %v929
      %v1058 = vmax.bf16 %v1026, %v930
      %v1059 = vmax.bf16 %v1027, %v931
      %v1060 = vmax.bf16 %v1028, %v932
      %v1061 = vmax.bf16 %v1029, %v933
      %vm1062 = vsmask.f32 7424
      %v1064 = vshrl.u32 %v1030, 16
      %v1066 = vshll.u32 %v1030, 16
      %v1068 = vrot.slane %v1066, 1
      %v1069 = vor.u32 %v1064, %v1068
      %v1071 = vshll.u32 %v1031, 16
      %v1073 = vrot.slane %v1071, 1
      %v1074 = vsel %vm1062, %v1069, %v1073
      %v1075 = vshrl.u32 %v1031, 16
      %v1077 = vor.u32 %v1075, %v1073
      %v1079 = vshrl.u32 %v1032, 16
      %v1081 = vshll.u32 %v1032, 16
      %v1083 = vrot.slane %v1081, 1
      %v1084 = vor.u32 %v1079, %v1083
      %v1086 = vshll.u32 %v1033, 16
      %v1088 = vrot.slane %v1086, 1
      %v1089 = vsel %vm1062, %v1084, %v1088
      %v1090 = vshrl.u32 %v1033, 16
      %v1092 = vor.u32 %v1090, %v1088
      %v1094 = vshrl.u32 %v1034, 16
      %v1096 = vshll.u32 %v1034, 16
      %v1098 = vrot.slane %v1096, 1
      %v1099 = vor.u32 %v1094, %v1098
      %v1101 = vshll.u32 %v1035, 16
      %v1103 = vrot.slane %v1101, 1
      %v1104 = vsel %vm1062, %v1099, %v1103
      %v1105 = vshrl.u32 %v1035, 16
      %v1107 = vor.u32 %v1105, %v1103
      %v1109 = vshrl.u32 %v1036, 16
      %v1111 = vshll.u32 %v1036, 16
      %v1113 = vrot.slane %v1111, 1
      %v1114 = vor.u32 %v1109, %v1113
      %v1116 = vshll.u32 %v1037, 16
      %v1118 = vrot.slane %v1116, 1
      %v1119 = vsel %vm1062, %v1114, %v1118
      %v1120 = vshrl.u32 %v1037, 16
      %v1122 = vor.u32 %v1120, %v1118
      %v1124 = vshrl.u32 %v1038, 16
      %v1126 = vshll.u32 %v1038, 16
      %v1128 = vrot.slane %v1126, 1
      %v1129 = vor.u32 %v1124, %v1128
      %v1131 = vshll.u32 %v1039, 16
      %v1133 = vrot.slane %v1131, 1
      %v1134 = vsel %vm1062, %v1129, %v1133
      %v1135 = vshrl.u32 %v1039, 16
      %v1137 = vor.u32 %v1135, %v1133
      %v1139 = vshrl.u32 %v1040, 16
      %v1141 = vshll.u32 %v1040, 16
      %v1143 = vrot.slane %v1141, 1
      %v1144 = vor.u32 %v1139, %v1143
      %v1146 = vshll.u32 %v1041, 16
      %v1148 = vrot.slane %v1146, 1
      %v1149 = vsel %vm1062, %v1144, %v1148
      %v1150 = vshrl.u32 %v1041, 16
      %v1152 = vor.u32 %v1150, %v1148
      %v1154 = vshrl.u32 %v1042, 16
      %v1156 = vshll.u32 %v1042, 16
      %v1158 = vrot.slane %v1156, 1
      %v1159 = vor.u32 %v1154, %v1158
      %v1161 = vshll.u32 %v1043, 16
      %v1163 = vrot.slane %v1161, 1
      %v1164 = vsel %vm1062, %v1159, %v1163
      %v1165 = vshrl.u32 %v1043, 16
      %v1167 = vor.u32 %v1165, %v1163
      %v1169 = vshrl.u32 %v1044, 16
      %v1171 = vshll.u32 %v1044, 16
      %v1173 = vrot.slane %v1171, 1
      %v1174 = vor.u32 %v1169, %v1173
      %v1176 = vshll.u32 %v1045, 16
      %v1178 = vrot.slane %v1176, 1
      %v1179 = vsel %vm1062, %v1174, %v1178
      %v1180 = vshrl.u32 %v1045, 16
      %v1182 = vor.u32 %v1180, %v1178
      %v1184 = vshrl.u32 %v1046, 16
      %v1186 = vshll.u32 %v1046, 16
      %v1188 = vrot.slane %v1186, 1
      %v1189 = vor.u32 %v1184, %v1188
      %v1191 = vshll.u32 %v1047, 16
      %v1193 = vrot.slane %v1191, 1
      %v1194 = vsel %vm1062, %v1189, %v1193
      %v1195 = vshrl.u32 %v1047, 16
      %v1197 = vor.u32 %v1195, %v1193
      %v1199 = vshrl.u32 %v1048, 16
      %v1201 = vshll.u32 %v1048, 16
      %v1203 = vrot.slane %v1201, 1
      %v1204 = vor.u32 %v1199, %v1203
      %v1206 = vshll.u32 %v1049, 16
      %v1208 = vrot.slane %v1206, 1
      %v1209 = vsel %vm1062, %v1204, %v1208
      %v1210 = vshrl.u32 %v1049, 16
      %v1212 = vor.u32 %v1210, %v1208
      %v1214 = vshrl.u32 %v1050, 16
      %v1216 = vshll.u32 %v1050, 16
      %v1218 = vrot.slane %v1216, 1
      %v1219 = vor.u32 %v1214, %v1218
      %v1221 = vshll.u32 %v1051, 16
      %v1223 = vrot.slane %v1221, 1
      %v1224 = vsel %vm1062, %v1219, %v1223
      %v1225 = vshrl.u32 %v1051, 16
      %v1227 = vor.u32 %v1225, %v1223
      %v1229 = vshrl.u32 %v1052, 16
      %v1231 = vshll.u32 %v1052, 16
      %v1233 = vrot.slane %v1231, 1
      %v1234 = vor.u32 %v1229, %v1233
      %v1236 = vshll.u32 %v1053, 16
      %v1238 = vrot.slane %v1236, 1
      %v1239 = vsel %vm1062, %v1234, %v1238
      %v1240 = vshrl.u32 %v1053, 16
      %v1242 = vor.u32 %v1240, %v1238
      %v1244 = vshrl.u32 %v1054, 16
      %v1246 = vshll.u32 %v1054, 16
      %v1248 = vrot.slane %v1246, 1
      %v1249 = vor.u32 %v1244, %v1248
      %v1251 = vshll.u32 %v1055, 16
      %v1253 = vrot.slane %v1251, 1
      %v1254 = vsel %vm1062, %v1249, %v1253
      %v1255 = vshrl.u32 %v1055, 16
      %v1257 = vor.u32 %v1255, %v1253
      %v1259 = vshrl.u32 %v1056, 16
      %v1261 = vshll.u32 %v1056, 16
      %v1263 = vrot.slane %v1261, 1
      %v1264 = vor.u32 %v1259, %v1263
      %v1266 = vshll.u32 %v1057, 16
      %v1268 = vrot.slane %v1266, 1
      %v1269 = vsel %vm1062, %v1264, %v1268
      %v1270 = vshrl.u32 %v1057, 16
      %v1272 = vor.u32 %v1270, %v1268
      %v1274 = vshrl.u32 %v1058, 16
      %v1276 = vshll.u32 %v1058, 16
      %v1278 = vrot.slane %v1276, 1
      %v1279 = vor.u32 %v1274, %v1278
      %v1281 = vshll.u32 %v1059, 16
      %v1283 = vrot.slane %v1281, 1
      %v1284 = vsel %vm1062, %v1279, %v1283
      %v1285 = vshrl.u32 %v1059, 16
      %v1287 = vor.u32 %v1285, %v1283
      %v1289 = vshrl.u32 %v1060, 16
      %v1291 = vshll.u32 %v1060, 16
      %v1293 = vrot.slane %v1291, 1
      %v1294 = vor.u32 %v1289, %v1293
      %v1296 = vshll.u32 %v1061, 16
      %v1298 = vrot.slane %v1296, 1
      %v1299 = vsel %vm1062, %v1294, %v1298
      %v1300 = vshrl.u32 %v1061, 16
      %v1302 = vor.u32 %v1300, %v1298
      %v1335 = vmax.bf16 %v1030, %v1074
      %v1336 = vmax.bf16 %v1031, %v1077
      %v1337 = vmax.bf16 %v1032, %v1089
      %v1338 = vmax.bf16 %v1033, %v1092
      %v1339 = vmax.bf16 %v1034, %v1104
      %v1340 = vmax.bf16 %v1035, %v1107
      %v1341 = vmax.bf16 %v1036, %v1119
      %v1342 = vmax.bf16 %v1037, %v1122
      %v1343 = vmax.bf16 %v1038, %v1134
      %v1344 = vmax.bf16 %v1039, %v1137
      %v1345 = vmax.bf16 %v1040, %v1149
      %v1346 = vmax.bf16 %v1041, %v1152
      %v1347 = vmax.bf16 %v1042, %v1164
      %v1348 = vmax.bf16 %v1043, %v1167
      %v1349 = vmax.bf16 %v1044, %v1179
      %v1350 = vmax.bf16 %v1045, %v1182
      %v1351 = vmax.bf16 %v1046, %v1194
      %v1352 = vmax.bf16 %v1047, %v1197
      %v1353 = vmax.bf16 %v1048, %v1209
      %v1354 = vmax.bf16 %v1049, %v1212
      %v1355 = vmax.bf16 %v1050, %v1224
      %v1356 = vmax.bf16 %v1051, %v1227
      %v1357 = vmax.bf16 %v1052, %v1239
      %v1358 = vmax.bf16 %v1053, %v1242
      %v1359 = vmax.bf16 %v1054, %v1254
      %v1360 = vmax.bf16 %v1055, %v1257
      %v1361 = vmax.bf16 %v1056, %v1269
      %v1362 = vmax.bf16 %v1057, %v1272
      %v1363 = vmax.bf16 %v1058, %v1284
      %v1364 = vmax.bf16 %v1059, %v1287
      %v1365 = vmax.bf16 %v1060, %v1299
      %v1366 = vmax.bf16 %v1061, %v1302
      %vm1399 = vcmask 1046528
      %v1400 = vrot.slane %v1030, 1
      %v1401 = vrot.slane %v1031, 1
      %v1402 = vsel %vm1399, %v1400, %v1401
      %v1403 = vrot.slane %v1032, 1
      %v1404 = vrot.slane %v1033, 1
      %v1405 = vsel %vm1399, %v1403, %v1404
      %v1406 = vrot.slane %v1034, 1
      %v1407 = vrot.slane %v1035, 1
      %v1408 = vsel %vm1399, %v1406, %v1407
      %v1409 = vrot.slane %v1036, 1
      %v1410 = vrot.slane %v1037, 1
      %v1411 = vsel %vm1399, %v1409, %v1410
      %v1412 = vrot.slane %v1038, 1
      %v1413 = vrot.slane %v1039, 1
      %v1414 = vsel %vm1399, %v1412, %v1413
      %v1415 = vrot.slane %v1040, 1
      %v1416 = vrot.slane %v1041, 1
      %v1417 = vsel %vm1399, %v1415, %v1416
      %v1418 = vrot.slane %v1042, 1
      %v1419 = vrot.slane %v1043, 1
      %v1420 = vsel %vm1399, %v1418, %v1419
      %v1421 = vrot.slane %v1044, 1
      %v1422 = vrot.slane %v1045, 1
      %v1423 = vsel %vm1399, %v1421, %v1422
      %v1424 = vrot.slane %v1046, 1
      %v1425 = vrot.slane %v1047, 1
      %v1426 = vsel %vm1399, %v1424, %v1425
      %v1427 = vrot.slane %v1048, 1
      %v1428 = vrot.slane %v1049, 1
      %v1429 = vsel %vm1399, %v1427, %v1428
      %v1430 = vrot.slane %v1050, 1
      %v1431 = vrot.slane %v1051, 1
      %v1432 = vsel %vm1399, %v1430, %v1431
      %v1433 = vrot.slane %v1052, 1
      %v1434 = vrot.slane %v1053, 1
      %v1435 = vsel %vm1399, %v1433, %v1434
      %v1436 = vrot.slane %v1054, 1
      %v1437 = vrot.slane %v1055, 1
      %v1438 = vsel %vm1399, %v1436, %v1437
      %v1439 = vrot.slane %v1056, 1
      %v1440 = vrot.slane %v1057, 1
      %v1441 = vsel %vm1399, %v1439, %v1440
      %v1442 = vrot.slane %v1058, 1
      %v1443 = vrot.slane %v1059, 1
      %v1444 = vsel %vm1399, %v1442, %v1443
      %v1445 = vrot.slane %v1060, 1
      %v1446 = vrot.slane %v1061, 1
      %v1447 = vsel %vm1399, %v1445, %v1446
      %v1480 = vmax.bf16 %v1335, %v1402
      %v1481 = vmax.bf16 %v1336, %v1401
      %v1482 = vmax.bf16 %v1337, %v1405
      %v1483 = vmax.bf16 %v1338, %v1404
      %v1484 = vmax.bf16 %v1339, %v1408
      %v1485 = vmax.bf16 %v1340, %v1407
      %v1486 = vmax.bf16 %v1341, %v1411
      %v1487 = vmax.bf16 %v1342, %v1410
      %v1488 = vmax.bf16 %v1343, %v1414
      %v1489 = vmax.bf16 %v1344, %v1413
      %v1490 = vmax.bf16 %v1345, %v1417
      %v1491 = vmax.bf16 %v1346, %v1416
      %v1492 = vmax.bf16 %v1347, %v1420
      %v1493 = vmax.bf16 %v1348, %v1419
      %v1494 = vmax.bf16 %v1349, %v1423
      %v1495 = vmax.bf16 %v1350, %v1422
      %v1496 = vmax.bf16 %v1351, %v1426
      %v1497 = vmax.bf16 %v1352, %v1425
      %v1498 = vmax.bf16 %v1353, %v1429
      %v1499 = vmax.bf16 %v1354, %v1428
      %v1500 = vmax.bf16 %v1355, %v1432
      %v1501 = vmax.bf16 %v1356, %v1431
      %v1502 = vmax.bf16 %v1357, %v1435
      %v1503 = vmax.bf16 %v1358, %v1434
      %v1504 = vmax.bf16 %v1359, %v1438
      %v1505 = vmax.bf16 %v1360, %v1437
      %v1506 = vmax.bf16 %v1361, %v1441
      %v1507 = vmax.bf16 %v1362, %v1440
      %v1508 = vmax.bf16 %v1363, %v1444
      %v1509 = vmax.bf16 %v1364, %v1443
      %v1510 = vmax.bf16 %v1365, %v1447
      %v1511 = vmax.bf16 %v1366, %v1446
      %vm1512 = vsmask.f32 6400
      %v1513 = vrot.slane %v1064, 1
      %v1514 = vrot.slane %v1066, 2
      %v1515 = vor.u32 %v1513, %v1514
      %v1516 = vrot.slane %v1075, 1
      %v1517 = vrot.slane %v1071, 2
      %v1518 = vor.u32 %v1516, %v1517
      %v1519 = vsel %vm1512, %v1515, %v1518
      %v1520 = vrot.slane %v1079, 1
      %v1521 = vrot.slane %v1081, 2
      %v1522 = vor.u32 %v1520, %v1521
      %v1523 = vrot.slane %v1090, 1
      %v1524 = vrot.slane %v1086, 2
      %v1525 = vor.u32 %v1523, %v1524
      %v1526 = vsel %vm1512, %v1522, %v1525
      %v1527 = vrot.slane %v1094, 1
      %v1528 = vrot.slane %v1096, 2
      %v1529 = vor.u32 %v1527, %v1528
      %v1530 = vrot.slane %v1105, 1
      %v1531 = vrot.slane %v1101, 2
      %v1532 = vor.u32 %v1530, %v1531
      %v1533 = vsel %vm1512, %v1529, %v1532
      %v1534 = vrot.slane %v1109, 1
      %v1535 = vrot.slane %v1111, 2
      %v1536 = vor.u32 %v1534, %v1535
      %v1537 = vrot.slane %v1120, 1
      %v1538 = vrot.slane %v1116, 2
      %v1539 = vor.u32 %v1537, %v1538
      %v1540 = vsel %vm1512, %v1536, %v1539
      %v1541 = vrot.slane %v1124, 1
      %v1542 = vrot.slane %v1126, 2
      %v1543 = vor.u32 %v1541, %v1542
      %v1544 = vrot.slane %v1135, 1
      %v1545 = vrot.slane %v1131, 2
      %v1546 = vor.u32 %v1544, %v1545
      %v1547 = vsel %vm1512, %v1543, %v1546
      %v1548 = vrot.slane %v1139, 1
      %v1549 = vrot.slane %v1141, 2
      %v1550 = vor.u32 %v1548, %v1549
      %v1551 = vrot.slane %v1150, 1
      %v1552 = vrot.slane %v1146, 2
      %v1553 = vor.u32 %v1551, %v1552
      %v1554 = vsel %vm1512, %v1550, %v1553
      %v1555 = vrot.slane %v1154, 1
      %v1556 = vrot.slane %v1156, 2
      %v1557 = vor.u32 %v1555, %v1556
      %v1558 = vrot.slane %v1165, 1
      %v1559 = vrot.slane %v1161, 2
      %v1560 = vor.u32 %v1558, %v1559
      %v1561 = vsel %vm1512, %v1557, %v1560
      %v1562 = vrot.slane %v1169, 1
      %v1563 = vrot.slane %v1171, 2
      %v1564 = vor.u32 %v1562, %v1563
      %v1565 = vrot.slane %v1180, 1
      %v1566 = vrot.slane %v1176, 2
      %v1567 = vor.u32 %v1565, %v1566
      %v1568 = vsel %vm1512, %v1564, %v1567
      %v1569 = vrot.slane %v1184, 1
      %v1570 = vrot.slane %v1186, 2
      %v1571 = vor.u32 %v1569, %v1570
      %v1572 = vrot.slane %v1195, 1
      %v1573 = vrot.slane %v1191, 2
      %v1574 = vor.u32 %v1572, %v1573
      %v1575 = vsel %vm1512, %v1571, %v1574
      %v1576 = vrot.slane %v1199, 1
      %v1577 = vrot.slane %v1201, 2
      %v1578 = vor.u32 %v1576, %v1577
      %v1579 = vrot.slane %v1210, 1
      %v1580 = vrot.slane %v1206, 2
      %v1581 = vor.u32 %v1579, %v1580
      %v1582 = vsel %vm1512, %v1578, %v1581
      %v1583 = vrot.slane %v1214, 1
      %v1584 = vrot.slane %v1216, 2
      %v1585 = vor.u32 %v1583, %v1584
      %v1586 = vrot.slane %v1225, 1
      %v1587 = vrot.slane %v1221, 2
      %v1588 = vor.u32 %v1586, %v1587
      %v1589 = vsel %vm1512, %v1585, %v1588
      %v1590 = vrot.slane %v1229, 1
      %v1591 = vrot.slane %v1231, 2
      %v1592 = vor.u32 %v1590, %v1591
      %v1593 = vrot.slane %v1240, 1
      %v1594 = vrot.slane %v1236, 2
      %v1595 = vor.u32 %v1593, %v1594
      %v1596 = vsel %vm1512, %v1592, %v1595
      %v1597 = vrot.slane %v1244, 1
      %v1598 = vrot.slane %v1246, 2
      %v1599 = vor.u32 %v1597, %v1598
      %v1600 = vrot.slane %v1255, 1
      %v1601 = vrot.slane %v1251, 2
      %v1602 = vor.u32 %v1600, %v1601
      %v1603 = vsel %vm1512, %v1599, %v1602
      %v1604 = vrot.slane %v1259, 1
      %v1605 = vrot.slane %v1261, 2
      %v1606 = vor.u32 %v1604, %v1605
      %v1607 = vrot.slane %v1270, 1
      %v1608 = vrot.slane %v1266, 2
      %v1609 = vor.u32 %v1607, %v1608
      %v1610 = vsel %vm1512, %v1606, %v1609
      %v1611 = vrot.slane %v1274, 1
      %v1612 = vrot.slane %v1276, 2
      %v1613 = vor.u32 %v1611, %v1612
      %v1614 = vrot.slane %v1285, 1
      %v1615 = vrot.slane %v1281, 2
      %v1616 = vor.u32 %v1614, %v1615
      %v1617 = vsel %vm1512, %v1613, %v1616
      %v1618 = vrot.slane %v1289, 1
      %v1619 = vrot.slane %v1291, 2
      %v1620 = vor.u32 %v1618, %v1619
      %v1621 = vrot.slane %v1300, 1
      %v1622 = vrot.slane %v1296, 2
      %v1623 = vor.u32 %v1621, %v1622
      %v1624 = vsel %vm1512, %v1620, %v1623
      %v1657 = vmax.bf16 %v1480, %v1519
      %v1658 = vmax.bf16 %v1481, %v1518
      %v1659 = vmax.bf16 %v1482, %v1526
      %v1660 = vmax.bf16 %v1483, %v1525
      %v1661 = vmax.bf16 %v1484, %v1533
      %v1662 = vmax.bf16 %v1485, %v1532
      %v1663 = vmax.bf16 %v1486, %v1540
      %v1664 = vmax.bf16 %v1487, %v1539
      %v1665 = vmax.bf16 %v1488, %v1547
      %v1666 = vmax.bf16 %v1489, %v1546
      %v1667 = vmax.bf16 %v1490, %v1554
      %v1668 = vmax.bf16 %v1491, %v1553
      %v1669 = vmax.bf16 %v1492, %v1561
      %v1670 = vmax.bf16 %v1493, %v1560
      %v1671 = vmax.bf16 %v1494, %v1568
      %v1672 = vmax.bf16 %v1495, %v1567
      %v1673 = vmax.bf16 %v1496, %v1575
      %v1674 = vmax.bf16 %v1497, %v1574
      %v1675 = vmax.bf16 %v1498, %v1582
      %v1676 = vmax.bf16 %v1499, %v1581
      %v1677 = vmax.bf16 %v1500, %v1589
      %v1678 = vmax.bf16 %v1501, %v1588
      %v1679 = vmax.bf16 %v1502, %v1596
      %v1680 = vmax.bf16 %v1503, %v1595
      %v1681 = vmax.bf16 %v1504, %v1603
      %v1682 = vmax.bf16 %v1505, %v1602
      %v1683 = vmax.bf16 %v1506, %v1610
      %v1684 = vmax.bf16 %v1507, %v1609
      %v1685 = vmax.bf16 %v1508, %v1617
      %v1686 = vmax.bf16 %v1509, %v1616
      %v1687 = vmax.bf16 %v1510, %v1624
      %v1688 = vmax.bf16 %v1511, %v1623
      %vm1689 = vcmask 1045504
      %v1690 = vrot.slane %v1030, 2
      %v1691 = vrot.slane %v1031, 2
      %v1692 = vsel %vm1689, %v1690, %v1691
      %v1693 = vrot.slane %v1032, 2
      %v1694 = vrot.slane %v1033, 2
      %v1695 = vsel %vm1689, %v1693, %v1694
      %v1696 = vrot.slane %v1034, 2
      %v1697 = vrot.slane %v1035, 2
      %v1698 = vsel %vm1689, %v1696, %v1697
      %v1699 = vrot.slane %v1036, 2
      %v1700 = vrot.slane %v1037, 2
      %v1701 = vsel %vm1689, %v1699, %v1700
      %v1702 = vrot.slane %v1038, 2
      %v1703 = vrot.slane %v1039, 2
      %v1704 = vsel %vm1689, %v1702, %v1703
      %v1705 = vrot.slane %v1040, 2
      %v1706 = vrot.slane %v1041, 2
      %v1707 = vsel %vm1689, %v1705, %v1706
      %v1708 = vrot.slane %v1042, 2
      %v1709 = vrot.slane %v1043, 2
      %v1710 = vsel %vm1689, %v1708, %v1709
      %v1711 = vrot.slane %v1044, 2
      %v1712 = vrot.slane %v1045, 2
      %v1713 = vsel %vm1689, %v1711, %v1712
      %v1714 = vrot.slane %v1046, 2
      %v1715 = vrot.slane %v1047, 2
      %v1716 = vsel %vm1689, %v1714, %v1715
      %v1717 = vrot.slane %v1048, 2
      %v1718 = vrot.slane %v1049, 2
      %v1719 = vsel %vm1689, %v1717, %v1718
      %v1720 = vrot.slane %v1050, 2
      %v1721 = vrot.slane %v1051, 2
      %v1722 = vsel %vm1689, %v1720, %v1721
      %v1723 = vrot.slane %v1052, 2
      %v1724 = vrot.slane %v1053, 2
      %v1725 = vsel %vm1689, %v1723, %v1724
      %v1726 = vrot.slane %v1054, 2
      %v1727 = vrot.slane %v1055, 2
      %v1728 = vsel %vm1689, %v1726, %v1727
      %v1729 = vrot.slane %v1056, 2
      %v1730 = vrot.slane %v1057, 2
      %v1731 = vsel %vm1689, %v1729, %v1730
      %v1732 = vrot.slane %v1058, 2
      %v1733 = vrot.slane %v1059, 2
      %v1734 = vsel %vm1689, %v1732, %v1733
      %v1735 = vrot.slane %v1060, 2
      %v1736 = vrot.slane %v1061, 2
      %v1737 = vsel %vm1689, %v1735, %v1736
      %v1770 = vmax.bf16 %v1657, %v1692
      %v1771 = vmax.bf16 %v1658, %v1691
      %v1772 = vmax.bf16 %v1659, %v1695
      %v1773 = vmax.bf16 %v1660, %v1694
      %v1774 = vmax.bf16 %v1661, %v1698
      %v1775 = vmax.bf16 %v1662, %v1697
      %v1776 = vmax.bf16 %v1663, %v1701
      %v1777 = vmax.bf16 %v1664, %v1700
      %v1778 = vmax.bf16 %v1665, %v1704
      %v1779 = vmax.bf16 %v1666, %v1703
      %v1780 = vmax.bf16 %v1667, %v1707
      %v1781 = vmax.bf16 %v1668, %v1706
      %v1782 = vmax.bf16 %v1669, %v1710
      %v1783 = vmax.bf16 %v1670, %v1709
      %v1784 = vmax.bf16 %v1671, %v1713
      %v1785 = vmax.bf16 %v1672, %v1712
      %v1786 = vmax.bf16 %v1673, %v1716
      %v1787 = vmax.bf16 %v1674, %v1715
      %v1788 = vmax.bf16 %v1675, %v1719
      %v1789 = vmax.bf16 %v1676, %v1718
      %v1790 = vmax.bf16 %v1677, %v1722
      %v1791 = vmax.bf16 %v1678, %v1721
      %v1792 = vmax.bf16 %v1679, %v1725
      %v1793 = vmax.bf16 %v1680, %v1724
      %v1794 = vmax.bf16 %v1681, %v1728
      %v1795 = vmax.bf16 %v1682, %v1727
      %v1796 = vmax.bf16 %v1683, %v1731
      %v1797 = vmax.bf16 %v1684, %v1730
      %v1798 = vmax.bf16 %v1685, %v1734
      %v1799 = vmax.bf16 %v1686, %v1733
      %v1800 = vmax.bf16 %v1687, %v1737
      %v1801 = vmax.bf16 %v1688, %v1736
      %vm1834 = vcmask 1040384
      %v1835 = vrot.slane %v1770, 7
      %v1836 = vrot.slane %v1771, 7
      %v1837 = vsel %vm1834, %v1835, %v1836
      %v1838 = vrot.slane %v1772, 7
      %v1839 = vrot.slane %v1773, 7
      %v1840 = vsel %vm1834, %v1838, %v1839
      %v1841 = vrot.slane %v1774, 7
      %v1842 = vrot.slane %v1775, 7
      %v1843 = vsel %vm1834, %v1841, %v1842
      %v1844 = vrot.slane %v1776, 7
      %v1845 = vrot.slane %v1777, 7
      %v1846 = vsel %vm1834, %v1844, %v1845
      %v1847 = vrot.slane %v1778, 7
      %v1848 = vrot.slane %v1779, 7
      %v1849 = vsel %vm1834, %v1847, %v1848
      %v1850 = vrot.slane %v1780, 7
      %v1851 = vrot.slane %v1781, 7
      %v1852 = vsel %vm1834, %v1850, %v1851
      %v1853 = vrot.slane %v1782, 7
      %v1854 = vrot.slane %v1783, 7
      %v1855 = vsel %vm1834, %v1853, %v1854
      %v1856 = vrot.slane %v1784, 7
      %v1857 = vrot.slane %v1785, 7
      %v1858 = vsel %vm1834, %v1856, %v1857
      %v1859 = vrot.slane %v1786, 7
      %v1860 = vrot.slane %v1787, 7
      %v1861 = vsel %vm1834, %v1859, %v1860
      %v1862 = vrot.slane %v1788, 7
      %v1863 = vrot.slane %v1789, 7
      %v1864 = vsel %vm1834, %v1862, %v1863
      %v1865 = vrot.slane %v1790, 7
      %v1866 = vrot.slane %v1791, 7
      %v1867 = vsel %vm1834, %v1865, %v1866
      %v1868 = vrot.slane %v1792, 7
      %v1869 = vrot.slane %v1793, 7
      %v1870 = vsel %vm1834, %v1868, %v1869
      %v1871 = vrot.slane %v1794, 7
      %v1872 = vrot.slane %v1795, 7
      %v1873 = vsel %vm1834, %v1871, %v1872
      %v1874 = vrot.slane %v1796, 7
      %v1875 = vrot.slane %v1797, 7
      %v1876 = vsel %vm1834, %v1874, %v1875
      %v1877 = vrot.slane %v1798, 7
      %v1878 = vrot.slane %v1799, 7
      %v1879 = vsel %vm1834, %v1877, %v1878
      %v1880 = vrot.slane %v1800, 7
      %v1881 = vrot.slane %v1801, 7
      %v1882 = vsel %vm1834, %v1880, %v1881
      %1915 = vst.msk [vmem:[%s779] sm:$0xf0] %vm797, %v1835
      %1916 = vst.msk [vmem:[%s779 + $0x8] sm:$0xf] %vm780, %v1837
      %1917 = vst.msk [vmem:[%s779 + $0x10] sm:$0xf0] %vm797, %v1838
      %1918 = vst.msk [vmem:[%s779 + $0x18] sm:$0xf] %vm780, %v1840
      %1919 = vst.msk [vmem:[%s779 + $0x20] sm:$0xf0] %vm797, %v1841
      %1920 = vst.msk [vmem:[%s779 + $0x28] sm:$0xf] %vm780, %v1843
      %1921 = vst.msk [vmem:[%s779 + $0x30] sm:$0xf0] %vm797, %v1844
      %1922 = vst.msk [vmem:[%s779 + $0x38] sm:$0xf] %vm780, %v1846
      %1923 = vst.msk [vmem:[%s779 + $0x40] sm:$0xf0] %vm797, %v1847
      %1924 = vst.msk [vmem:[%s779 + $0x48] sm:$0xf] %vm780, %v1849
      %1925 = vst.msk [vmem:[%s779 + $0x50] sm:$0xf0] %vm797, %v1850
      %1926 = vst.msk [vmem:[%s779 + $0x58] sm:$0xf] %vm780, %v1852
      %1927 = vst.msk [vmem:[%s779 + $0x60] sm:$0xf0] %vm797, %v1853
      %1928 = vst.msk [vmem:[%s779 + $0x68] sm:$0xf] %vm780, %v1855
      %1929 = vst.msk [vmem:[%s779 + $0x70] sm:$0xf0] %vm797, %v1856
      %1930 = vst.msk [vmem:[%s779 + $0x78] sm:$0xf] %vm780, %v1858
      %1931 = vst.msk [vmem:[%s779 + $0x80] sm:$0xf0] %vm797, %v1859
      %1932 = vst.msk [vmem:[%s779 + $0x88] sm:$0xf] %vm780, %v1861
      %1933 = vst.msk [vmem:[%s779 + $0x90] sm:$0xf0] %vm797, %v1862
      %1934 = vst.msk [vmem:[%s779 + $0x98] sm:$0xf] %vm780, %v1864
      %1935 = vst.msk [vmem:[%s779 + $0xa0] sm:$0xf0] %vm797, %v1865
      %1936 = vst.msk [vmem:[%s779 + $0xa8] sm:$0xf] %vm780, %v1867
      %1937 = vst.msk [vmem:[%s779 + $0xb0] sm:$0xf0] %vm797, %v1868
      %1938 = vst.msk [vmem:[%s779 + $0xb8] sm:$0xf] %vm780, %v1870
      %1939 = vst.msk [vmem:[%s779 + $0xc0] sm:$0xf0] %vm797, %v1871
      %1940 = vst.msk [vmem:[%s779 + $0xc8] sm:$0xf] %vm780, %v1873
      %1941 = vst.msk [vmem:[%s779 + $0xd0] sm:$0xf0] %vm797, %v1874
      %1942 = vst.msk [vmem:[%s779 + $0xd8] sm:$0xf] %vm780, %v1876
      %1943 = vst.msk [vmem:[%s779 + $0xe0] sm:$0xf0] %vm797, %v1877
      %1944 = vst.msk [vmem:[%s779 + $0xe8] sm:$0xf] %vm780, %v1879
      %1945 = vst.msk [vmem:[%s779 + $0xf0] sm:$0xf0] %vm797, %v1880
      %1946 = vst.msk [vmem:[%s779 + $0xf8] sm:$0xf] %vm780, %v1882
      %v1947 = vld [vmem:[#allocation2] sm:$0xff]
      %v1948 = vld [vmem:[#allocation2 + $0x8] sm:$0xff]
      %v1949 = vld [vmem:[#allocation2 + $0x10] sm:$0xff]
      %v1950 = vld [vmem:[#allocation2 + $0x18] sm:$0xff]
      %v1951 = vld [vmem:[#allocation2 + $0x20] sm:$0xff]
      %v1952 = vld [vmem:[#allocation2 + $0x28] sm:$0xff]
      %v1953 = vld [vmem:[#allocation2 + $0x30] sm:$0xff]
      %v1954 = vld [vmem:[#allocation2 + $0x38] sm:$0xff]
      %v1955 = vld [vmem:[#allocation2 + $0x40] sm:$0xff]
      %v1956 = vld [vmem:[#allocation2 + $0x48] sm:$0xff]
      %v1957 = vld [vmem:[#allocation2 + $0x50] sm:$0xff]
      %v1958 = vld [vmem:[#allocation2 + $0x58] sm:$0xff]
      %v1959 = vld [vmem:[#allocation2 + $0x60] sm:$0xff]
      %v1960 = vld [vmem:[#allocation2 + $0x68] sm:$0xff]
      %v1961 = vld [vmem:[#allocation2 + $0x70] sm:$0xff]
      %v1962 = vld [vmem:[#allocation2 + $0x78] sm:$0xff]
      %v1963 = vld [vmem:[#allocation2 + $0x80] sm:$0xff]
      %v1964 = vld [vmem:[#allocation2 + $0x88] sm:$0xff]
      %v1965 = vld [vmem:[#allocation2 + $0x90] sm:$0xff]
      %v1966 = vld [vmem:[#allocation2 + $0x98] sm:$0xff]
      %v1967 = vld [vmem:[#allocation2 + $0xa0] sm:$0xff]
      %v1968 = vld [vmem:[#allocation2 + $0xa8] sm:$0xff]
      %v1969 = vld [vmem:[#allocation2 + $0xb0] sm:$0xff]
      %v1970 = vld [vmem:[#allocation2 + $0xb8] sm:$0xff]
      %v1971 = vld [vmem:[#allocation2 + $0xc0] sm:$0xff]
      %v1972 = vld [vmem:[#allocation2 + $0xc8] sm:$0xff]
      %v1973 = vld [vmem:[#allocation2 + $0xd0] sm:$0xff]
      %v1974 = vld [vmem:[#allocation2 + $0xd8] sm:$0xff]
      %v1975 = vld [vmem:[#allocation2 + $0xe0] sm:$0xff]
      %v1976 = vld [vmem:[#allocation2 + $0xe8] sm:$0xff]
      %v1977 = vld [vmem:[#allocation2 + $0xf0] sm:$0xff]
      %v1978 = vld [vmem:[#allocation2 + $0xf8] sm:$0xff]
      %v1979 = vld [vmem:[#allocation2 + $0x100] sm:$0xff]
      %v1980 = vld [vmem:[#allocation2 + $0x108] sm:$0xff]
      %v1981 = vld [vmem:[#allocation2 + $0x110] sm:$0xff]
      %v1982 = vld [vmem:[#allocation2 + $0x118] sm:$0xff]
      %v1983 = vld [vmem:[#allocation2 + $0x120] sm:$0xff]
      %v1984 = vld [vmem:[#allocation2 + $0x128] sm:$0xff]
      %v1985 = vld [vmem:[#allocation2 + $0x130] sm:$0xff]
      %v1986 = vld [vmem:[#allocation2 + $0x138] sm:$0xff]
      %v1987 = vmax.bf16 %v1947, %v1949
      %v1988 = vmax.bf16 %v1948, %v1950
      %v1989 = vmax.bf16 %v1949, %v1951
      %v1990 = vmax.bf16 %v1950, %v1952
      %v1991 = vmax.bf16 %v1951, %v1953
      %v1992 = vmax.bf16 %v1952, %v1954
      %v1993 = vmax.bf16 %v1953, %v1955
      %v1994 = vmax.bf16 %v1954, %v1956
      %v1995 = vmax.bf16 %v1955, %v1957
      %v1996 = vmax.bf16 %v1956, %v1958
      %v1997 = vmax.bf16 %v1957, %v1959
      %v1998 = vmax.bf16 %v1958, %v1960
      %v1999 = vmax.bf16 %v1959, %v1961
      %v2000 = vmax.bf16 %v1960, %v1962
      %v2001 = vmax.bf16 %v1961, %v1963
      %v2002 = vmax.bf16 %v1962, %v1964
      %v2003 = vmax.bf16 %v1963, %v1965
      %v2004 = vmax.bf16 %v1964, %v1966
      %v2005 = vmax.bf16 %v1965, %v1967
      %v2006 = vmax.bf16 %v1966, %v1968
      %v2007 = vmax.bf16 %v1967, %v1969
      %v2008 = vmax.bf16 %v1968, %v1970
      %v2009 = vmax.bf16 %v1969, %v1971
      %v2010 = vmax.bf16 %v1970, %v1972
      %v2011 = vmax.bf16 %v1971, %v1973
      %v2012 = vmax.bf16 %v1972, %v1974
      %v2013 = vmax.bf16 %v1973, %v1975
      %v2014 = vmax.bf16 %v1974, %v1976
      %v2015 = vmax.bf16 %v1975, %v1977
      %v2016 = vmax.bf16 %v1976, %v1978
      %v2017 = vmax.bf16 %v1977, %v1979
      %v2018 = vmax.bf16 %v1978, %v1980
      %v2019 = vmax.bf16 %v1987, %v1951
      %v2020 = vmax.bf16 %v1988, %v1952
      %v2021 = vmax.bf16 %v1989, %v1953
      %v2022 = vmax.bf16 %v1990, %v1954
      %v2023 = vmax.bf16 %v1991, %v1955
      %v2024 = vmax.bf16 %v1992, %v1956
      %v2025 = vmax.bf16 %v1993, %v1957
      %v2026 = vmax.bf16 %v1994, %v1958
      %v2027 = vmax.bf16 %v1995, %v1959
      %v2028 = vmax.bf16 %v1996, %v1960
      %v2029 = vmax.bf16 %v1997, %v1961
      %v2030 = vmax.bf16 %v1998, %v1962
      %v2031 = vmax.bf16 %v1999, %v1963
      %v2032 = vmax.bf16 %v2000, %v1964
      %v2033 = vmax.bf16 %v2001, %v1965
      %v2034 = vmax.bf16 %v2002, %v1966
      %v2035 = vmax.bf16 %v2003, %v1967
      %v2036 = vmax.bf16 %v2004, %v1968
      %v2037 = vmax.bf16 %v2005, %v1969
      %v2038 = vmax.bf16 %v2006, %v1970
      %v2039 = vmax.bf16 %v2007, %v1971
      %v2040 = vmax.bf16 %v2008, %v1972
      %v2041 = vmax.bf16 %v2009, %v1973
      %v2042 = vmax.bf16 %v2010, %v1974
      %v2043 = vmax.bf16 %v2011, %v1975
      %v2044 = vmax.bf16 %v2012, %v1976
      %v2045 = vmax.bf16 %v2013, %v1977
      %v2046 = vmax.bf16 %v2014, %v1978
      %v2047 = vmax.bf16 %v2015, %v1979
      %v2048 = vmax.bf16 %v2016, %v1980
      %v2049 = vmax.bf16 %v2017, %v1981
      %v2050 = vmax.bf16 %v2018, %v1982
      %v2051 = vmax.bf16 %v2019, %v1953
      %v2052 = vmax.bf16 %v2020, %v1954
      %v2053 = vmax.bf16 %v2021, %v1955
      %v2054 = vmax.bf16 %v2022, %v1956
      %v2055 = vmax.bf16 %v2023, %v1957
      %v2056 = vmax.bf16 %v2024, %v1958
      %v2057 = vmax.bf16 %v2025, %v1959
      %v2058 = vmax.bf16 %v2026, %v1960
      %v2059 = vmax.bf16 %v2027, %v1961
      %v2060 = vmax.bf16 %v2028, %v1962
      %v2061 = vmax.bf16 %v2029, %v1963
      %v2062 = vmax.bf16 %v2030, %v1964
      %v2063 = vmax.bf16 %v2031, %v1965
      %v2064 = vmax.bf16 %v2032, %v1966
      %v2065 = vmax.bf16 %v2033, %v1967
      %v2066 = vmax.bf16 %v2034, %v1968
      %v2067 = vmax.bf16 %v2035, %v1969
      %v2068 = vmax.bf16 %v2036, %v1970
      %v2069 = vmax.bf16 %v2037, %v1971
      %v2070 = vmax.bf16 %v2038, %v1972
      %v2071 = vmax.bf16 %v2039, %v1973
      %v2072 = vmax.bf16 %v2040, %v1974
      %v2073 = vmax.bf16 %v2041, %v1975
      %v2074 = vmax.bf16 %v2042, %v1976
      %v2075 = vmax.bf16 %v2043, %v1977
      %v2076 = vmax.bf16 %v2044, %v1978
      %v2077 = vmax.bf16 %v2045, %v1979
      %v2078 = vmax.bf16 %v2046, %v1980
      %v2079 = vmax.bf16 %v2047, %v1981
      %v2080 = vmax.bf16 %v2048, %v1982
      %v2081 = vmax.bf16 %v2049, %v1983
      %v2082 = vmax.bf16 %v2050, %v1984
      %v2083 = vmax.bf16 %v2051, %v1955
      %v2084 = vmax.bf16 %v2052, %v1956
      %v2085 = vmax.bf16 %v2053, %v1957
      %v2086 = vmax.bf16 %v2054, %v1958
      %v2087 = vmax.bf16 %v2055, %v1959
      %v2088 = vmax.bf16 %v2056, %v1960
      %v2089 = vmax.bf16 %v2057, %v1961
      %v2090 = vmax.bf16 %v2058, %v1962
      %v2091 = vmax.bf16 %v2059, %v1963
      %v2092 = vmax.bf16 %v2060, %v1964
      %v2093 = vmax.bf16 %v2061, %v1965
      %v2094 = vmax.bf16 %v2062, %v1966
      %v2095 = vmax.bf16 %v2063, %v1967
      %v2096 = vmax.bf16 %v2064, %v1968
      %v2097 = vmax.bf16 %v2065, %v1969
      %v2098 = vmax.bf16 %v2066, %v1970
      %v2099 = vmax.bf16 %v2067, %v1971
      %v2100 = vmax.bf16 %v2068, %v1972
      %v2101 = vmax.bf16 %v2069, %v1973
      %v2102 = vmax.bf16 %v2070, %v1974
      %v2103 = vmax.bf16 %v2071, %v1975
      %v2104 = vmax.bf16 %v2072, %v1976
      %v2105 = vmax.bf16 %v2073, %v1977
      %v2106 = vmax.bf16 %v2074, %v1978
      %v2107 = vmax.bf16 %v2075, %v1979
      %v2108 = vmax.bf16 %v2076, %v1980
      %v2109 = vmax.bf16 %v2077, %v1981
      %v2110 = vmax.bf16 %v2078, %v1982
      %v2111 = vmax.bf16 %v2079, %v1983
      %v2112 = vmax.bf16 %v2080, %v1984
      %v2113 = vmax.bf16 %v2081, %v1985
      %v2114 = vmax.bf16 %v2082, %v1986
      %v2116 = vshrl.u32 %v2083, 16
      %v2118 = vshll.u32 %v2083, 16
      %v2120 = vrot.slane %v2118, 1
      %v2121 = vor.u32 %v2116, %v2120
      %v2123 = vshll.u32 %v2084, 16
      %v2125 = vrot.slane %v2123, 1
      %v2126 = vsel %vm1062, %v2121, %v2125
      %v2127 = vshrl.u32 %v2084, 16
      %v2129 = vor.u32 %v2127, %v2125
      %v2131 = vshrl.u32 %v2085, 16
      %v2133 = vshll.u32 %v2085, 16
      %v2135 = vrot.slane %v2133, 1
      %v2136 = vor.u32 %v2131, %v2135
      %v2138 = vshll.u32 %v2086, 16
      %v2140 = vrot.slane %v2138, 1
      %v2141 = vsel %vm1062, %v2136, %v2140
      %v2142 = vshrl.u32 %v2086, 16
      %v2144 = vor.u32 %v2142, %v2140
      %v2146 = vshrl.u32 %v2087, 16
      %v2148 = vshll.u32 %v2087, 16
      %v2150 = vrot.slane %v2148, 1
      %v2151 = vor.u32 %v2146, %v2150
      %v2153 = vshll.u32 %v2088, 16
      %v2155 = vrot.slane %v2153, 1
      %v2156 = vsel %vm1062, %v2151, %v2155
      %v2157 = vshrl.u32 %v2088, 16
      %v2159 = vor.u32 %v2157, %v2155
      %v2161 = vshrl.u32 %v2089, 16
      %v2163 = vshll.u32 %v2089, 16
      %v2165 = vrot.slane %v2163, 1
      %v2166 = vor.u32 %v2161, %v2165
      %v2168 = vshll.u32 %v2090, 16
      %v2170 = vrot.slane %v2168, 1
      %v2171 = vsel %vm1062, %v2166, %v2170
      %v2172 = vshrl.u32 %v2090, 16
      %v2174 = vor.u32 %v2172, %v2170
      %v2176 = vshrl.u32 %v2091, 16
      %v2178 = vshll.u32 %v2091, 16
      %v2180 = vrot.slane %v2178, 1
      %v2181 = vor.u32 %v2176, %v2180
      %v2183 = vshll.u32 %v2092, 16
      %v2185 = vrot.slane %v2183, 1
      %v2186 = vsel %vm1062, %v2181, %v2185
      %v2187 = vshrl.u32 %v2092, 16
      %v2189 = vor.u32 %v2187, %v2185
      %v2191 = vshrl.u32 %v2093, 16
      %v2193 = vshll.u32 %v2093, 16
      %v2195 = vrot.slane %v2193, 1
      %v2196 = vor.u32 %v2191, %v2195
      %v2198 = vshll.u32 %v2094, 16
      %v2200 = vrot.slane %v2198, 1
      %v2201 = vsel %vm1062, %v2196, %v2200
      %v2202 = vshrl.u32 %v2094, 16
      %v2204 = vor.u32 %v2202, %v2200
      %v2206 = vshrl.u32 %v2095, 16
      %v2208 = vshll.u32 %v2095, 16
      %v2210 = vrot.slane %v2208, 1
      %v2211 = vor.u32 %v2206, %v2210
      %v2213 = vshll.u32 %v2096, 16
      %v2215 = vrot.slane %v2213, 1
      %v2216 = vsel %vm1062, %v2211, %v2215
      %v2217 = vshrl.u32 %v2096, 16
      %v2219 = vor.u32 %v2217, %v2215
      %v2221 = vshrl.u32 %v2097, 16
      %v2223 = vshll.u32 %v2097, 16
      %v2225 = vrot.slane %v2223, 1
      %v2226 = vor.u32 %v2221, %v2225
      %v2228 = vshll.u32 %v2098, 16
      %v2230 = vrot.slane %v2228, 1
      %v2231 = vsel %vm1062, %v2226, %v2230
      %v2232 = vshrl.u32 %v2098, 16
      %v2234 = vor.u32 %v2232, %v2230
      %v2236 = vshrl.u32 %v2099, 16
      %v2238 = vshll.u32 %v2099, 16
      %v2240 = vrot.slane %v2238, 1
      %v2241 = vor.u32 %v2236, %v2240
      %v2243 = vshll.u32 %v2100, 16
      %v2245 = vrot.slane %v2243, 1
      %v2246 = vsel %vm1062, %v2241, %v2245
      %v2247 = vshrl.u32 %v2100, 16
      %v2249 = vor.u32 %v2247, %v2245
      %v2251 = vshrl.u32 %v2101, 16
      %v2253 = vshll.u32 %v2101, 16
      %v2255 = vrot.slane %v2253, 1
      %v2256 = vor.u32 %v2251, %v2255
      %v2258 = vshll.u32 %v2102, 16
      %v2260 = vrot.slane %v2258, 1
      %v2261 = vsel %vm1062, %v2256, %v2260
      %v2262 = vshrl.u32 %v2102, 16
      %v2264 = vor.u32 %v2262, %v2260
      %v2266 = vshrl.u32 %v2103, 16
      %v2268 = vshll.u32 %v2103, 16
      %v2270 = vrot.slane %v2268, 1
      %v2271 = vor.u32 %v2266, %v2270
      %v2273 = vshll.u32 %v2104, 16
      %v2275 = vrot.slane %v2273, 1
      %v2276 = vsel %vm1062, %v2271, %v2275
      %v2277 = vshrl.u32 %v2104, 16
      %v2279 = vor.u32 %v2277, %v2275
      %v2281 = vshrl.u32 %v2105, 16
      %v2283 = vshll.u32 %v2105, 16
      %v2285 = vrot.slane %v2283, 1
      %v2286 = vor.u32 %v2281, %v2285
      %v2288 = vshll.u32 %v2106, 16
      %v2290 = vrot.slane %v2288, 1
      %v2291 = vsel %vm1062, %v2286, %v2290
      %v2292 = vshrl.u32 %v2106, 16
      %v2294 = vor.u32 %v2292, %v2290
      %v2296 = vshrl.u32 %v2107, 16
      %v2298 = vshll.u32 %v2107, 16
      %v2300 = vrot.slane %v2298, 1
      %v2301 = vor.u32 %v2296, %v2300
      %v2303 = vshll.u32 %v2108, 16
      %v2305 = vrot.slane %v2303, 1
      %v2306 = vsel %vm1062, %v2301, %v2305
      %v2307 = vshrl.u32 %v2108, 16
      %v2309 = vor.u32 %v2307, %v2305
      %v2311 = vshrl.u32 %v2109, 16
      %v2313 = vshll.u32 %v2109, 16
      %v2315 = vrot.slane %v2313, 1
      %v2316 = vor.u32 %v2311, %v2315
      %v2318 = vshll.u32 %v2110, 16
      %v2320 = vrot.slane %v2318, 1
      %v2321 = vsel %vm1062, %v2316, %v2320
      %v2322 = vshrl.u32 %v2110, 16
      %v2324 = vor.u32 %v2322, %v2320
      %v2326 = vshrl.u32 %v2111, 16
      %v2328 = vshll.u32 %v2111, 16
      %v2330 = vrot.slane %v2328, 1
      %v2331 = vor.u32 %v2326, %v2330
      %v2333 = vshll.u32 %v2112, 16
      %v2335 = vrot.slane %v2333, 1
      %v2336 = vsel %vm1062, %v2331, %v2335
      %v2337 = vshrl.u32 %v2112, 16
      %v2339 = vor.u32 %v2337, %v2335
      %v2341 = vshrl.u32 %v2113, 16
      %v2343 = vshll.u32 %v2113, 16
      %v2345 = vrot.slane %v2343, 1
      %v2346 = vor.u32 %v2341, %v2345
      %v2348 = vshll.u32 %v2114, 16
      %v2350 = vrot.slane %v2348, 1
      %v2351 = vsel %vm1062, %v2346, %v2350
      %v2352 = vshrl.u32 %v2114, 16
      %v2354 = vor.u32 %v2352, %v2350
      %v2387 = vmax.bf16 %v2083, %v2126
      %v2388 = vmax.bf16 %v2084, %v2129
      %v2389 = vmax.bf16 %v2085, %v2141
      %v2390 = vmax.bf16 %v2086, %v2144
      %v2391 = vmax.bf16 %v2087, %v2156
      %v2392 = vmax.bf16 %v2088, %v2159
      %v2393 = vmax.bf16 %v2089, %v2171
      %v2394 = vmax.bf16 %v2090, %v2174
      %v2395 = vmax.bf16 %v2091, %v2186
      %v2396 = vmax.bf16 %v2092, %v2189
      %v2397 = vmax.bf16 %v2093, %v2201
      %v2398 = vmax.bf16 %v2094, %v2204
      %v2399 = vmax.bf16 %v2095, %v2216
      %v2400 = vmax.bf16 %v2096, %v2219
      %v2401 = vmax.bf16 %v2097, %v2231
      %v2402 = vmax.bf16 %v2098, %v2234
      %v2403 = vmax.bf16 %v2099, %v2246
      %v2404 = vmax.bf16 %v2100, %v2249
      %v2405 = vmax.bf16 %v2101, %v2261
      %v2406 = vmax.bf16 %v2102, %v2264
      %v2407 = vmax.bf16 %v2103, %v2276
      %v2408 = vmax.bf16 %v2104, %v2279
      %v2409 = vmax.bf16 %v2105, %v2291
      %v2410 = vmax.bf16 %v2106, %v2294
      %v2411 = vmax.bf16 %v2107, %v2306
      %v2412 = vmax.bf16 %v2108, %v2309
      %v2413 = vmax.bf16 %v2109, %v2321
      %v2414 = vmax.bf16 %v2110, %v2324
      %v2415 = vmax.bf16 %v2111, %v2336
      %v2416 = vmax.bf16 %v2112, %v2339
      %v2417 = vmax.bf16 %v2113, %v2351
      %v2418 = vmax.bf16 %v2114, %v2354
      %v2451 = vrot.slane %v2083, 1
      %v2452 = vrot.slane %v2084, 1
      %v2453 = vsel %vm1399, %v2451, %v2452
      %v2454 = vrot.slane %v2085, 1
      %v2455 = vrot.slane %v2086, 1
      %v2456 = vsel %vm1399, %v2454, %v2455
      %v2457 = vrot.slane %v2087, 1
      %v2458 = vrot.slane %v2088, 1
      %v2459 = vsel %vm1399, %v2457, %v2458
      %v2460 = vrot.slane %v2089, 1
      %v2461 = vrot.slane %v2090, 1
      %v2462 = vsel %vm1399, %v2460, %v2461
      %v2463 = vrot.slane %v2091, 1
      %v2464 = vrot.slane %v2092, 1
      %v2465 = vsel %vm1399, %v2463, %v2464
      %v2466 = vrot.slane %v2093, 1
      %v2467 = vrot.slane %v2094, 1
      %v2468 = vsel %vm1399, %v2466, %v2467
      %v2469 = vrot.slane %v2095, 1
      %v2470 = vrot.slane %v2096, 1
      %v2471 = vsel %vm1399, %v2469, %v2470
      %v2472 = vrot.slane %v2097, 1
      %v2473 = vrot.slane %v2098, 1
      %v2474 = vsel %vm1399, %v2472, %v2473
      %v2475 = vrot.slane %v2099, 1
      %v2476 = vrot.slane %v2100, 1
      %v2477 = vsel %vm1399, %v2475, %v2476
      %v2478 = vrot.slane %v2101, 1
      %v2479 = vrot.slane %v2102, 1
      %v2480 = vsel %vm1399, %v2478, %v2479
      %v2481 = vrot.slane %v2103, 1
      %v2482 = vrot.slane %v2104, 1
      %v2483 = vsel %vm1399, %v2481, %v2482
      %v2484 = vrot.slane %v2105, 1
      %v2485 = vrot.slane %v2106, 1
      %v2486 = vsel %vm1399, %v2484, %v2485
      %v2487 = vrot.slane %v2107, 1
      %v2488 = vrot.slane %v2108, 1
      %v2489 = vsel %vm1399, %v2487, %v2488
      %v2490 = vrot.slane %v2109, 1
      %v2491 = vrot.slane %v2110, 1
      %v2492 = vsel %vm1399, %v2490, %v2491
      %v2493 = vrot.slane %v2111, 1
      %v2494 = vrot.slane %v2112, 1
      %v2495 = vsel %vm1399, %v2493, %v2494
      %v2496 = vrot.slane %v2113, 1
      %v2497 = vrot.slane %v2114, 1
      %v2498 = vsel %vm1399, %v2496, %v2497
      %v2531 = vmax.bf16 %v2387, %v2453
      %v2532 = vmax.bf16 %v2388, %v2452
      %v2533 = vmax.bf16 %v2389, %v2456
      %v2534 = vmax.bf16 %v2390, %v2455
      %v2535 = vmax.bf16 %v2391, %v2459
      %v2536 = vmax.bf16 %v2392, %v2458
      %v2537 = vmax.bf16 %v2393, %v2462
      %v2538 = vmax.bf16 %v2394, %v2461
      %v2539 = vmax.bf16 %v2395, %v2465
      %v2540 = vmax.bf16 %v2396, %v2464
      %v2541 = vmax.bf16 %v2397, %v2468
      %v2542 = vmax.bf16 %v2398, %v2467
      %v2543 = vmax.bf16 %v2399, %v2471
      %v2544 = vmax.bf16 %v2400, %v2470
      %v2545 = vmax.bf16 %v2401, %v2474
      %v2546 = vmax.bf16 %v2402, %v2473
      %v2547 = vmax.bf16 %v2403, %v2477
      %v2548 = vmax.bf16 %v2404, %v2476
      %v2549 = vmax.bf16 %v2405, %v2480
      %v2550 = vmax.bf16 %v2406, %v2479
      %v2551 = vmax.bf16 %v2407, %v2483
      %v2552 = vmax.bf16 %v2408, %v2482
      %v2553 = vmax.bf16 %v2409, %v2486
      %v2554 = vmax.bf16 %v2410, %v2485
      %v2555 = vmax.bf16 %v2411, %v2489
      %v2556 = vmax.bf16 %v2412, %v2488
      %v2557 = vmax.bf16 %v2413, %v2492
      %v2558 = vmax.bf16 %v2414, %v2491
      %v2559 = vmax.bf16 %v2415, %v2495
      %v2560 = vmax.bf16 %v2416, %v2494
      %v2561 = vmax.bf16 %v2417, %v2498
      %v2562 = vmax.bf16 %v2418, %v2497
      %v2563 = vrot.slane %v2116, 1
      %v2564 = vrot.slane %v2118, 2
      %v2565 = vor.u32 %v2563, %v2564
      %v2566 = vrot.slane %v2127, 1
      %v2567 = vrot.slane %v2123, 2
      %v2568 = vor.u32 %v2566, %v2567
      %v2569 = vsel %vm1512, %v2565, %v2568
      %v2570 = vrot.slane %v2131, 1
      %v2571 = vrot.slane %v2133, 2
      %v2572 = vor.u32 %v2570, %v2571
      %v2573 = vrot.slane %v2142, 1
      %v2574 = vrot.slane %v2138, 2
      %v2575 = vor.u32 %v2573, %v2574
      %v2576 = vsel %vm1512, %v2572, %v2575
      %v2577 = vrot.slane %v2146, 1
      %v2578 = vrot.slane %v2148, 2
      %v2579 = vor.u32 %v2577, %v2578
      %v2580 = vrot.slane %v2157, 1
      %v2581 = vrot.slane %v2153, 2
      %v2582 = vor.u32 %v2580, %v2581
      %v2583 = vsel %vm1512, %v2579, %v2582
      %v2584 = vrot.slane %v2161, 1
      %v2585 = vrot.slane %v2163, 2
      %v2586 = vor.u32 %v2584, %v2585
      %v2587 = vrot.slane %v2172, 1
      %v2588 = vrot.slane %v2168, 2
      %v2589 = vor.u32 %v2587, %v2588
      %v2590 = vsel %vm1512, %v2586, %v2589
      %v2591 = vrot.slane %v2176, 1
      %v2592 = vrot.slane %v2178, 2
      %v2593 = vor.u32 %v2591, %v2592
      %v2594 = vrot.slane %v2187, 1
      %v2595 = vrot.slane %v2183, 2
      %v2596 = vor.u32 %v2594, %v2595
      %v2597 = vsel %vm1512, %v2593, %v2596
      %v2598 = vrot.slane %v2191, 1
      %v2599 = vrot.slane %v2193, 2
      %v2600 = vor.u32 %v2598, %v2599
      %v2601 = vrot.slane %v2202, 1
      %v2602 = vrot.slane %v2198, 2
      %v2603 = vor.u32 %v2601, %v2602
      %v2604 = vsel %vm1512, %v2600, %v2603
      %v2605 = vrot.slane %v2206, 1
      %v2606 = vrot.slane %v2208, 2
      %v2607 = vor.u32 %v2605, %v2606
      %v2608 = vrot.slane %v2217, 1
      %v2609 = vrot.slane %v2213, 2
      %v2610 = vor.u32 %v2608, %v2609
      %v2611 = vsel %vm1512, %v2607, %v2610
      %v2612 = vrot.slane %v2221, 1
      %v2613 = vrot.slane %v2223, 2
      %v2614 = vor.u32 %v2612, %v2613
      %v2615 = vrot.slane %v2232, 1
      %v2616 = vrot.slane %v2228, 2
      %v2617 = vor.u32 %v2615, %v2616
      %v2618 = vsel %vm1512, %v2614, %v2617
      %v2619 = vrot.slane %v2236, 1
      %v2620 = vrot.slane %v2238, 2
      %v2621 = vor.u32 %v2619, %v2620
      %v2622 = vrot.slane %v2247, 1
      %v2623 = vrot.slane %v2243, 2
      %v2624 = vor.u32 %v2622, %v2623
      %v2625 = vsel %vm1512, %v2621, %v2624
      %v2626 = vrot.slane %v2251, 1
      %v2627 = vrot.slane %v2253, 2
      %v2628 = vor.u32 %v2626, %v2627
      %v2629 = vrot.slane %v2262, 1
      %v2630 = vrot.slane %v2258, 2
      %v2631 = vor.u32 %v2629, %v2630
      %v2632 = vsel %vm1512, %v2628, %v2631
      %v2633 = vrot.slane %v2266, 1
      %v2634 = vrot.slane %v2268, 2
      %v2635 = vor.u32 %v2633, %v2634
      %v2636 = vrot.slane %v2277, 1
      %v2637 = vrot.slane %v2273, 2
      %v2638 = vor.u32 %v2636, %v2637
      %v2639 = vsel %vm1512, %v2635, %v2638
      %v2640 = vrot.slane %v2281, 1
      %v2641 = vrot.slane %v2283, 2
      %v2642 = vor.u32 %v2640, %v2641
      %v2643 = vrot.slane %v2292, 1
      %v2644 = vrot.slane %v2288, 2
      %v2645 = vor.u32 %v2643, %v2644
      %v2646 = vsel %vm1512, %v2642, %v2645
      %v2647 = vrot.slane %v2296, 1
      %v2648 = vrot.slane %v2298, 2
      %v2649 = vor.u32 %v2647, %v2648
      %v2650 = vrot.slane %v2307, 1
      %v2651 = vrot.slane %v2303, 2
      %v2652 = vor.u32 %v2650, %v2651
      %v2653 = vsel %vm1512, %v2649, %v2652
      %v2654 = vrot.slane %v2311, 1
      %v2655 = vrot.slane %v2313, 2
      %v2656 = vor.u32 %v2654, %v2655
      %v2657 = vrot.slane %v2322, 1
      %v2658 = vrot.slane %v2318, 2
      %v2659 = vor.u32 %v2657, %v2658
      %v2660 = vsel %vm1512, %v2656, %v2659
      %v2661 = vrot.slane %v2326, 1
      %v2662 = vrot.slane %v2328, 2
      %v2663 = vor.u32 %v2661, %v2662
      %v2664 = vrot.slane %v2337, 1
      %v2665 = vrot.slane %v2333, 2
      %v2666 = vor.u32 %v2664, %v2665
      %v2667 = vsel %vm1512, %v2663, %v2666
      %v2668 = vrot.slane %v2341, 1
      %v2669 = vrot.slane %v2343, 2
      %v2670 = vor.u32 %v2668, %v2669
      %v2671 = vrot.slane %v2352, 1
      %v2672 = vrot.slane %v2348, 2
      %v2673 = vor.u32 %v2671, %v2672
      %v2674 = vsel %vm1512, %v2670, %v2673
      %v2707 = vmax.bf16 %v2531, %v2569
      %v2708 = vmax.bf16 %v2532, %v2568
      %v2709 = vmax.bf16 %v2533, %v2576
      %v2710 = vmax.bf16 %v2534, %v2575
      %v2711 = vmax.bf16 %v2535, %v2583
      %v2712 = vmax.bf16 %v2536, %v2582
      %v2713 = vmax.bf16 %v2537, %v2590
      %v2714 = vmax.bf16 %v2538, %v2589
      %v2715 = vmax.bf16 %v2539, %v2597
      %v2716 = vmax.bf16 %v2540, %v2596
      %v2717 = vmax.bf16 %v2541, %v2604
      %v2718 = vmax.bf16 %v2542, %v2603
      %v2719 = vmax.bf16 %v2543, %v2611
      %v2720 = vmax.bf16 %v2544, %v2610
      %v2721 = vmax.bf16 %v2545, %v2618
      %v2722 = vmax.bf16 %v2546, %v2617
      %v2723 = vmax.bf16 %v2547, %v2625
      %v2724 = vmax.bf16 %v2548, %v2624
      %v2725 = vmax.bf16 %v2549, %v2632
      %v2726 = vmax.bf16 %v2550, %v2631
      %v2727 = vmax.bf16 %v2551, %v2639
      %v2728 = vmax.bf16 %v2552, %v2638
      %v2729 = vmax.bf16 %v2553, %v2646
      %v2730 = vmax.bf16 %v2554, %v2645
      %v2731 = vmax.bf16 %v2555, %v2653
      %v2732 = vmax.bf16 %v2556, %v2652
      %v2733 = vmax.bf16 %v2557, %v2660
      %v2734 = vmax.bf16 %v2558, %v2659
      %v2735 = vmax.bf16 %v2559, %v2667
      %v2736 = vmax.bf16 %v2560, %v2666
      %v2737 = vmax.bf16 %v2561, %v2674
      %v2738 = vmax.bf16 %v2562, %v2673
      %v2739 = vrot.slane %v2083, 2
      %v2740 = vrot.slane %v2084, 2
      %v2741 = vsel %vm1689, %v2739, %v2740
      %v2742 = vrot.slane %v2085, 2
      %v2743 = vrot.slane %v2086, 2
      %v2744 = vsel %vm1689, %v2742, %v2743
      %v2745 = vrot.slane %v2087, 2
      %v2746 = vrot.slane %v2088, 2
      %v2747 = vsel %vm1689, %v2745, %v2746
      %v2748 = vrot.slane %v2089, 2
      %v2749 = vrot.slane %v2090, 2
      %v2750 = vsel %vm1689, %v2748, %v2749
      %v2751 = vrot.slane %v2091, 2
      %v2752 = vrot.slane %v2092, 2
      %v2753 = vsel %vm1689, %v2751, %v2752
      %v2754 = vrot.slane %v2093, 2
      %v2755 = vrot.slane %v2094, 2
      %v2756 = vsel %vm1689, %v2754, %v2755
      %v2757 = vrot.slane %v2095, 2
      %v2758 = vrot.slane %v2096, 2
      %v2759 = vsel %vm1689, %v2757, %v2758
      %v2760 = vrot.slane %v2097, 2
      %v2761 = vrot.slane %v2098, 2
      %v2762 = vsel %vm1689, %v2760, %v2761
      %v2763 = vrot.slane %v2099, 2
      %v2764 = vrot.slane %v2100, 2
      %v2765 = vsel %vm1689, %v2763, %v2764
      %v2766 = vrot.slane %v2101, 2
      %v2767 = vrot.slane %v2102, 2
      %v2768 = vsel %vm1689, %v2766, %v2767
      %v2769 = vrot.slane %v2103, 2
      %v2770 = vrot.slane %v2104, 2
      %v2771 = vsel %vm1689, %v2769, %v2770
      %v2772 = vrot.slane %v2105, 2
      %v2773 = vrot.slane %v2106, 2
      %v2774 = vsel %vm1689, %v2772, %v2773
      %v2775 = vrot.slane %v2107, 2
      %v2776 = vrot.slane %v2108, 2
      %v2777 = vsel %vm1689, %v2775, %v2776
      %v2778 = vrot.slane %v2109, 2
      %v2779 = vrot.slane %v2110, 2
      %v2780 = vsel %vm1689, %v2778, %v2779
      %v2781 = vrot.slane %v2111, 2
      %v2782 = vrot.slane %v2112, 2
      %v2783 = vsel %vm1689, %v2781, %v2782
      %v2784 = vrot.slane %v2113, 2
      %v2785 = vrot.slane %v2114, 2
      %v2786 = vsel %vm1689, %v2784, %v2785
      %v2819 = vmax.bf16 %v2707, %v2741
      %v2820 = vmax.bf16 %v2708, %v2740
      %v2821 = vmax.bf16 %v2709, %v2744
      %v2822 = vmax.bf16 %v2710, %v2743
      %v2823 = vmax.bf16 %v2711, %v2747
      %v2824 = vmax.bf16 %v2712, %v2746
      %v2825 = vmax.bf16 %v2713, %v2750
      %v2826 = vmax.bf16 %v2714, %v2749
      %v2827 = vmax.bf16 %v2715, %v2753
      %v2828 = vmax.bf16 %v2716, %v2752
      %v2829 = vmax.bf16 %v2717, %v2756
      %v2830 = vmax.bf16 %v2718, %v2755
      %v2831 = vmax.bf16 %v2719, %v2759
      %v2832 = vmax.bf16 %v2720, %v2758
      %v2833 = vmax.bf16 %v2721, %v2762
      %v2834 = vmax.bf16 %v2722, %v2761
      %v2835 = vmax.bf16 %v2723, %v2765
      %v2836 = vmax.bf16 %v2724, %v2764
      %v2837 = vmax.bf16 %v2725, %v2768
      %v2838 = vmax.bf16 %v2726, %v2767
      %v2839 = vmax.bf16 %v2727, %v2771
      %v2840 = vmax.bf16 %v2728, %v2770
      %v2841 = vmax.bf16 %v2729, %v2774
      %v2842 = vmax.bf16 %v2730, %v2773
      %v2843 = vmax.bf16 %v2731, %v2777
      %v2844 = vmax.bf16 %v2732, %v2776
      %v2845 = vmax.bf16 %v2733, %v2780
      %v2846 = vmax.bf16 %v2734, %v2779
      %v2847 = vmax.bf16 %v2735, %v2783
      %v2848 = vmax.bf16 %v2736, %v2782
      %v2849 = vmax.bf16 %v2737, %v2786
      %v2850 = vmax.bf16 %v2738, %v2785
      %v2883 = vrot.slane %v2819, 7
      %v2884 = vrot.slane %v2820, 7
      %v2885 = vsel %vm1834, %v2883, %v2884
      %v2886 = vrot.slane %v2821, 7
      %v2887 = vrot.slane %v2822, 7
      %v2888 = vsel %vm1834, %v2886, %v2887
      %v2889 = vrot.slane %v2823, 7
      %v2890 = vrot.slane %v2824, 7
      %v2891 = vsel %vm1834, %v2889, %v2890
      %v2892 = vrot.slane %v2825, 7
      %v2893 = vrot.slane %v2826, 7
      %v2894 = vsel %vm1834, %v2892, %v2893
      %v2895 = vrot.slane %v2827, 7
      %v2896 = vrot.slane %v2828, 7
      %v2897 = vsel %vm1834, %v2895, %v2896
      %v2898 = vrot.slane %v2829, 7
      %v2899 = vrot.slane %v2830, 7
      %v2900 = vsel %vm1834, %v2898, %v2899
      %v2901 = vrot.slane %v2831, 7
      %v2902 = vrot.slane %v2832, 7
      %v2903 = vsel %vm1834, %v2901, %v2902
      %v2904 = vrot.slane %v2833, 7
      %v2905 = vrot.slane %v2834, 7
      %v2906 = vsel %vm1834, %v2904, %v2905
      %v2907 = vrot.slane %v2835, 7
      %v2908 = vrot.slane %v2836, 7
      %v2909 = vsel %vm1834, %v2907, %v2908
      %v2910 = vrot.slane %v2837, 7
      %v2911 = vrot.slane %v2838, 7
      %v2912 = vsel %vm1834, %v2910, %v2911
      %v2913 = vrot.slane %v2839, 7
      %v2914 = vrot.slane %v2840, 7
      %v2915 = vsel %vm1834, %v2913, %v2914
      %v2916 = vrot.slane %v2841, 7
      %v2917 = vrot.slane %v2842, 7
      %v2918 = vsel %vm1834, %v2916, %v2917
      %v2919 = vrot.slane %v2843, 7
      %v2920 = vrot.slane %v2844, 7
      %v2921 = vsel %vm1834, %v2919, %v2920
      %v2922 = vrot.slane %v2845, 7
      %v2923 = vrot.slane %v2846, 7
      %v2924 = vsel %vm1834, %v2922, %v2923
      %v2925 = vrot.slane %v2847, 7
      %v2926 = vrot.slane %v2848, 7
      %v2927 = vsel %vm1834, %v2925, %v2926
      %v2928 = vrot.slane %v2849, 7
      %v2929 = vrot.slane %v2850, 7
      %v2930 = vsel %vm1834, %v2928, %v2929
      %2963 = vst.msk [vmem:[%s779] sm:$0xf0] %vm797, %v2883
      %2964 = vst.msk [vmem:[%s779 + $0x8] sm:$0xf] %vm780, %v2885
      %2965 = vst.msk [vmem:[%s779 + $0x10] sm:$0xf0] %vm797, %v2886
      %2966 = vst.msk [vmem:[%s779 + $0x18] sm:$0xf] %vm780, %v2888
      %2967 = vst.msk [vmem:[%s779 + $0x20] sm:$0xf0] %vm797, %v2889
      %2968 = vst.msk [vmem:[%s779 + $0x28] sm:$0xf] %vm780, %v2891
      %2969 = vst.msk [vmem:[%s779 + $0x30] sm:$0xf0] %vm797, %v2892
      %2970 = vst.msk [vmem:[%s779 + $0x38] sm:$0xf] %vm780, %v2894
      %2971 = vst.msk [vmem:[%s779 + $0x40] sm:$0xf0] %vm797, %v2895
      %2972 = vst.msk [vmem:[%s779 + $0x48] sm:$0xf] %vm780, %v2897
      %2973 = vst.msk [vmem:[%s779 + $0x50] sm:$0xf0] %vm797, %v2898
      %2974 = vst.msk [vmem:[%s779 + $0x58] sm:$0xf] %vm780, %v2900
      %2975 = vst.msk [vmem:[%s779 + $0x60] sm:$0xf0] %vm797, %v2901
      %2976 = vst.msk [vmem:[%s779 + $0x68] sm:$0xf] %vm780, %v2903
      %2977 = vst.msk [vmem:[%s779 + $0x70] sm:$0xf0] %vm797, %v2904
      %2978 = vst.msk [vmem:[%s779 + $0x78] sm:$0xf] %vm780, %v2906
      %2979 = vst.msk [vmem:[%s779 + $0x80] sm:$0xf0] %vm797, %v2907
      %2980 = vst.msk [vmem:[%s779 + $0x88] sm:$0xf] %vm780, %v2909
      %2981 = vst.msk [vmem:[%s779 + $0x90] sm:$0xf0] %vm797, %v2910
      %2982 = vst.msk [vmem:[%s779 + $0x98] sm:$0xf] %vm780, %v2912
      %2983 = vst.msk [vmem:[%s779 + $0xa0] sm:$0xf0] %vm797, %v2913
      %2984 = vst.msk [vmem:[%s779 + $0xa8] sm:$0xf] %vm780, %v2915
      %2985 = vst.msk [vmem:[%s779 + $0xb0] sm:$0xf0] %vm797, %v2916
      %2986 = vst.msk [vmem:[%s779 + $0xb8] sm:$0xf] %vm780, %v2918
      %2987 = vst.msk [vmem:[%s779 + $0xc0] sm:$0xf0] %vm797, %v2919
      %2988 = vst.msk [vmem:[%s779 + $0xc8] sm:$0xf] %vm780, %v2921
      %2989 = vst.msk [vmem:[%s779 + $0xd0] sm:$0xf0] %vm797, %v2922
      %2990 = vst.msk [vmem:[%s779 + $0xd8] sm:$0xf] %vm780, %v2924
      %2991 = vst.msk [vmem:[%s779 + $0xe0] sm:$0xf0] %vm797, %v2925
      %2992 = vst.msk [vmem:[%s779 + $0xe8] sm:$0xf] %vm780, %v2927
      %2993 = vst.msk [vmem:[%s779 + $0xf0] sm:$0xf0] %vm797, %v2928
      %2994 = vst.msk [vmem:[%s779 + $0xf8] sm:$0xf] %vm780, %v2930
      %v2995 = vld [vmem:[#allocation2] sm:$0xff]
      %v2996 = vld [vmem:[#allocation2 + $0x8] sm:$0xff]
      %v2997 = vld [vmem:[#allocation2 + $0x10] sm:$0xff]
      %v2998 = vld [vmem:[#allocation2 + $0x18] sm:$0xff]
      %v2999 = vld [vmem:[#allocation2 + $0x20] sm:$0xff]
      %v3000 = vld [vmem:[#allocation2 + $0x28] sm:$0xff]
      %v3001 = vld [vmem:[#allocation2 + $0x30] sm:$0xff]
      %v3002 = vld [vmem:[#allocation2 + $0x38] sm:$0xff]
      %v3003 = vld [vmem:[#allocation2 + $0x40] sm:$0xff]
      %v3004 = vld [vmem:[#allocation2 + $0x48] sm:$0xff]
      %v3005 = vld [vmem:[#allocation2 + $0x50] sm:$0xff]
      %v3006 = vld [vmem:[#allocation2 + $0x58] sm:$0xff]
      %v3007 = vld [vmem:[#allocation2 + $0x60] sm:$0xff]
      %v3008 = vld [vmem:[#allocation2 + $0x68] sm:$0xff]
      %v3009 = vld [vmem:[#allocation2 + $0x70] sm:$0xff]
      %v3010 = vld [vmem:[#allocation2 + $0x78] sm:$0xff]
      %v3011 = vld [vmem:[#allocation2 + $0x80] sm:$0xff]
      %v3012 = vld [vmem:[#allocation2 + $0x88] sm:$0xff]
      %v3013 = vld [vmem:[#allocation2 + $0x90] sm:$0xff]
      %v3014 = vld [vmem:[#allocation2 + $0x98] sm:$0xff]
      %v3015 = vld [vmem:[#allocation2 + $0xa0] sm:$0xff]
      %v3016 = vld [vmem:[#allocation2 + $0xa8] sm:$0xff]
      %v3017 = vld [vmem:[#allocation2 + $0xb0] sm:$0xff]
      %v3018 = vld [vmem:[#allocation2 + $0xb8] sm:$0xff]
      %v3019 = vld [vmem:[#allocation2 + $0xc0] sm:$0xff]
      %v3020 = vld [vmem:[#allocation2 + $0xc8] sm:$0xff]
      %v3021 = vld [vmem:[#allocation2 + $0xd0] sm:$0xff]
      %v3022 = vld [vmem:[#allocation2 + $0xd8] sm:$0xff]
      %v3023 = vld [vmem:[#allocation2 + $0xe0] sm:$0xff]
      %v3024 = vld [vmem:[#allocation2 + $0xe8] sm:$0xff]
      %v3025 = vld [vmem:[#allocation2 + $0xf0] sm:$0xff]
      %v3026 = vld [vmem:[#allocation2 + $0xf8] sm:$0xff]
      %v3027 = vld [vmem:[#allocation2 + $0x100] sm:$0xff]
      %v3028 = vld [vmem:[#allocation2 + $0x108] sm:$0xff]
      %v3029 = vld [vmem:[#allocation2 + $0x110] sm:$0xff]
      %v3030 = vld [vmem:[#allocation2 + $0x118] sm:$0xff]
      %v3031 = vld [vmem:[#allocation2 + $0x120] sm:$0xff]
      %v3032 = vld [vmem:[#allocation2 + $0x128] sm:$0xff]
      %v3033 = vld [vmem:[#allocation2 + $0x130] sm:$0xff]
      %v3034 = vld [vmem:[#allocation2 + $0x138] sm:$0xff]
      %v3035 = vmax.bf16 %v2995, %v2997
      %v3036 = vmax.bf16 %v2996, %v2998
      %v3037 = vmax.bf16 %v2997, %v2999
      %v3038 = vmax.bf16 %v2998, %v3000
      %v3039 = vmax.bf16 %v2999, %v3001
      %v3040 = vmax.bf16 %v3000, %v3002
      %v3041 = vmax.bf16 %v3001, %v3003
      %v3042 = vmax.bf16 %v3002, %v3004
      %v3043 = vmax.bf16 %v3003, %v3005
      %v3044 = vmax.bf16 %v3004, %v3006
      %v3045 = vmax.bf16 %v3005, %v3007
      %v3046 = vmax.bf16 %v3006, %v3008
      %v3047 = vmax.bf16 %v3007, %v3009
      %v3048 = vmax.bf16 %v3008, %v3010
      %v3049 = vmax.bf16 %v3009, %v3011
      %v3050 = vmax.bf16 %v3010, %v3012
      %v3051 = vmax.bf16 %v3011, %v3013
      %v3052 = vmax.bf16 %v3012, %v3014
      %v3053 = vmax.bf16 %v3013, %v3015
      %v3054 = vmax.bf16 %v3014, %v3016
      %v3055 = vmax.bf16 %v3015, %v3017
      %v3056 = vmax.bf16 %v3016, %v3018
      %v3057 = vmax.bf16 %v3017, %v3019
      %v3058 = vmax.bf16 %v3018, %v3020
      %v3059 = vmax.bf16 %v3019, %v3021
      %v3060 = vmax.bf16 %v3020, %v3022
      %v3061 = vmax.bf16 %v3021, %v3023
      %v3062 = vmax.bf16 %v3022, %v3024
      %v3063 = vmax.bf16 %v3023, %v3025
      %v3064 = vmax.bf16 %v3024, %v3026
      %v3065 = vmax.bf16 %v3025, %v3027
      %v3066 = vmax.bf16 %v3026, %v3028
      %v3067 = vmax.bf16 %v3035, %v2999
      %v3068 = vmax.bf16 %v3036, %v3000
      %v3069 = vmax.bf16 %v3037, %v3001
      %v3070 = vmax.bf16 %v3038, %v3002
      %v3071 = vmax.bf16 %v3039, %v3003
      %v3072 = vmax.bf16 %v3040, %v3004
      %v3073 = vmax.bf16 %v3041, %v3005
      %v3074 = vmax.bf16 %v3042, %v3006
      %v3075 = vmax.bf16 %v3043, %v3007
      %v3076 = vmax.bf16 %v3044, %v3008
      %v3077 = vmax.bf16 %v3045, %v3009
      %v3078 = vmax.bf16 %v3046, %v3010
      %v3079 = vmax.bf16 %v3047, %v3011
      %v3080 = vmax.bf16 %v3048, %v3012
      %v3081 = vmax.bf16 %v3049, %v3013
      %v3082 = vmax.bf16 %v3050, %v3014
      %v3083 = vmax.bf16 %v3051, %v3015
      %v3084 = vmax.bf16 %v3052, %v3016
      %v3085 = vmax.bf16 %v3053, %v3017
      %v3086 = vmax.bf16 %v3054, %v3018
      %v3087 = vmax.bf16 %v3055, %v3019
      %v3088 = vmax.bf16 %v3056, %v3020
      %v3089 = vmax.bf16 %v3057, %v3021
      %v3090 = vmax.bf16 %v3058, %v3022
      %v3091 = vmax.bf16 %v3059, %v3023
      %v3092 = vmax.bf16 %v3060, %v3024
      %v3093 = vmax.bf16 %v3061, %v3025
      %v3094 = vmax.bf16 %v3062, %v3026
      %v3095 = vmax.bf16 %v3063, %v3027
      %v3096 = vmax.bf16 %v3064, %v3028
      %v3097 = vmax.bf16 %v3065, %v3029
      %v3098 = vmax.bf16 %v3066, %v3030
      %v3099 = vmax.bf16 %v3067, %v3001
      %v3100 = vmax.bf16 %v3068, %v3002
      %v3101 = vmax.bf16 %v3069, %v3003
      %v3102 = vmax.bf16 %v3070, %v3004
      %v3103 = vmax.bf16 %v3071, %v3005
      %v3104 = vmax.bf16 %v3072, %v3006
      %v3105 = vmax.bf16 %v3073, %v3007
      %v3106 = vmax.bf16 %v3074, %v3008
      %v3107 = vmax.bf16 %v3075, %v3009
      %v3108 = vmax.bf16 %v3076, %v3010
      %v3109 = vmax.bf16 %v3077, %v3011
      %v3110 = vmax.bf16 %v3078, %v3012
      %v3111 = vmax.bf16 %v3079, %v3013
      %v3112 = vmax.bf16 %v3080, %v3014
      %v3113 = vmax.bf16 %v3081, %v3015
      %v3114 = vmax.bf16 %v3082, %v3016
      %v3115 = vmax.bf16 %v3083, %v3017
      %v3116 = vmax.bf16 %v3084, %v3018
      %v3117 = vmax.bf16 %v3085, %v3019
      %v3118 = vmax.bf16 %v3086, %v3020
      %v3119 = vmax.bf16 %v3087, %v3021
      %v3120 = vmax.bf16 %v3088, %v3022
      %v3121 = vmax.bf16 %v3089, %v3023
      %v3122 = vmax.bf16 %v3090, %v3024
      %v3123 = vmax.bf16 %v3091, %v3025
      %v3124 = vmax.bf16 %v3092, %v3026
      %v3125 = vmax.bf16 %v3093, %v3027
      %v3126 = vmax.bf16 %v3094, %v3028
      %v3127 = vmax.bf16 %v3095, %v3029
      %v3128 = vmax.bf16 %v3096, %v3030
      %v3129 = vmax.bf16 %v3097, %v3031
      %v3130 = vmax.bf16 %v3098, %v3032
      %v3131 = vmax.bf16 %v3099, %v3003
      %v3132 = vmax.bf16 %v3100, %v3004
      %v3133 = vmax.bf16 %v3101, %v3005
      %v3134 = vmax.bf16 %v3102, %v3006
      %v3135 = vmax.bf16 %v3103, %v3007
      %v3136 = vmax.bf16 %v3104, %v3008
      %v3137 = vmax.bf16 %v3105, %v3009
      %v3138 = vmax.bf16 %v3106, %v3010
      %v3139 = vmax.bf16 %v3107, %v3011
      %v3140 = vmax.bf16 %v3108, %v3012
      %v3141 = vmax.bf16 %v3109, %v3013
      %v3142 = vmax.bf16 %v3110, %v3014
      %v3143 = vmax.bf16 %v3111, %v3015
      %v3144 = vmax.bf16 %v3112, %v3016
      %v3145 = vmax.bf16 %v3113, %v3017
      %v3146 = vmax.bf16 %v3114, %v3018
      %v3147 = vmax.bf16 %v3115, %v3019
      %v3148 = vmax.bf16 %v3116, %v3020
      %v3149 = vmax.bf16 %v3117, %v3021
      %v3150 = vmax.bf16 %v3118, %v3022
      %v3151 = vmax.bf16 %v3119, %v3023
      %v3152 = vmax.bf16 %v3120, %v3024
      %v3153 = vmax.bf16 %v3121, %v3025
      %v3154 = vmax.bf16 %v3122, %v3026
      %v3155 = vmax.bf16 %v3123, %v3027
      %v3156 = vmax.bf16 %v3124, %v3028
      %v3157 = vmax.bf16 %v3125, %v3029
      %v3158 = vmax.bf16 %v3126, %v3030
      %v3159 = vmax.bf16 %v3127, %v3031
      %v3160 = vmax.bf16 %v3128, %v3032
      %v3161 = vmax.bf16 %v3129, %v3033
      %v3162 = vmax.bf16 %v3130, %v3034
      %v3164 = vshrl.u32 %v3131, 16
      %v3166 = vshll.u32 %v3131, 16
      %v3168 = vrot.slane %v3166, 1
      %v3169 = vor.u32 %v3164, %v3168
      %v3171 = vshll.u32 %v3132, 16
      %v3173 = vrot.slane %v3171, 1
      %v3174 = vsel %vm1062, %v3169, %v3173
      %v3175 = vshrl.u32 %v3132, 16
      %v3177 = vor.u32 %v3175, %v3173
      %v3179 = vshrl.u32 %v3133, 16
      %v3181 = vshll.u32 %v3133, 16
      %v3183 = vrot.slane %v3181, 1
      %v3184 = vor.u32 %v3179, %v3183
      %v3186 = vshll.u32 %v3134, 16
      %v3188 = vrot.slane %v3186, 1
      %v3189 = vsel %vm1062, %v3184, %v3188
      %v3190 = vshrl.u32 %v3134, 16
      %v3192 = vor.u32 %v3190, %v3188
      %v3194 = vshrl.u32 %v3135, 16
      %v3196 = vshll.u32 %v3135, 16
      %v3198 = vrot.slane %v3196, 1
      %v3199 = vor.u32 %v3194, %v3198
      %v3201 = vshll.u32 %v3136, 16
      %v3203 = vrot.slane %v3201, 1
      %v3204 = vsel %vm1062, %v3199, %v3203
      %v3205 = vshrl.u32 %v3136, 16
      %v3207 = vor.u32 %v3205, %v3203
      %v3209 = vshrl.u32 %v3137, 16
      %v3211 = vshll.u32 %v3137, 16
      %v3213 = vrot.slane %v3211, 1
      %v3214 = vor.u32 %v3209, %v3213
      %v3216 = vshll.u32 %v3138, 16
      %v3218 = vrot.slane %v3216, 1
      %v3219 = vsel %vm1062, %v3214, %v3218
      %v3220 = vshrl.u32 %v3138, 16
      %v3222 = vor.u32 %v3220, %v3218
      %v3224 = vshrl.u32 %v3139, 16
      %v3226 = vshll.u32 %v3139, 16
      %v3228 = vrot.slane %v3226, 1
      %v3229 = vor.u32 %v3224, %v3228
      %v3231 = vshll.u32 %v3140, 16
      %v3233 = vrot.slane %v3231, 1
      %v3234 = vsel %vm1062, %v3229, %v3233
      %v3235 = vshrl.u32 %v3140, 16
      %v3237 = vor.u32 %v3235, %v3233
      %v3239 = vshrl.u32 %v3141, 16
      %v3241 = vshll.u32 %v3141, 16
      %v3243 = vrot.slane %v3241, 1
      %v3244 = vor.u32 %v3239, %v3243
      %v3246 = vshll.u32 %v3142, 16
      %v3248 = vrot.slane %v3246, 1
      %v3249 = vsel %vm1062, %v3244, %v3248
      %v3250 = vshrl.u32 %v3142, 16
      %v3252 = vor.u32 %v3250, %v3248
      %v3254 = vshrl.u32 %v3143, 16
      %v3256 = vshll.u32 %v3143, 16
      %v3258 = vrot.slane %v3256, 1
      %v3259 = vor.u32 %v3254, %v3258
      %v3261 = vshll.u32 %v3144, 16
      %v3263 = vrot.slane %v3261, 1
      %v3264 = vsel %vm1062, %v3259, %v3263
      %v3265 = vshrl.u32 %v3144, 16
      %v3267 = vor.u32 %v3265, %v3263
      %v3269 = vshrl.u32 %v3145, 16
      %v3271 = vshll.u32 %v3145, 16
      %v3273 = vrot.slane %v3271, 1
      %v3274 = vor.u32 %v3269, %v3273
      %v3276 = vshll.u32 %v3146, 16
      %v3278 = vrot.slane %v3276, 1
      %v3279 = vsel %vm1062, %v3274, %v3278
      %v3280 = vshrl.u32 %v3146, 16
      %v3282 = vor.u32 %v3280, %v3278
      %v3284 = vshrl.u32 %v3147, 16
      %v3286 = vshll.u32 %v3147, 16
      %v3288 = vrot.slane %v3286, 1
      %v3289 = vor.u32 %v3284, %v3288
      %v3291 = vshll.u32 %v3148, 16
      %v3293 = vrot.slane %v3291, 1
      %v3294 = vsel %vm1062, %v3289, %v3293
      %v3295 = vshrl.u32 %v3148, 16
      %v3297 = vor.u32 %v3295, %v3293
      %v3299 = vshrl.u32 %v3149, 16
      %v3301 = vshll.u32 %v3149, 16
      %v3303 = vrot.slane %v3301, 1
      %v3304 = vor.u32 %v3299, %v3303
      %v3306 = vshll.u32 %v3150, 16
      %v3308 = vrot.slane %v3306, 1
      %v3309 = vsel %vm1062, %v3304, %v3308
      %v3310 = vshrl.u32 %v3150, 16
      %v3312 = vor.u32 %v3310, %v3308
      %v3314 = vshrl.u32 %v3151, 16
      %v3316 = vshll.u32 %v3151, 16
      %v3318 = vrot.slane %v3316, 1
      %v3319 = vor.u32 %v3314, %v3318
      %v3321 = vshll.u32 %v3152, 16
      %v3323 = vrot.slane %v3321, 1
      %v3324 = vsel %vm1062, %v3319, %v3323
      %v3325 = vshrl.u32 %v3152, 16
      %v3327 = vor.u32 %v3325, %v3323
      %v3329 = vshrl.u32 %v3153, 16
      %v3331 = vshll.u32 %v3153, 16
      %v3333 = vrot.slane %v3331, 1
      %v3334 = vor.u32 %v3329, %v3333
      %v3336 = vshll.u32 %v3154, 16
      %v3338 = vrot.slane %v3336, 1
      %v3339 = vsel %vm1062, %v3334, %v3338
      %v3340 = vshrl.u32 %v3154, 16
      %v3342 = vor.u32 %v3340, %v3338
      %v3344 = vshrl.u32 %v3155, 16
      %v3346 = vshll.u32 %v3155, 16
      %v3348 = vrot.slane %v3346, 1
      %v3349 = vor.u32 %v3344, %v3348
      %v3351 = vshll.u32 %v3156, 16
      %v3353 = vrot.slane %v3351, 1
      %v3354 = vsel %vm1062, %v3349, %v3353
      %v3355 = vshrl.u32 %v3156, 16
      %v3357 = vor.u32 %v3355, %v3353
      %v3359 = vshrl.u32 %v3157, 16
      %v3361 = vshll.u32 %v3157, 16
      %v3363 = vrot.slane %v3361, 1
      %v3364 = vor.u32 %v3359, %v3363
      %v3366 = vshll.u32 %v3158, 16
      %v3368 = vrot.slane %v3366, 1
      %v3369 = vsel %vm1062, %v3364, %v3368
      %v3370 = vshrl.u32 %v3158, 16
      %v3372 = vor.u32 %v3370, %v3368
      %v3374 = vshrl.u32 %v3159, 16
      %v3376 = vshll.u32 %v3159, 16
      %v3378 = vrot.slane %v3376, 1
      %v3379 = vor.u32 %v3374, %v3378
      %v3381 = vshll.u32 %v3160, 16
      %v3383 = vrot.slane %v3381, 1
      %v3384 = vsel %vm1062, %v3379, %v3383
      %v3385 = vshrl.u32 %v3160, 16
      %v3387 = vor.u32 %v3385, %v3383
      %v3389 = vshrl.u32 %v3161, 16
      %v3391 = vshll.u32 %v3161, 16
      %v3393 = vrot.slane %v3391, 1
      %v3394 = vor.u32 %v3389, %v3393
      %v3396 = vshll.u32 %v3162, 16
      %v3398 = vrot.slane %v3396, 1
      %v3399 = vsel %vm1062, %v3394, %v3398
      %v3400 = vshrl.u32 %v3162, 16
      %v3402 = vor.u32 %v3400, %v3398
      %v3435 = vmax.bf16 %v3131, %v3174
      %v3436 = vmax.bf16 %v3132, %v3177
      %v3437 = vmax.bf16 %v3133, %v3189
      %v3438 = vmax.bf16 %v3134, %v3192
      %v3439 = vmax.bf16 %v3135, %v3204
      %v3440 = vmax.bf16 %v3136, %v3207
      %v3441 = vmax.bf16 %v3137, %v3219
      %v3442 = vmax.bf16 %v3138, %v3222
      %v3443 = vmax.bf16 %v3139, %v3234
      %v3444 = vmax.bf16 %v3140, %v3237
      %v3445 = vmax.bf16 %v3141, %v3249
      %v3446 = vmax.bf16 %v3142, %v3252
      %v3447 = vmax.bf16 %v3143, %v3264
      %v3448 = vmax.bf16 %v3144, %v3267
      %v3449 = vmax.bf16 %v3145, %v3279
      %v3450 = vmax.bf16 %v3146, %v3282
      %v3451 = vmax.bf16 %v3147, %v3294
      %v3452 = vmax.bf16 %v3148, %v3297
      %v3453 = vmax.bf16 %v3149, %v3309
      %v3454 = vmax.bf16 %v3150, %v3312
      %v3455 = vmax.bf16 %v3151, %v3324
      %v3456 = vmax.bf16 %v3152, %v3327
      %v3457 = vmax.bf16 %v3153, %v3339
      %v3458 = vmax.bf16 %v3154, %v3342
      %v3459 = vmax.bf16 %v3155, %v3354
      %v3460 = vmax.bf16 %v3156, %v3357
      %v3461 = vmax.bf16 %v3157, %v3369
      %v3462 = vmax.bf16 %v3158, %v3372
      %v3463 = vmax.bf16 %v3159, %v3384
      %v3464 = vmax.bf16 %v3160, %v3387
      %v3465 = vmax.bf16 %v3161, %v3399
      %v3466 = vmax.bf16 %v3162, %v3402
      %v3499 = vrot.slane %v3131, 1
      %v3500 = vrot.slane %v3132, 1
      %v3501 = vsel %vm1399, %v3499, %v3500
      %v3502 = vrot.slane %v3133, 1
      %v3503 = vrot.slane %v3134, 1
      %v3504 = vsel %vm1399, %v3502, %v3503
      %v3505 = vrot.slane %v3135, 1
      %v3506 = vrot.slane %v3136, 1
      %v3507 = vsel %vm1399, %v3505, %v3506
      %v3508 = vrot.slane %v3137, 1
      %v3509 = vrot.slane %v3138, 1
      %v3510 = vsel %vm1399, %v3508, %v3509
      %v3511 = vrot.slane %v3139, 1
      %v3512 = vrot.slane %v3140, 1
      %v3513 = vsel %vm1399, %v3511, %v3512
      %v3514 = vrot.slane %v3141, 1
      %v3515 = vrot.slane %v3142, 1
      %v3516 = vsel %vm1399, %v3514, %v3515
      %v3517 = vrot.slane %v3143, 1
      %v3518 = vrot.slane %v3144, 1
      %v3519 = vsel %vm1399, %v3517, %v3518
      %v3520 = vrot.slane %v3145, 1
      %v3521 = vrot.slane %v3146, 1
      %v3522 = vsel %vm1399, %v3520, %v3521
      %v3523 = vrot.slane %v3147, 1
      %v3524 = vrot.slane %v3148, 1
      %v3525 = vsel %vm1399, %v3523, %v3524
      %v3526 = vrot.slane %v3149, 1
      %v3527 = vrot.slane %v3150, 1
      %v3528 = vsel %vm1399, %v3526, %v3527
      %v3529 = vrot.slane %v3151, 1
      %v3530 = vrot.slane %v3152, 1
      %v3531 = vsel %vm1399, %v3529, %v3530
      %v3532 = vrot.slane %v3153, 1
      %v3533 = vrot.slane %v3154, 1
      %v3534 = vsel %vm1399, %v3532, %v3533
      %v3535 = vrot.slane %v3155, 1
      %v3536 = vrot.slane %v3156, 1
      %v3537 = vsel %vm1399, %v3535, %v3536
      %v3538 = vrot.slane %v3157, 1
      %v3539 = vrot.slane %v3158, 1
      %v3540 = vsel %vm1399, %v3538, %v3539
      %v3541 = vrot.slane %v3159, 1
      %v3542 = vrot.slane %v3160, 1
      %v3543 = vsel %vm1399, %v3541, %v3542
      %v3544 = vrot.slane %v3161, 1
      %v3545 = vrot.slane %v3162, 1
      %v3546 = vsel %vm1399, %v3544, %v3545
      %v3579 = vmax.bf16 %v3435, %v3501
      %v3580 = vmax.bf16 %v3436, %v3500
      %v3581 = vmax.bf16 %v3437, %v3504
      %v3582 = vmax.bf16 %v3438, %v3503
      %v3583 = vmax.bf16 %v3439, %v3507
      %v3584 = vmax.bf16 %v3440, %v3506
      %v3585 = vmax.bf16 %v3441, %v3510
      %v3586 = vmax.bf16 %v3442, %v3509
      %v3587 = vmax.bf16 %v3443, %v3513
      %v3588 = vmax.bf16 %v3444, %v3512
      %v3589 = vmax.bf16 %v3445, %v3516
      %v3590 = vmax.bf16 %v3446, %v3515
      %v3591 = vmax.bf16 %v3447, %v3519
      %v3592 = vmax.bf16 %v3448, %v3518
      %v3593 = vmax.bf16 %v3449, %v3522
      %v3594 = vmax.bf16 %v3450, %v3521
      %v3595 = vmax.bf16 %v3451, %v3525
      %v3596 = vmax.bf16 %v3452, %v3524
      %v3597 = vmax.bf16 %v3453, %v3528
      %v3598 = vmax.bf16 %v3454, %v3527
      %v3599 = vmax.bf16 %v3455, %v3531
      %v3600 = vmax.bf16 %v3456, %v3530
      %v3601 = vmax.bf16 %v3457, %v3534
      %v3602 = vmax.bf16 %v3458, %v3533
      %v3603 = vmax.bf16 %v3459, %v3537
      %v3604 = vmax.bf16 %v3460, %v3536
      %v3605 = vmax.bf16 %v3461, %v3540
      %v3606 = vmax.bf16 %v3462, %v3539
      %v3607 = vmax.bf16 %v3463, %v3543
      %v3608 = vmax.bf16 %v3464, %v3542
      %v3609 = vmax.bf16 %v3465, %v3546
      %v3610 = vmax.bf16 %v3466, %v3545
      %v3611 = vrot.slane %v3164, 1
      %v3612 = vrot.slane %v3166, 2
      %v3613 = vor.u32 %v3611, %v3612
      %v3614 = vrot.slane %v3175, 1
      %v3615 = vrot.slane %v3171, 2
      %v3616 = vor.u32 %v3614, %v3615
      %v3617 = vsel %vm1512, %v3613, %v3616
      %v3618 = vrot.slane %v3179, 1
      %v3619 = vrot.slane %v3181, 2
      %v3620 = vor.u32 %v3618, %v3619
      %v3621 = vrot.slane %v3190, 1
      %v3622 = vrot.slane %v3186, 2
      %v3623 = vor.u32 %v3621, %v3622
      %v3624 = vsel %vm1512, %v3620, %v3623
      %v3625 = vrot.slane %v3194, 1
      %v3626 = vrot.slane %v3196, 2
      %v3627 = vor.u32 %v3625, %v3626
      %v3628 = vrot.slane %v3205, 1
      %v3629 = vrot.slane %v3201, 2
      %v3630 = vor.u32 %v3628, %v3629
      %v3631 = vsel %vm1512, %v3627, %v3630
      %v3632 = vrot.slane %v3209, 1
      %v3633 = vrot.slane %v3211, 2
      %v3634 = vor.u32 %v3632, %v3633
      %v3635 = vrot.slane %v3220, 1
      %v3636 = vrot.slane %v3216, 2
      %v3637 = vor.u32 %v3635, %v3636
      %v3638 = vsel %vm1512, %v3634, %v3637
      %v3639 = vrot.slane %v3224, 1
      %v3640 = vrot.slane %v3226, 2
      %v3641 = vor.u32 %v3639, %v3640
      %v3642 = vrot.slane %v3235, 1
      %v3643 = vrot.slane %v3231, 2
      %v3644 = vor.u32 %v3642, %v3643
      %v3645 = vsel %vm1512, %v3641, %v3644
      %v3646 = vrot.slane %v3239, 1
      %v3647 = vrot.slane %v3241, 2
      %v3648 = vor.u32 %v3646, %v3647
      %v3649 = vrot.slane %v3250, 1
      %v3650 = vrot.slane %v3246, 2
      %v3651 = vor.u32 %v3649, %v3650
      %v3652 = vsel %vm1512, %v3648, %v3651
      %v3653 = vrot.slane %v3254, 1
      %v3654 = vrot.slane %v3256, 2
      %v3655 = vor.u32 %v3653, %v3654
      %v3656 = vrot.slane %v3265, 1
      %v3657 = vrot.slane %v3261, 2
      %v3658 = vor.u32 %v3656, %v3657
      %v3659 = vsel %vm1512, %v3655, %v3658
      %v3660 = vrot.slane %v3269, 1
      %v3661 = vrot.slane %v3271, 2
      %v3662 = vor.u32 %v3660, %v3661
      %v3663 = vrot.slane %v3280, 1
      %v3664 = vrot.slane %v3276, 2
      %v3665 = vor.u32 %v3663, %v3664
      %v3666 = vsel %vm1512, %v3662, %v3665
      %v3667 = vrot.slane %v3284, 1
      %v3668 = vrot.slane %v3286, 2
      %v3669 = vor.u32 %v3667, %v3668
      %v3670 = vrot.slane %v3295, 1
      %v3671 = vrot.slane %v3291, 2
      %v3672 = vor.u32 %v3670, %v3671
      %v3673 = vsel %vm1512, %v3669, %v3672
      %v3674 = vrot.slane %v3299, 1
      %v3675 = vrot.slane %v3301, 2
      %v3676 = vor.u32 %v3674, %v3675
      %v3677 = vrot.slane %v3310, 1
      %v3678 = vrot.slane %v3306, 2
      %v3679 = vor.u32 %v3677, %v3678
      %v3680 = vsel %vm1512, %v3676, %v3679
      %v3681 = vrot.slane %v3314, 1
      %v3682 = vrot.slane %v3316, 2
      %v3683 = vor.u32 %v3681, %v3682
      %v3684 = vrot.slane %v3325, 1
      %v3685 = vrot.slane %v3321, 2
      %v3686 = vor.u32 %v3684, %v3685
      %v3687 = vsel %vm1512, %v3683, %v3686
      %v3688 = vrot.slane %v3329, 1
      %v3689 = vrot.slane %v3331, 2
      %v3690 = vor.u32 %v3688, %v3689
      %v3691 = vrot.slane %v3340, 1
      %v3692 = vrot.slane %v3336, 2
      %v3693 = vor.u32 %v3691, %v3692
      %v3694 = vsel %vm1512, %v3690, %v3693
      %v3695 = vrot.slane %v3344, 1
      %v3696 = vrot.slane %v3346, 2
      %v3697 = vor.u32 %v3695, %v3696
      %v3698 = vrot.slane %v3355, 1
      %v3699 = vrot.slane %v3351, 2
      %v3700 = vor.u32 %v3698, %v3699
      %v3701 = vsel %vm1512, %v3697, %v3700
      %v3702 = vrot.slane %v3359, 1
      %v3703 = vrot.slane %v3361, 2
      %v3704 = vor.u32 %v3702, %v3703
      %v3705 = vrot.slane %v3370, 1
      %v3706 = vrot.slane %v3366, 2
      %v3707 = vor.u32 %v3705, %v3706
      %v3708 = vsel %vm1512, %v3704, %v3707
      %v3709 = vrot.slane %v3374, 1
      %v3710 = vrot.slane %v3376, 2
      %v3711 = vor.u32 %v3709, %v3710
      %v3712 = vrot.slane %v3385, 1
      %v3713 = vrot.slane %v3381, 2
      %v3714 = vor.u32 %v3712, %v3713
      %v3715 = vsel %vm1512, %v3711, %v3714
      %v3716 = vrot.slane %v3389, 1
      %v3717 = vrot.slane %v3391, 2
      %v3718 = vor.u32 %v3716, %v3717
      %v3719 = vrot.slane %v3400, 1
      %v3720 = vrot.slane %v3396, 2
      %v3721 = vor.u32 %v3719, %v3720
      %v3722 = vsel %vm1512, %v3718, %v3721
      %v3755 = vmax.bf16 %v3579, %v3617
      %v3756 = vmax.bf16 %v3580, %v3616
      %v3757 = vmax.bf16 %v3581, %v3624
      %v3758 = vmax.bf16 %v3582, %v3623
      %v3759 = vmax.bf16 %v3583, %v3631
      %v3760 = vmax.bf16 %v3584, %v3630
      %v3761 = vmax.bf16 %v3585, %v3638
      %v3762 = vmax.bf16 %v3586, %v3637
      %v3763 = vmax.bf16 %v3587, %v3645
      %v3764 = vmax.bf16 %v3588, %v3644
      %v3765 = vmax.bf16 %v3589, %v3652
      %v3766 = vmax.bf16 %v3590, %v3651
      %v3767 = vmax.bf16 %v3591, %v3659
      %v3768 = vmax.bf16 %v3592, %v3658
      %v3769 = vmax.bf16 %v3593, %v3666
      %v3770 = vmax.bf16 %v3594, %v3665
      %v3771 = vmax.bf16 %v3595, %v3673
      %v3772 = vmax.bf16 %v3596, %v3672
      %v3773 = vmax.bf16 %v3597, %v3680
      %v3774 = vmax.bf16 %v3598, %v3679
      %v3775 = vmax.bf16 %v3599, %v3687
      %v3776 = vmax.bf16 %v3600, %v3686
      %v3777 = vmax.bf16 %v3601, %v3694
      %v3778 = vmax.bf16 %v3602, %v3693
      %v3779 = vmax.bf16 %v3603, %v3701
      %v3780 = vmax.bf16 %v3604, %v3700
      %v3781 = vmax.bf16 %v3605, %v3708
      %v3782 = vmax.bf16 %v3606, %v3707
      %v3783 = vmax.bf16 %v3607, %v3715
      %v3784 = vmax.bf16 %v3608, %v3714
      %v3785 = vmax.bf16 %v3609, %v3722
      %v3786 = vmax.bf16 %v3610, %v3721
      %v3787 = vrot.slane %v3131, 2
      %v3788 = vrot.slane %v3132, 2
      %v3789 = vsel %vm1689, %v3787, %v3788
      %v3790 = vrot.slane %v3133, 2
      %v3791 = vrot.slane %v3134, 2
      %v3792 = vsel %vm1689, %v3790, %v3791
      %v3793 = vrot.slane %v3135, 2
      %v3794 = vrot.slane %v3136, 2
      %v3795 = vsel %vm1689, %v3793, %v3794
      %v3796 = vrot.slane %v3137, 2
      %v3797 = vrot.slane %v3138, 2
      %v3798 = vsel %vm1689, %v3796, %v3797
      %v3799 = vrot.slane %v3139, 2
      %v3800 = vrot.slane %v3140, 2
      %v3801 = vsel %vm1689, %v3799, %v3800
      %v3802 = vrot.slane %v3141, 2
      %v3803 = vrot.slane %v3142, 2
      %v3804 = vsel %vm1689, %v3802, %v3803
      %v3805 = vrot.slane %v3143, 2
      %v3806 = vrot.slane %v3144, 2
      %v3807 = vsel %vm1689, %v3805, %v3806
      %v3808 = vrot.slane %v3145, 2
      %v3809 = vrot.slane %v3146, 2
      %v3810 = vsel %vm1689, %v3808, %v3809
      %v3811 = vrot.slane %v3147, 2
      %v3812 = vrot.slane %v3148, 2
      %v3813 = vsel %vm1689, %v3811, %v3812
      %v3814 = vrot.slane %v3149, 2
      %v3815 = vrot.slane %v3150, 2
      %v3816 = vsel %vm1689, %v3814, %v3815
      %v3817 = vrot.slane %v3151, 2
      %v3818 = vrot.slane %v3152, 2
      %v3819 = vsel %vm1689, %v3817, %v3818
      %v3820 = vrot.slane %v3153, 2
      %v3821 = vrot.slane %v3154, 2
      %v3822 = vsel %vm1689, %v3820, %v3821
      %v3823 = vrot.slane %v3155, 2
      %v3824 = vrot.slane %v3156, 2
      %v3825 = vsel %vm1689, %v3823, %v3824
      %v3826 = vrot.slane %v3157, 2
      %v3827 = vrot.slane %v3158, 2
      %v3828 = vsel %vm1689, %v3826, %v3827
      %v3829 = vrot.slane %v3159, 2
      %v3830 = vrot.slane %v3160, 2
      %v3831 = vsel %vm1689, %v3829, %v3830
      %v3832 = vrot.slane %v3161, 2
      %v3833 = vrot.slane %v3162, 2
      %v3834 = vsel %vm1689, %v3832, %v3833
      %v3867 = vmax.bf16 %v3755, %v3789
      %v3868 = vmax.bf16 %v3756, %v3788
      %v3869 = vmax.bf16 %v3757, %v3792
      %v3870 = vmax.bf16 %v3758, %v3791
      %v3871 = vmax.bf16 %v3759, %v3795
      %v3872 = vmax.bf16 %v3760, %v3794
      %v3873 = vmax.bf16 %v3761, %v3798
      %v3874 = vmax.bf16 %v3762, %v3797
      %v3875 = vmax.bf16 %v3763, %v3801
      %v3876 = vmax.bf16 %v3764, %v3800
      %v3877 = vmax.bf16 %v3765, %v3804
      %v3878 = vmax.bf16 %v3766, %v3803
      %v3879 = vmax.bf16 %v3767, %v3807
      %v3880 = vmax.bf16 %v3768, %v3806
      %v3881 = vmax.bf16 %v3769, %v3810
      %v3882 = vmax.bf16 %v3770, %v3809
      %v3883 = vmax.bf16 %v3771, %v3813
      %v3884 = vmax.bf16 %v3772, %v3812
      %v3885 = vmax.bf16 %v3773, %v3816
      %v3886 = vmax.bf16 %v3774, %v3815
      %v3887 = vmax.bf16 %v3775, %v3819
      %v3888 = vmax.bf16 %v3776, %v3818
      %v3889 = vmax.bf16 %v3777, %v3822
      %v3890 = vmax.bf16 %v3778, %v3821
      %v3891 = vmax.bf16 %v3779, %v3825
      %v3892 = vmax.bf16 %v3780, %v3824
      %v3893 = vmax.bf16 %v3781, %v3828
      %v3894 = vmax.bf16 %v3782, %v3827
      %v3895 = vmax.bf16 %v3783, %v3831
      %v3896 = vmax.bf16 %v3784, %v3830
      %v3897 = vmax.bf16 %v3785, %v3834
      %v3898 = vmax.bf16 %v3786, %v3833
      %vm3899 = vcmask 1044480
      %v3900 = vrot.slane %v1770, 3
      %v3901 = vrot.slane %v1771, 3
      %v3902 = vsel %vm3899, %v3900, %v3901
      %v3903 = vrot.slane %v1772, 3
      %v3904 = vrot.slane %v1773, 3
      %v3905 = vsel %vm3899, %v3903, %v3904
      %v3906 = vrot.slane %v1774, 3
      %v3907 = vrot.slane %v1775, 3
      %v3908 = vsel %vm3899, %v3906, %v3907
      %v3909 = vrot.slane %v1776, 3
      %v3910 = vrot.slane %v1777, 3
      %v3911 = vsel %vm3899, %v3909, %v3910
      %v3912 = vrot.slane %v1778, 3
      %v3913 = vrot.slane %v1779, 3
      %v3914 = vsel %vm3899, %v3912, %v3913
      %v3915 = vrot.slane %v1780, 3
      %v3916 = vrot.slane %v1781, 3
      %v3917 = vsel %vm3899, %v3915, %v3916
      %v3918 = vrot.slane %v1782, 3
      %v3919 = vrot.slane %v1783, 3
      %v3920 = vsel %vm3899, %v3918, %v3919
      %v3921 = vrot.slane %v1784, 3
      %v3922 = vrot.slane %v1785, 3
      %v3923 = vsel %vm3899, %v3921, %v3922
      %v3924 = vrot.slane %v1786, 3
      %v3925 = vrot.slane %v1787, 3
      %v3926 = vsel %vm3899, %v3924, %v3925
      %v3927 = vrot.slane %v1788, 3
      %v3928 = vrot.slane %v1789, 3
      %v3929 = vsel %vm3899, %v3927, %v3928
      %v3930 = vrot.slane %v1790, 3
      %v3931 = vrot.slane %v1791, 3
      %v3932 = vsel %vm3899, %v3930, %v3931
      %v3933 = vrot.slane %v1792, 3
      %v3934 = vrot.slane %v1793, 3
      %v3935 = vsel %vm3899, %v3933, %v3934
      %v3936 = vrot.slane %v1794, 3
      %v3937 = vrot.slane %v1795, 3
      %v3938 = vsel %vm3899, %v3936, %v3937
      %v3939 = vrot.slane %v1796, 3
      %v3940 = vrot.slane %v1797, 3
      %v3941 = vsel %vm3899, %v3939, %v3940
      %v3942 = vrot.slane %v1798, 3
      %v3943 = vrot.slane %v1799, 3
      %v3944 = vsel %vm3899, %v3942, %v3943
      %v3945 = vrot.slane %v1800, 3
      %v3946 = vrot.slane %v1801, 3
      %v3947 = vsel %vm3899, %v3945, %v3946
      %3948 = vrot.lane.b32.xlu0 %v3902, 2
      %v3949 = vpop.permute.xlu0 %3948
      %3950 = vrot.lane.b32.xlu0 %v3905, 2
      %v3951 = vpop.permute.xlu0 %3950
      %3952 = vrot.lane.b32.xlu0 %v3908, 2
      %v3953 = vpop.permute.xlu0 %3952
      %3954 = vrot.lane.b32.xlu0 %v3911, 2
      %v3955 = vpop.permute.xlu0 %3954
      %3956 = vrot.lane.b32.xlu0 %v3914, 2
      %v3957 = vpop.permute.xlu0 %3956
      %3958 = vrot.lane.b32.xlu0 %v3917, 2
      %v3959 = vpop.permute.xlu0 %3958
      %3960 = vrot.lane.b32.xlu0 %v3920, 2
      %v3961 = vpop.permute.xlu0 %3960
      %3962 = vrot.lane.b32.xlu0 %v3923, 2
      %v3963 = vpop.permute.xlu0 %3962
      %3964 = vrot.lane.b32.xlu0 %v3926, 2
      %v3965 = vpop.permute.xlu0 %3964
      %3966 = vrot.lane.b32.xlu0 %v3929, 2
      %v3967 = vpop.permute.xlu0 %3966
      %3968 = vrot.lane.b32.xlu0 %v3932, 2
      %v3969 = vpop.permute.xlu0 %3968
      %3970 = vrot.lane.b32.xlu0 %v3935, 2
      %v3971 = vpop.permute.xlu0 %3970
      %3972 = vrot.lane.b32.xlu0 %v3938, 2
      %v3973 = vpop.permute.xlu0 %3972
      %3974 = vrot.lane.b32.xlu0 %v3941, 2
      %v3975 = vpop.permute.xlu0 %3974
      %3976 = vrot.lane.b32.xlu0 %v3944, 2
      %v3977 = vpop.permute.xlu0 %3976
      %3978 = vrot.lane.b32.xlu0 %v3947, 2
      %v3979 = vpop.permute.xlu0 %3978
      %v3980 = vrot.slane %v2819, 3
      %v3981 = vrot.slane %v2820, 3
      %v3982 = vsel %vm3899, %v3980, %v3981
      %v3983 = vrot.slane %v2821, 3
      %v3984 = vrot.slane %v2822, 3
      %v3985 = vsel %vm3899, %v3983, %v3984
      %v3986 = vrot.slane %v2823, 3
      %v3987 = vrot.slane %v2824, 3
      %v3988 = vsel %vm3899, %v3986, %v3987
      %v3989 = vrot.slane %v2825, 3
      %v3990 = vrot.slane %v2826, 3
      %v3991 = vsel %vm3899, %v3989, %v3990
      %v3992 = vrot.slane %v2827, 3
      %v3993 = vrot.slane %v2828, 3
      %v3994 = vsel %vm3899, %v3992, %v3993
      %v3995 = vrot.slane %v2829, 3
      %v3996 = vrot.slane %v2830, 3
      %v3997 = vsel %vm3899, %v3995, %v3996
      %v3998 = vrot.slane %v2831, 3
      %v3999 = vrot.slane %v2832, 3
      %v4000 = vsel %vm3899, %v3998, %v3999
      %v4001 = vrot.slane %v2833, 3
      %v4002 = vrot.slane %v2834, 3
      %v4003 = vsel %vm3899, %v4001, %v4002
      %v4004 = vrot.slane %v2835, 3
      %v4005 = vrot.slane %v2836, 3
      %v4006 = vsel %vm3899, %v4004, %v4005
      %v4007 = vrot.slane %v2837, 3
      %v4008 = vrot.slane %v2838, 3
      %v4009 = vsel %vm3899, %v4007, %v4008
      %v4010 = vrot.slane %v2839, 3
      %v4011 = vrot.slane %v2840, 3
      %v4012 = vsel %vm3899, %v4010, %v4011
      %v4013 = vrot.slane %v2841, 3
      %v4014 = vrot.slane %v2842, 3
      %v4015 = vsel %vm3899, %v4013, %v4014
      %v4016 = vrot.slane %v2843, 3
      %v4017 = vrot.slane %v2844, 3
      %v4018 = vsel %vm3899, %v4016, %v4017
      %v4019 = vrot.slane %v2845, 3
      %v4020 = vrot.slane %v2846, 3
      %v4021 = vsel %vm3899, %v4019, %v4020
      %v4022 = vrot.slane %v2847, 3
      %v4023 = vrot.slane %v2848, 3
      %v4024 = vsel %vm3899, %v4022, %v4023
      %v4025 = vrot.slane %v2849, 3
      %v4026 = vrot.slane %v2850, 3
      %v4027 = vsel %vm3899, %v4025, %v4026
      %4028 = vrot.lane.b32.xlu0 %v3982, 4
      %v4029 = vpop.permute.xlu0 %4028
      %4030 = vrot.lane.b32.xlu0 %v3985, 4
      %v4031 = vpop.permute.xlu0 %4030
      %4032 = vrot.lane.b32.xlu0 %v3988, 4
      %v4033 = vpop.permute.xlu0 %4032
      %4034 = vrot.lane.b32.xlu0 %v3991, 4
      %v4035 = vpop.permute.xlu0 %4034
      %4036 = vrot.lane.b32.xlu0 %v3994, 4
      %v4037 = vpop.permute.xlu0 %4036
      %4038 = vrot.lane.b32.xlu0 %v3997, 4
      %v4039 = vpop.permute.xlu0 %4038
      %4040 = vrot.lane.b32.xlu0 %v4000, 4
      %v4041 = vpop.permute.xlu0 %4040
      %4042 = vrot.lane.b32.xlu0 %v4003, 4
      %v4043 = vpop.permute.xlu0 %4042
      %4044 = vrot.lane.b32.xlu0 %v4006, 4
      %v4045 = vpop.permute.xlu0 %4044
      %4046 = vrot.lane.b32.xlu0 %v4009, 4
      %v4047 = vpop.permute.xlu0 %4046
      %4048 = vrot.lane.b32.xlu0 %v4012, 4
      %v4049 = vpop.permute.xlu0 %4048
      %4050 = vrot.lane.b32.xlu0 %v4015, 4
      %v4051 = vpop.permute.xlu0 %4050
      %4052 = vrot.lane.b32.xlu0 %v4018, 4
      %v4053 = vpop.permute.xlu0 %4052
      %4054 = vrot.lane.b32.xlu0 %v4021, 4
      %v4055 = vpop.permute.xlu0 %4054
      %4056 = vrot.lane.b32.xlu0 %v4024, 4
      %v4057 = vpop.permute.xlu0 %4056
      %4058 = vrot.lane.b32.xlu0 %v4027, 4
      %v4059 = vpop.permute.xlu0 %4058
      %v4092 = vrot.slane %v3867, 3
      %v4093 = vrot.slane %v3868, 3
      %v4094 = vsel %vm3899, %v4092, %v4093
      %v4095 = vrot.slane %v3869, 3
      %v4096 = vrot.slane %v3870, 3
      %v4097 = vsel %vm3899, %v4095, %v4096
      %v4098 = vrot.slane %v3871, 3
      %v4099 = vrot.slane %v3872, 3
      %v4100 = vsel %vm3899, %v4098, %v4099
      %v4101 = vrot.slane %v3873, 3
      %v4102 = vrot.slane %v3874, 3
      %v4103 = vsel %vm3899, %v4101, %v4102
      %v4104 = vrot.slane %v3875, 3
      %v4105 = vrot.slane %v3876, 3
      %v4106 = vsel %vm3899, %v4104, %v4105
      %v4107 = vrot.slane %v3877, 3
      %v4108 = vrot.slane %v3878, 3
      %v4109 = vsel %vm3899, %v4107, %v4108
      %v4110 = vrot.slane %v3879, 3
      %v4111 = vrot.slane %v3880, 3
      %v4112 = vsel %vm3899, %v4110, %v4111
      %v4113 = vrot.slane %v3881, 3
      %v4114 = vrot.slane %v3882, 3
      %v4115 = vsel %vm3899, %v4113, %v4114
      %v4116 = vrot.slane %v3883, 3
      %v4117 = vrot.slane %v3884, 3
      %v4118 = vsel %vm3899, %v4116, %v4117
      %v4119 = vrot.slane %v3885, 3
      %v4120 = vrot.slane %v3886, 3
      %v4121 = vsel %vm3899, %v4119, %v4120
      %v4122 = vrot.slane %v3887, 3
      %v4123 = vrot.slane %v3888, 3
      %v4124 = vsel %vm3899, %v4122, %v4123
      %v4125 = vrot.slane %v3889, 3
      %v4126 = vrot.slane %v3890, 3
      %v4127 = vsel %vm3899, %v4125, %v4126
      %v4128 = vrot.slane %v3891, 3
      %v4129 = vrot.slane %v3892, 3
      %v4130 = vsel %vm3899, %v4128, %v4129
      %v4131 = vrot.slane %v3893, 3
      %v4132 = vrot.slane %v3894, 3
      %v4133 = vsel %vm3899, %v4131, %v4132
      %v4134 = vrot.slane %v3895, 3
      %v4135 = vrot.slane %v3896, 3
      %v4136 = vsel %vm3899, %v4134, %v4135
      %v4137 = vrot.slane %v3897, 3
      %v4138 = vrot.slane %v3898, 3
      %v4139 = vsel %vm3899, %v4137, %v4138
      %4140 = vrot.lane.b32.xlu0 %v4094, 6
      %v4141 = vpop.permute.xlu0 %4140
      %4142 = vrot.lane.b32.xlu0 %v4097, 6
      %v4143 = vpop.permute.xlu0 %4142
      %4144 = vrot.lane.b32.xlu0 %v4100, 6
      %v4145 = vpop.permute.xlu0 %4144
      %4146 = vrot.lane.b32.xlu0 %v4103, 6
      %v4147 = vpop.permute.xlu0 %4146
      %4148 = vrot.lane.b32.xlu0 %v4106, 6
      %v4149 = vpop.permute.xlu0 %4148
      %4150 = vrot.lane.b32.xlu0 %v4109, 6
      %v4151 = vpop.permute.xlu0 %4150
      %4152 = vrot.lane.b32.xlu0 %v4112, 6
      %v4153 = vpop.permute.xlu0 %4152
      %4154 = vrot.lane.b32.xlu0 %v4115, 6
      %v4155 = vpop.permute.xlu0 %4154
      %4156 = vrot.lane.b32.xlu0 %v4118, 6
      %v4157 = vpop.permute.xlu0 %4156
      %4158 = vrot.lane.b32.xlu0 %v4121, 6
      %v4159 = vpop.permute.xlu0 %4158
      %4160 = vrot.lane.b32.xlu0 %v4124, 6
      %v4161 = vpop.permute.xlu0 %4160
      %4162 = vrot.lane.b32.xlu0 %v4127, 6
      %v4163 = vpop.permute.xlu0 %4162
      %4164 = vrot.lane.b32.xlu0 %v4130, 6
      %v4165 = vpop.permute.xlu0 %4164
      %4166 = vrot.lane.b32.xlu0 %v4133, 6
      %v4167 = vpop.permute.xlu0 %4166
      %4168 = vrot.lane.b32.xlu0 %v4136, 6
      %v4169 = vpop.permute.xlu0 %4168
      %4170 = vrot.lane.b32.xlu0 %v4139, 6
      %v4171 = vpop.permute.xlu0 %4170
      %v4174 = vsel %vm769, %v753, %v3949
      %v4177 = vsel %vm769, %v754, %v3951
      %v4180 = vsel %vm769, %v755, %v3953
      %v4183 = vsel %vm769, %v756, %v3955
      %v4186 = vsel %vm769, %v757, %v3957
      %v4189 = vsel %vm769, %v758, %v3959
      %v4192 = vsel %vm769, %v759, %v3961
      %v4195 = vsel %vm769, %v760, %v3963
      %v4198 = vsel %vm769, %v761, %v3965
      %v4201 = vsel %vm769, %v762, %v3967
      %v4204 = vsel %vm769, %v763, %v3969
      %v4207 = vsel %vm769, %v764, %v3971
      %v4210 = vsel %vm769, %v765, %v3973
      %v4213 = vsel %vm769, %v766, %v3975
      %v4216 = vsel %vm769, %v767, %v3977
      %v4219 = vsel %vm769, %v768, %v3979
      %v4221 = vsel %vm347, %v4174, %v4029
      %v4223 = vsel %vm347, %v4177, %v4031
      %v4225 = vsel %vm347, %v4180, %v4033
      %v4227 = vsel %vm347, %v4183, %v4035
      %v4229 = vsel %vm347, %v4186, %v4037
      %v4231 = vsel %vm347, %v4189, %v4039
      %v4233 = vsel %vm347, %v4192, %v4041
      %v4235 = vsel %vm347, %v4195, %v4043
      %v4237 = vsel %vm347, %v4198, %v4045
      %v4239 = vsel %vm347, %v4201, %v4047
      %v4241 = vsel %vm347, %v4204, %v4049
      %v4243 = vsel %vm347, %v4207, %v4051
      %v4245 = vsel %vm347, %v4210, %v4053
      %v4247 = vsel %vm347, %v4213, %v4055
      %v4249 = vsel %vm347, %v4216, %v4057
      %v4251 = vsel %vm347, %v4219, %v4059
      %vm4252 = vcmask 48128
      %v4254 = vsel %vm4252, %v4221, %v4141
      %v4256 = vsel %vm4252, %v4223, %v4143
      %v4258 = vsel %vm4252, %v4225, %v4145
      %v4260 = vsel %vm4252, %v4227, %v4147
      %v4262 = vsel %vm4252, %v4229, %v4149
      %v4264 = vsel %vm4252, %v4231, %v4151
      %v4266 = vsel %vm4252, %v4233, %v4153
      %v4268 = vsel %vm4252, %v4235, %v4155
      %v4270 = vsel %vm4252, %v4237, %v4157
      %v4272 = vsel %vm4252, %v4239, %v4159
      %v4274 = vsel %vm4252, %v4241, %v4161
      %v4276 = vsel %vm4252, %v4243, %v4163
      %v4278 = vsel %vm4252, %v4245, %v4165
      %v4280 = vsel %vm4252, %v4247, %v4167
      %v4282 = vsel %vm4252, %v4249, %v4169
      %v4284 = vsel %vm4252, %v4251, %v4171
      %v4285 = vld [vmem:[%s3] sm:$0xf]
      %v4286 = vld [vmem:[%s4] sm:$0x1]
      %v4288 = vlaneseq
      %v4289 = vshrl.u32 %v4288, 7
      %v4290 = vsub.s32 0, %v4289
      %v4291 = vrot.slane %v4286, %v4290
      %vm4293 = vcmask 64512
      %v4294 = vsel %vm4293, %v4254, 0
      %v4296 = vsel %vm4293, %v4256, 0
      %v4298 = vsel %vm4293, %v4258, 0
      %v4300 = vsel %vm4293, %v4260, 0
      %v4302 = vsel %vm4293, %v4262, 0
      %v4304 = vsel %vm4293, %v4264, 0
      %v4306 = vsel %vm4293, %v4266, 0
      %v4308 = vsel %vm4293, %v4268, 0
      %v4310 = vsel %vm4293, %v4270, 0
      %v4312 = vsel %vm4293, %v4272, 0
      %v4314 = vsel %vm4293, %v4274, 0
      %v4316 = vsel %vm4293, %v4276, 0
      %v4318 = vsel %vm4293, %v4278, 0
      %v4320 = vsel %vm4293, %v4280, 0
      %v4322 = vsel %vm4293, %v4282, 0
      %v4324 = vsel %vm4293, %v4284, 0
      %vm4326 = vcmask 1043456
      %v4328 = vsel %vm4326, %v4285, 0
      %4330 = vmatprep.subr.bf16.mxu0 0
      %4331 = vmatpush1.bf16.msra.mxu0 %v4328
      %4332 = vmatprep.subr.bf16.mxu0 0
      %4333 = vmatpush1.bf16.msra.mxu0 0
      %4334 = vmatprep.subr.bf16.mxu0 0
      %4335 = vmatpush1.bf16.msra.mxu0 0
      %4336 = vmatprep.subr.bf16.mxu0 0
      %4337 = vmatpush1.bf16.msra.mxu0 0
      %4338 = vmatprep.subr.bf16.mxu0 0
      %4339 = vmatpush1.bf16.msra.mxu0 0
      %4340 = vmatprep.subr.bf16.mxu0 0
      %4341 = vmatpush1.bf16.msra.mxu0 0
      %4342 = vmatprep.subr.bf16.mxu0 0
      %4343 = vmatpush1.bf16.msra.mxu0 0
      %4344 = vmatprep.subr.bf16.mxu0 0
      %4345 = vmatpush1.bf16.msra.mxu0 0
      %4346 = vmatprep.subr.bf16.mxu0 0
      %4347 = vmatpush1.bf16.msra.mxu0 0
      %4348 = vmatprep.subr.bf16.mxu0 0
      %4349 = vmatpush1.bf16.msra.mxu0 0
      %4350 = vmatprep.subr.bf16.mxu0 0
      %4351 = vmatpush1.bf16.msra.mxu0 0
      %4352 = vmatprep.subr.bf16.mxu0 0
      %4353 = vmatpush1.bf16.msra.mxu0 0
      %4354 = vmatprep.subr.bf16.mxu0 0
      %4355 = vmatpush1.bf16.msra.mxu0 0
      %4356 = vmatprep.subr.bf16.mxu0 0
      %4357 = vmatpush1.bf16.msra.mxu0 0
      %4358 = vmatprep.subr.bf16.mxu0 0
      %4359 = vmatpush1.bf16.msra.mxu0 0
      %4360 = vmatprep.subr.bf16.mxu0 0
      %4361 = vmatpush1.bf16.msra.mxu0 0
      %4362 = vmatprep.mubr.bf16.mxu0 0
      %4363 = vmatmul.mubr.bf16.gmra.mrb[0].mxu0 %v4294
      %v4364 = vpop.f32.mrb[0].mxu0
      %v4365 = vadd.f32 %v4291, %v4364
      %v4366 = vpop.f32.mrb[0].mxu0
      %v4367 = vpop.f32.mrb[0].mxu0
      %v4368 = vadd.f32 %v4291, %v4367
      %v4369 = vpop.f32.mrb[0].mxu0
      %4370 = vmatprep.mubr.bf16.mxu0 0
      %4371 = vmatmul.mubr.bf16.gmra.mrb[0].mxu0 %v4296
      %v4372 = vpop.f32.mrb[0].mxu0
      %v4373 = vadd.f32 %v4291, %v4372
      %v4374 = vpop.f32.mrb[0].mxu0
      %v4375 = vpop.f32.mrb[0].mxu0
      %v4376 = vadd.f32 %v4291, %v4375
      %v4377 = vpop.f32.mrb[0].mxu0
      %4378 = vmatprep.mubr.bf16.mxu0 0
      %4379 = vmatmul.mubr.bf16.gmra.mrb[0].mxu0 %v4298
      %v4380 = vpop.f32.mrb[0].mxu0
      %v4381 = vadd.f32 %v4291, %v4380
      %v4382 = vpop.f32.mrb[0].mxu0
      %v4383 = vpop.f32.mrb[0].mxu0
      %v4384 = vadd.f32 %v4291, %v4383
      %v4385 = vpop.f32.mrb[0].mxu0
      %4386 = vmatprep.mubr.bf16.mxu0 0
      %4387 = vmatmul.mubr.bf16.gmra.mrb[0].mxu0 %v4300
      %v4388 = vpop.f32.mrb[0].mxu0
      %v4389 = vadd.f32 %v4291, %v4388
      %v4390 = vpop.f32.mrb[0].mxu0
      %v4391 = vpop.f32.mrb[0].mxu0
      %v4392 = vadd.f32 %v4291, %v4391
      %v4393 = vpop.f32.mrb[0].mxu0
      %4394 = vmatprep.mubr.bf16.mxu0 0
      %4395 = vmatmul.mubr.bf16.gmra.mrb[0].mxu0 %v4302
      %v4396 = vpop.f32.mrb[0].mxu0
      %v4397 = vadd.f32 %v4291, %v4396
      %v4398 = vpop.f32.mrb[0].mxu0
      %v4399 = vpop.f32.mrb[0].mxu0
      %v4400 = vadd.f32 %v4291, %v4399
      %v4401 = vpop.f32.mrb[0].mxu0
      %4402 = vmatprep.mubr.bf16.mxu0 0
      %4403 = vmatmul.mubr.bf16.gmra.mrb[0].mxu0 %v4304
      %v4404 = vpop.f32.mrb[0].mxu0
      %v4405 = vadd.f32 %v4291, %v4404
      %v4406 = vpop.f32.mrb[0].mxu0
      %v4407 = vpop.f32.mrb[0].mxu0
      %v4408 = vadd.f32 %v4291, %v4407
      %v4409 = vpop.f32.mrb[0].mxu0
      %4410 = vmatprep.mubr.bf16.mxu0 0
      %4411 = vmatmul.mubr.bf16.gmra.mrb[0].mxu0 %v4306
      %v4412 = vpop.f32.mrb[0].mxu0
      %v4413 = vadd.f32 %v4291, %v4412
      %v4414 = vpop.f32.mrb[0].mxu0
      %v4415 = vpop.f32.mrb[0].mxu0
      %v4416 = vadd.f32 %v4291, %v4415
      %v4417 = vpop.f32.mrb[0].mxu0
      %4418 = vmatprep.mubr.bf16.mxu0 0
      %4419 = vmatmul.mubr.bf16.gmra.mrb[0].mxu0 %v4308
      %v4420 = vpop.f32.mrb[0].mxu0
      %v4421 = vadd.f32 %v4291, %v4420
      %v4422 = vpop.f32.mrb[0].mxu0
      %v4423 = vpop.f32.mrb[0].mxu0
      %v4424 = vadd.f32 %v4291, %v4423
      %v4425 = vpop.f32.mrb[0].mxu0
      %4426 = vmatprep.mubr.bf16.mxu0 0
      %4427 = vmatmul.mubr.bf16.gmra.mrb[0].mxu0 %v4310
      %v4428 = vpop.f32.mrb[0].mxu0
      %v4429 = vadd.f32 %v4291, %v4428
      %v4430 = vpop.f32.mrb[0].mxu0
      %v4431 = vpop.f32.mrb[0].mxu0
      %v4432 = vadd.f32 %v4291, %v4431
      %v4433 = vpop.f32.mrb[0].mxu0
      %4434 = vmatprep.mubr.bf16.mxu0 0
      %4435 = vmatmul.mubr.bf16.gmra.mrb[0].mxu0 %v4312
      %v4436 = vpop.f32.mrb[0].mxu0
      %v4437 = vadd.f32 %v4291, %v4436
      %v4438 = vpop.f32.mrb[0].mxu0
      %v4439 = vpop.f32.mrb[0].mxu0
      %v4440 = vadd.f32 %v4291, %v4439
      %v4441 = vpop.f32.mrb[0].mxu0
      %4442 = vmatprep.mubr.bf16.mxu0 0
      %4443 = vmatmul.mubr.bf16.gmra.mrb[0].mxu0 %v4314
      %v4444 = vpop.f32.mrb[0].mxu0
      %v4445 = vadd.f32 %v4291, %v4444
      %v4446 = vpop.f32.mrb[0].mxu0
      %v4447 = vpop.f32.mrb[0].mxu0
      %v4448 = vadd.f32 %v4291, %v4447
      %v4449 = vpop.f32.mrb[0].mxu0
      %4450 = vmatprep.mubr.bf16.mxu0 0
      %4451 = vmatmul.mubr.bf16.gmra.mrb[0].mxu0 %v4316
      %v4452 = vpop.f32.mrb[0].mxu0
      %v4453 = vadd.f32 %v4291, %v4452
      %v4454 = vpop.f32.mrb[0].mxu0
      %v4455 = vpop.f32.mrb[0].mxu0
      %v4456 = vadd.f32 %v4291, %v4455
      %v4457 = vpop.f32.mrb[0].mxu0
      %4458 = vmatprep.mubr.bf16.mxu0 0
      %4459 = vmatmul.mubr.bf16.gmra.mrb[0].mxu0 %v4318
      %v4460 = vpop.f32.mrb[0].mxu0
      %v4461 = vadd.f32 %v4291, %v4460
      %v4462 = vpop.f32.mrb[0].mxu0
      %v4463 = vpop.f32.mrb[0].mxu0
      %v4464 = vadd.f32 %v4291, %v4463
      %v4465 = vpop.f32.mrb[0].mxu0
      %4466 = vmatprep.mubr.bf16.mxu0 0
      %4467 = vmatmul.mubr.bf16.gmra.mrb[0].mxu0 %v4320
      %v4468 = vpop.f32.mrb[0].mxu0
      %v4469 = vadd.f32 %v4291, %v4468
      %v4470 = vpop.f32.mrb[0].mxu0
      %v4471 = vpop.f32.mrb[0].mxu0
      %v4472 = vadd.f32 %v4291, %v4471
      %v4473 = vpop.f32.mrb[0].mxu0
      %4474 = vmatprep.mubr.bf16.mxu0 0
      %4475 = vmatmul.mubr.bf16.gmra.mrb[0].mxu0 %v4322
      %v4476 = vpop.f32.mrb[0].mxu0
      %v4477 = vadd.f32 %v4291, %v4476
      %v4478 = vpop.f32.mrb[0].mxu0
      %v4479 = vpop.f32.mrb[0].mxu0
      %v4480 = vadd.f32 %v4291, %v4479
      %v4481 = vpop.f32.mrb[0].mxu0
      %4482 = vmatprep.mubr.bf16.mxu0 0
      %4483 = vmatmul.mubr.bf16.gmra.mrb[0].mxu0 %v4324
      %v4484 = vpop.f32.mrb[0].mxu0
      %v4485 = vadd.f32 %v4291, %v4484
      %v4486 = vpop.f32.mrb[0].mxu0
      %v4487 = vpop.f32.mrb[0].mxu0
      %v4488 = vadd.f32 %v4291, %v4487
      %v4489 = vpop.f32.mrb[0].mxu0
      %4490 = vdwg.mxu0
      %v4491 = vsub.f32 0.0, %v4365
      %v4492 = vsub.f32 0.0, %v4368
      %v4493 = vsub.f32 0.0, %v4373
      %v4494 = vsub.f32 0.0, %v4376
      %v4495 = vsub.f32 0.0, %v4381
      %v4496 = vsub.f32 0.0, %v4384
      %v4497 = vsub.f32 0.0, %v4389
      %v4498 = vsub.f32 0.0, %v4392
      %v4499 = vsub.f32 0.0, %v4397
      %v4500 = vsub.f32 0.0, %v4400
      %v4501 = vsub.f32 0.0, %v4405
      %v4502 = vsub.f32 0.0, %v4408
      %v4503 = vsub.f32 0.0, %v4413
      %v4504 = vsub.f32 0.0, %v4416
      %v4505 = vsub.f32 0.0, %v4421
      %v4506 = vsub.f32 0.0, %v4424
      %v4507 = vsub.f32 0.0, %v4429
      %v4508 = vsub.f32 0.0, %v4432
      %v4509 = vsub.f32 0.0, %v4437
      %v4510 = vsub.f32 0.0, %v4440
      %v4511 = vsub.f32 0.0, %v4445
      %v4512 = vsub.f32 0.0, %v4448
      %v4513 = vsub.f32 0.0, %v4453
      %v4514 = vsub.f32 0.0, %v4456
      %v4515 = vsub.f32 0.0, %v4461
      %v4516 = vsub.f32 0.0, %v4464
      %v4517 = vsub.f32 0.0, %v4469
      %v4518 = vsub.f32 0.0, %v4472
      %v4519 = vsub.f32 0.0, %v4477
      %v4520 = vsub.f32 0.0, %v4480
      %v4521 = vsub.f32 0.0, %v4485
      %v4522 = vsub.f32 0.0, %v4488
      %v4523 = vmul.f32 %v4491, 1.442695
      %v4524 = vpow.pop %v4523
      %v4525 = vmul.f32 %v4492, 1.442695
      %v4526 = vpow.pop %v4525
      %v4527 = vmul.f32 %v4493, 1.442695
      %v4528 = vpow.pop %v4527
      %v4529 = vmul.f32 %v4494, 1.442695
      %v4530 = vpow.pop %v4529
      %v4531 = vmul.f32 %v4495, 1.442695
      %v4532 = vpow.pop %v4531
      %v4533 = vmul.f32 %v4496, 1.442695
      %v4534 = vpow.pop %v4533
      %v4535 = vmul.f32 %v4497, 1.442695
      %v4536 = vpow.pop %v4535
      %v4537 = vmul.f32 %v4498, 1.442695
      %v4538 = vpow.pop %v4537
      %v4539 = vmul.f32 %v4499, 1.442695
      %v4540 = vpow.pop %v4539
      %v4541 = vmul.f32 %v4500, 1.442695
      %v4542 = vpow.pop %v4541
      %v4543 = vmul.f32 %v4501, 1.442695
      %v4544 = vpow.pop %v4543
      %v4545 = vmul.f32 %v4502, 1.442695
      %v4546 = vpow.pop %v4545
      %v4547 = vmul.f32 %v4503, 1.442695
      %v4548 = vpow.pop %v4547
      %v4549 = vmul.f32 %v4504, 1.442695
      %v4550 = vpow.pop %v4549
      %v4551 = vmul.f32 %v4505, 1.442695
      %v4552 = vpow.pop %v4551
      %v4553 = vmul.f32 %v4506, 1.442695
      %v4554 = vpow.pop %v4553
      %v4555 = vmul.f32 %v4507, 1.442695
      %v4556 = vpow.pop %v4555
      %v4557 = vmul.f32 %v4508, 1.442695
      %v4558 = vpow.pop %v4557
      %v4559 = vmul.f32 %v4509, 1.442695
      %v4560 = vpow.pop %v4559
      %v4561 = vmul.f32 %v4510, 1.442695
      %v4562 = vpow.pop %v4561
      %v4563 = vmul.f32 %v4511, 1.442695
      %v4564 = vpow.pop %v4563
      %v4565 = vmul.f32 %v4512, 1.442695
      %v4566 = vpow.pop %v4565
      %v4567 = vmul.f32 %v4513, 1.442695
      %v4568 = vpow.pop %v4567
      %v4569 = vmul.f32 %v4514, 1.442695
      %v4570 = vpow.pop %v4569
      %v4571 = vmul.f32 %v4515, 1.442695
      %v4572 = vpow.pop %v4571
      %v4573 = vmul.f32 %v4516, 1.442695
      %v4574 = vpow.pop %v4573
      %v4575 = vmul.f32 %v4517, 1.442695
      %v4576 = vpow.pop %v4575
      %v4577 = vmul.f32 %v4518, 1.442695
      %v4578 = vpow.pop %v4577
      %v4579 = vmul.f32 %v4519, 1.442695
      %v4580 = vpow.pop %v4579
      %v4581 = vmul.f32 %v4520, 1.442695
      %v4582 = vpow.pop %v4581
      %v4583 = vmul.f32 %v4521, 1.442695
      %v4584 = vpow.pop %v4583
      %v4585 = vmul.f32 %v4522, 1.442695
      %v4586 = vpow.pop %v4585
      %v4587 = vadd.f32 %v4524, 1.0
      %v4588 = vadd.f32 %v4526, 1.0
      %v4589 = vadd.f32 %v4528, 1.0
      %v4590 = vadd.f32 %v4530, 1.0
      %v4591 = vadd.f32 %v4532, 1.0
      %v4592 = vadd.f32 %v4534, 1.0
      %v4593 = vadd.f32 %v4536, 1.0
      %v4594 = vadd.f32 %v4538, 1.0
      %v4595 = vadd.f32 %v4540, 1.0
      %v4596 = vadd.f32 %v4542, 1.0
      %v4597 = vadd.f32 %v4544, 1.0
      %v4598 = vadd.f32 %v4546, 1.0
      %v4599 = vadd.f32 %v4548, 1.0
      %v4600 = vadd.f32 %v4550, 1.0
      %v4601 = vadd.f32 %v4552, 1.0
      %v4602 = vadd.f32 %v4554, 1.0
      %v4603 = vadd.f32 %v4556, 1.0
      %v4604 = vadd.f32 %v4558, 1.0
      %v4605 = vadd.f32 %v4560, 1.0
      %v4606 = vadd.f32 %v4562, 1.0
      %v4607 = vadd.f32 %v4564, 1.0
      %v4608 = vadd.f32 %v4566, 1.0
      %v4609 = vadd.f32 %v4568, 1.0
      %v4610 = vadd.f32 %v4570, 1.0
      %v4611 = vadd.f32 %v4572, 1.0
      %v4612 = vadd.f32 %v4574, 1.0
      %v4613 = vadd.f32 %v4576, 1.0
      %v4614 = vadd.f32 %v4578, 1.0
      %v4615 = vadd.f32 %v4580, 1.0
      %v4616 = vadd.f32 %v4582, 1.0
      %v4617 = vadd.f32 %v4584, 1.0
      %v4618 = vadd.f32 %v4586, 1.0
      %v4619 = vrcp.pop %v4587
      %v4620 = vrcp.pop %v4588
      %v4621 = vrcp.pop %v4589
      %v4622 = vrcp.pop %v4590
      %v4623 = vrcp.pop %v4591
      %v4624 = vrcp.pop %v4592
      %v4625 = vrcp.pop %v4593
      %v4626 = vrcp.pop %v4594
      %v4627 = vrcp.pop %v4595
      %v4628 = vrcp.pop %v4596
      %v4629 = vrcp.pop %v4597
      %v4630 = vrcp.pop %v4598
      %v4631 = vrcp.pop %v4599
      %v4632 = vrcp.pop %v4600
      %v4633 = vrcp.pop %v4601
      %v4634 = vrcp.pop %v4602
      %v4635 = vrcp.pop %v4603
      %v4636 = vrcp.pop %v4604
      %v4637 = vrcp.pop %v4605
      %v4638 = vrcp.pop %v4606
      %v4639 = vrcp.pop %v4607
      %v4640 = vrcp.pop %v4608
      %v4641 = vrcp.pop %v4609
      %v4642 = vrcp.pop %v4610
      %v4643 = vrcp.pop %v4611
      %v4644 = vrcp.pop %v4612
      %v4645 = vrcp.pop %v4613
      %v4646 = vrcp.pop %v4614
      %v4647 = vrcp.pop %v4615
      %v4648 = vrcp.pop %v4616
      %v4649 = vrcp.pop %v4617
      %v4650 = vrcp.pop %v4618
      %v4651 = vmul.f32 %v4365, %v4619
      %v4652 = vmul.f32 %v4368, %v4620
      %v4653 = vmul.f32 %v4373, %v4621
      %v4654 = vmul.f32 %v4376, %v4622
      %v4655 = vmul.f32 %v4381, %v4623
      %v4656 = vmul.f32 %v4384, %v4624
      %v4657 = vmul.f32 %v4389, %v4625
      %v4658 = vmul.f32 %v4392, %v4626
      %v4659 = vmul.f32 %v4397, %v4627
      %v4660 = vmul.f32 %v4400, %v4628
      %v4661 = vmul.f32 %v4405, %v4629
      %v4662 = vmul.f32 %v4408, %v4630
      %v4663 = vmul.f32 %v4413, %v4631
      %v4664 = vmul.f32 %v4416, %v4632
      %v4665 = vmul.f32 %v4421, %v4633
      %v4666 = vmul.f32 %v4424, %v4634
      %v4667 = vmul.f32 %v4429, %v4635
      %v4668 = vmul.f32 %v4432, %v4636
      %v4669 = vmul.f32 %v4437, %v4637
      %v4670 = vmul.f32 %v4440, %v4638
      %v4671 = vmul.f32 %v4445, %v4639
      %v4672 = vmul.f32 %v4448, %v4640
      %v4673 = vmul.f32 %v4453, %v4641
      %v4674 = vmul.f32 %v4456, %v4642
      %v4675 = vmul.f32 %v4461, %v4643
      %v4676 = vmul.f32 %v4464, %v4644
      %v4677 = vmul.f32 %v4469, %v4645
      %v4678 = vmul.f32 %v4472, %v4646
      %v4679 = vmul.f32 %v4477, %v4647
      %v4680 = vmul.f32 %v4480, %v4648
      %v4681 = vmul.f32 %v4485, %v4649
      %v4682 = vmul.f32 %v4488, %v4650
      %4683 = vst.msk [vmem:[%s224] sm:$0xff] %vm4293, %v4651
      %4684 = vst.msk [vmem:[%s224 + $0x8] sm:$0xff] %vm4293, %v4652
      %4685 = vst.msk [vmem:[%s224 + $0x10] sm:$0xff] %vm4293, %v4653
      %4686 = vst.msk [vmem:[%s224 + $0x18] sm:$0xff] %vm4293, %v4654
      %4687 = vst.msk [vmem:[%s224 + $0x20] sm:$0xff] %vm4293, %v4655
      %4688 = vst.msk [vmem:[%s224 + $0x28] sm:$0xff] %vm4293, %v4656
      %4689 = vst.msk [vmem:[%s224 + $0x30] sm:$0xff] %vm4293, %v4657
      %4690 = vst.msk [vmem:[%s224 + $0x38] sm:$0xff] %vm4293, %v4658
      %4691 = vst.msk [vmem:[%s224 + $0x40] sm:$0xff] %vm4293, %v4659
      %4692 = vst.msk [vmem:[%s224 + $0x48] sm:$0xff] %vm4293, %v4660
      %4693 = vst.msk [vmem:[%s224 + $0x50] sm:$0xff] %vm4293, %v4661
      %4694 = vst.msk [vmem:[%s224 + $0x58] sm:$0xff] %vm4293, %v4662
      %4695 = vst.msk [vmem:[%s224 + $0x60] sm:$0xff] %vm4293, %v4663
      %4696 = vst.msk [vmem:[%s224 + $0x68] sm:$0xff] %vm4293, %v4664
      %4697 = vst.msk [vmem:[%s224 + $0x70] sm:$0xff] %vm4293, %v4665
      %4698 = vst.msk [vmem:[%s224 + $0x78] sm:$0xff] %vm4293, %v4666
      %4699 = vst.msk [vmem:[%s224 + $0x80] sm:$0xff] %vm4293, %v4667
      %4700 = vst.msk [vmem:[%s224 + $0x88] sm:$0xff] %vm4293, %v4668
      %4701 = vst.msk [vmem:[%s224 + $0x90] sm:$0xff] %vm4293, %v4669
      %4702 = vst.msk [vmem:[%s224 + $0x98] sm:$0xff] %vm4293, %v4670
      %4703 = vst.msk [vmem:[%s224 + $0xa0] sm:$0xff] %vm4293, %v4671
      %4704 = vst.msk [vmem:[%s224 + $0xa8] sm:$0xff] %vm4293, %v4672
      %4705 = vst.msk [vmem:[%s224 + $0xb0] sm:$0xff] %vm4293, %v4673
      %4706 = vst.msk [vmem:[%s224 + $0xb8] sm:$0xff] %vm4293, %v4674
      %4707 = vst.msk [vmem:[%s224 + $0xc0] sm:$0xff] %vm4293, %v4675
      %4708 = vst.msk [vmem:[%s224 + $0xc8] sm:$0xff] %vm4293, %v4676
      %4709 = vst.msk [vmem:[%s224 + $0xd0] sm:$0xff] %vm4293, %v4677
      %4710 = vst.msk [vmem:[%s224 + $0xd8] sm:$0xff] %vm4293, %v4678
      %4711 = vst.msk [vmem:[%s224 + $0xe0] sm:$0xff] %vm4293, %v4679
      %4712 = vst.msk [vmem:[%s224 + $0xe8] sm:$0xff] %vm4293, %v4680
      %4713 = vst.msk [vmem:[%s224 + $0xf0] sm:$0xff] %vm4293, %v4681
      %4714 = vst.msk [vmem:[%s224 + $0xf8] sm:$0xff] %vm4293, %v4682
      %p4715 = scmp.lt.s32.totalorder %s16, 1
      %s4716 = scalar_select %p4715, %s16, 1
      %s4717 = smul.addr %s4716, 32
      %s4718 = smul.addr %s4717, 8
      %s4719 = scalar_lea.vmem %s5, %s4718
      // Predicated region
      $region41: #{tpu_custom_call.1} parent=39 // pred_check
        %p4720 = pneg %p144
      $region42: #{tpu_custom_call.1} parent=39 // pred_check_branch
        %4722 = sbr.rel (%p4720) target = $region44
      $region43: #{tpu_custom_call.1} parent=39 // pred_region
        _
      $region44: #{tpu_custom_call.1} parent=39 // pred_fallthru
        _
    $region40: #{tpu_custom_call.1} parent=5 // pred_fallthru
      _
    %p4723 = scmp.le.s32.totalorder 2, %s11
    // Predicated region
    $region45: #{tpu_custom_call.1} parent=5 // pred_check
      %p4724 = pneg %p4723
    $region46: #{tpu_custom_call.1} parent=5 // pred_check_branch
      %4726 = sbr.rel (%p4724) target = $region48
    $region47: #{tpu_custom_call.1} parent=5 // pred_region
      %s4727 = ssub.s32 %s11, 2
      // Predicated region
      $region49: #{tpu_custom_call.1} parent=47 // pred_check
        %p4728 = pneg %p150
      $region50: #{tpu_custom_call.1} parent=47 // pred_check_branch
        %4730 = sbr.rel (%p4728) target = $region52
      $region51: #{tpu_custom_call.1} parent=47 // pred_region
        %p4731 = scmp.lt.s32.totalorder %s17, 1
        %s4732 = scalar_select %p4731, %s17, 1
        %s4733 = smul.addr %s4732, 32
        %s4734 = smul.addr %s4733, 8
        %s4735 = scalar_lea.vmem %s5, %s4734
      $region52: #{tpu_custom_call.1} parent=47 // pred_fallthru
        _
    $region48: #{tpu_custom_call.1} parent=5 // pred_fallthru
      _
  $region6: #{tpu_custom_call.1} parent=0 // loop_footer
    %s15 = sadd.s32 1, %s11
  $region7: #{tpu_custom_call.1} parent=0 // loop_footer_branch
    %10 = sbr.rel target = $region3
  $region8: #{tpu_custom_call.1} parent=0 // loop_exit
    _

</llo_original>
